<compile_context>
chip_gen: v5e
topology: v5e:2x2
jax: 0.10.0
libtpu: 0.0.40
codegen_flags: <defaults>
</compile_context>

<pallas_src>
import functools
import math

import jax
import jax.numpy as jnp
from jax import lax
from jax.experimental import pallas as pl
from jax.experimental.pallas import tpu as pltpu


# ---------------------------------------------------------------------------
# Kernel helpers
# ---------------------------------------------------------------------------
def _layer_norm(x, gamma, beta, eps=1e-6):
    mean = jnp.mean(x, axis=-1, keepdims=True)
    var = jnp.mean((x - mean) ** 2, axis=-1, keepdims=True)  # biased, like torch LN
    return (x - mean) * lax.rsqrt(var + eps) * gamma + beta


def _mha(xq, kv, wq, wkv, wfc, gamma, beta, attn_ref, *,
         n_head, d_k, d_v, cdt, approx):
    """Multi-head attention + residual + post-LN, fully resident in VMEM.

    xq : (Tq, D) f32 query rows of this tile.
    kv : (Lk, D) f32 key/value rows (full sequence).
    wq : (D, H*d_k), wkv: (D, H*(d_k+d_v)), wfc: (H*d_v, D)  -- compute dtype.
    """
    Hdk = n_head * d_k
    scale = 1.0 / math.sqrt(d_k)

    # Fused projections: Q in one wide matmul, K|V in one wide matmul.
    q = jnp.dot(xq.astype(cdt), wq, preferred_element_type=jnp.float32)
    q = q * scale  # scale q once (Tq*H*d_k muls) instead of the logits (H*Tq*Lk)
    kvp = jnp.dot(kv.astype(cdt), wkv, preferred_element_type=jnp.float32)

    # Cast once; per-head slices below are static lane slices of these values.
    qc = q.astype(cdt)
    kc = kvp[:, :Hdk].astype(cdt)
    vc = kvp[:, Hdk:].astype(cdt)

    # TODO(synk): at production head counts use lax.fori_loop + (H, Tq, d_v)
    # VMEM scratch so only one head's logits/probs are live at a time.
    ctx_heads = []
    for h in range(n_head):
        qh = qc[:, h * d_k:(h + 1) * d_k]
        kh = kc[:, h * d_k:(h + 1) * d_k]
        vh = vc[:, h * d_v:(h + 1) * d_v]

        # Contract over the last dims of both operands (NT matmul, no k.T relayout).
        logits = lax.dot_general(qh, kh, (((1,), (1,)), ((), ())),
                                 preferred_element_type=jnp.float32)  # (Tq, Lk)
        logits = logits - jnp.max(logits, axis=-1, keepdims=True)
        p = jnp.exp(logits)
        attn = p * pl.reciprocal(jnp.sum(p, axis=-1, keepdims=True), approx=approx)
        if attn_ref is not None:
            attn_ref[0, h] = attn.astype(attn_ref.dtype)
        ctx_heads.append(jnp.dot(attn.astype(cdt), vh,
                                 preferred_element_type=jnp.float32))

    # Single wide output projection over the concatenated heads (K = H*d_v).
    ctx = jnp.concatenate(ctx_heads, axis=-1)                  # (Tq, H*d_v)
    y = jnp.dot(ctx.astype(cdt), wfc, preferred_element_type=jnp.float32) + xq
    return _layer_norm(y, gamma, beta)                         # residual + post-LN


def _decoder_layer_kernel(x_ref, enc_ref,
                          swq_ref, swkv_ref, swfc_ref,
                          cwq_ref, cwkv_ref, cwfc_ref,
                          w1_ref, w2_ref, b1_ref, vecs_ref,
                          *out_refs,
                          n_head, d_k, d_v, q_block, cdt, approx, return_attn):
    if return_attn:
        out_ref, slf_attn_ref, enc_attn_ref = out_refs
    else:
        (out_ref,) = out_refs
        slf_attn_ref = enc_attn_ref = None

    qi = pl.program_id(1)
    row0 = pl.multiple_of(qi * q_block, q_block)
    xq = x_ref[0, pl.ds(row0, q_block), :]   # (Tq, D) query rows of this tile
    x_full = x_ref[0]                        # (Ld, D) self-attn keys/values
    enc = enc_ref[0]                         # (Le, D) encoder output
    vecs = vecs_ref[...]                     # (8, D) packed LN params / FFN b2

    mha = functools.partial(_mha, n_head=n_head, d_k=d_k, d_v=d_v,
                            cdt=cdt, approx=approx)

    # 1) self-attention (+ residual + LN); mask defaults to None in the module.
    y = mha(xq, x_full, swq_ref[...], swkv_ref[...], swfc_ref[...],
            vecs[0:1], vecs[1:2], slf_attn_ref)

    # 2) encoder-decoder attention (+ residual + LN)
    y = mha(y, enc, cwq_ref[...], cwkv_ref[...], cwfc_ref[...],
            vecs[2:3], vecs[3:4], enc_attn_ref)

    # 3) position-wise FFN (+ residual + LN)
    # TODO(synk): on v7x at d_inner ~4k, chunk Dh with an f32 accumulator.
    h1 = jnp.dot(y.astype(cdt), w1_ref[...],
                 preferred_element_type=jnp.float32) + b1_ref[...]
    h1 = jnp.maximum(h1, 0.0)
    z = jnp.dot(h1.astype(cdt), w2_ref[...],
                preferred_element_type=jnp.float32) + vecs[4:5]
    out_ref[0] = _layer_norm(z + y, vecs[5:6], vecs[6:7])


# ---------------------------------------------------------------------------
# One-time parameter preparation (cast + pack; do NOT call per forward)
# ---------------------------------------------------------------------------
def prepare_decoder_params(params, *, n_head, d_k, d_v,
                           compute_dtype=jnp.bfloat16):
    del n_head, d_k, d_v  # shapes carry the info; kept for API symmetry
    p = params
    cdt = jnp.dtype(compute_dtype)
    D = p["slf_wq"].shape[0]
    cast = lambda w: jnp.asarray(w, cdt)
    return {
        "slf_wq": cast(p["slf_wq"]),
        "slf_wkv": jnp.concatenate([p["slf_wk"], p["slf_wv"]], axis=1).astype(cdt),
        "slf_wfc": cast(p["slf_wfc"]),
        "enc_wq": cast(p["enc_wq"]),
        "enc_wkv": jnp.concatenate([p["enc_wk"], p["enc_wv"]], axis=1).astype(cdt),
        "enc_wfc": cast(p["enc_wfc"]),
        "ffn_w1": cast(p["ffn_w1"]),
        "ffn_w2": cast(p["ffn_w2"]),
        "ffn_b1": jnp.asarray(p["ffn_b1"], jnp.float32),
        # Packed f32 vectors: [slf_g, slf_b, enc_g, enc_b, ffn_b2, ffn_g, ffn_b, pad]
        "vecs": jnp.concatenate(
            [p["slf_ln_g"], p["slf_ln_b"],
             p["enc_ln_g"], p["enc_ln_b"],
             p["ffn_b2"], p["ffn_ln_g"], p["ffn_ln_b"],
             jnp.zeros((1, D), jnp.float32)], axis=0).astype(jnp.float32),
    }


# ---------------------------------------------------------------------------
# Fused forward
# ---------------------------------------------------------------------------
def decoder_layer(decode_input, encode_output, prepared, *, n_head, d_k, d_v,
                  q_block=None, return_attn=True, attn_dtype=jnp.float32):
    """Fused DecoderLayer forward.

    Returns (out, slf_attn, enc_attn) if return_attn else out.
    `prepared` must come from prepare_decoder_params (weights pre-cast/packed).
    """
    p = prepared
    B, Ld, D = decode_input.shape
    Le = encode_output.shape[1]
    Dh = p["ffn_w1"].shape[1]
    Hdk, Hdv = n_head * d_k, n_head * d_v

    cdt = jnp.dtype(p["slf_wq"].dtype)
    approx = cdt == jnp.dtype(jnp.bfloat16)

    if q_block is None:
        q_block = 256 if (Ld > 256 and Ld % 256 == 0) else Ld
    assert Ld % q_block == 0, "q_block must divide the decoder length"
    assert q_block == Ld or q_block % 8 == 0, "q_block must be a multiple of 8"
    n_qt = Ld // q_block

    try:  # derive VMEM budget per generation, leave ~25% headroom
        vmem_cap = pltpu.get_tpu_info().vmem_capacity_bytes
    except Exception:
        vmem_cap = 64 * 1024 * 1024
    vmem_limit = min(int(vmem_cap * 3 // 4), 100 * 1024 * 1024)

    kernel = functools.partial(
        _decoder_layer_kernel, n_head=n_head, d_k=d_k, d_v=d_v,
        q_block=q_block, cdt=cdt, approx=approx, return_attn=return_attn)

    def _const_spec(shape, pm):
        zeros = (0,) * len(shape)
        imap = lambda b, qi: zeros
        if pm is None:
            return pl.BlockSpec(shape, imap)
        return pl.BlockSpec(shape, imap, pipeline_mode=pm)

    def _call(weight_pm):
        ws = lambda shape: _const_spec(shape, weight_pm)
        in_specs = [
            pl.BlockSpec((1, Ld, D), lambda b, qi: (b, 0, 0)),   # decoder input
            pl.BlockSpec((1, Le, D), lambda b, qi: (b, 0, 0)),   # encoder output
            ws((D, Hdk)),        # self-attn Wq
            ws((D, Hdk + Hdv)),  # self-attn Wk|Wv (fused)
            ws((Hdv, D)),        # self-attn Wfc
            ws((D, Hdk)),        # cross-attn Wq
            ws((D, Hdk + Hdv)),  # cross-attn Wk|Wv (fused)
            ws((Hdv, D)),        # cross-attn Wfc
            ws((D, Dh)),         # FFN W1
            ws((Dh, D)),         # FFN W2
            ws((1, Dh)),         # FFN b1
            ws((8, D)),          # packed LN params / FFN b2
        ]
        out_struct = jax.ShapeDtypeStruct((B, Ld, D), jnp.float32)
        out_spec = pl.BlockSpec((1, q_block, D), lambda b, qi: (b, qi, 0))
        if return_attn:
            out_shape = (out_struct,
                         jax.ShapeDtypeStruct((B, n_head, Ld, Ld), attn_dtype),
                         jax.ShapeDtypeStruct((B, n_head, Ld, Le), attn_dtype))
            out_specs = (out_spec,
                         pl.BlockSpec((1, n_head, q_block, Ld),
                                      lambda b, qi: (b, 0, qi, 0)),
                         pl.BlockSpec((1, n_head, q_block, Le),
                                      lambda b, qi: (b, 0, qi, 0)))
        else:
            out_shape = out_struct
            out_specs = out_spec

        return pl.pallas_call(
            kernel,
            out_shape=out_shape,
            grid=(B, n_qt),
            in_specs=in_specs,
            out_specs=out_specs,
            compiler_params=pltpu.CompilerParams(
                dimension_semantics=("parallel", "parallel"),
                vmem_limit_bytes=vmem_limit),
        )(decode_input, encode_output,
          p["slf_wq"], p["slf_wkv"], p["slf_wfc"],
          p["enc_wq"], p["enc_wkv"], p["enc_wfc"],
          p["ffn_w1"], p["ffn_w2"], p["ffn_b1"], p["vecs"])

    # Constant-index weight blocks never change across the grid -> request
    # single buffering (halves weight VMEM; required to fit v7x at prod shapes).
    buffered = getattr(pl, "Buffered", None)
    if buffered is not None:
        try:
            return _call(buffered(1))
        except Exception:
            pass  # fall back to default (double) buffering
    return _call(None)


# ---------------------------------------------------------------------------
# Pure-JAX (f32) reference for validation
# ---------------------------------------------------------------------------
def _ref_layer_norm(x, g, b, eps=1e-6):
    mean = jnp.mean(x, axis=-1, keepdims=True)
    var = jnp.mean((x - mean) ** 2, axis=-1, keepdims=True)
    return (x - mean) / jnp.sqrt(var + eps) * g + b


def _ref_mha(x, kv, wq, wk, wv, wfc, g, b, n_head, d_k, d_v):
    B, Lq, D = x.shape
    Lk = kv.shape[1]
    q = (x @ wq).reshape(B, Lq, n_head, d_k).transpose(0, 2, 1, 3)
    k = (kv @ wk).reshape(B, Lk, n_head, d_k).transpose(0, 2, 1, 3)
    v = (kv @ wv).reshape(B, Lk, n_head, d_v).transpose(0, 2, 1, 3)
    logits = jnp.einsum("bhqd,bhkd->bhqk", q, k) / math.sqrt(d_k)
    attn = jax.nn.softmax(logits, axis=-1)
    ctx = jnp.einsum("bhqk,bhkd->bhqd", attn, v)
    ctx = ctx.transpose(0, 2, 1, 3).reshape(B, Lq, n_head * d_v)
    return _ref_layer_norm(ctx @ wfc + x, g, b), attn


def _ref_decoder(x, enc, p, n_head, d_k, d_v):
    y, a1 = _ref_mha(x, x, p["slf_wq"], p["slf_wk"], p["slf_wv"], p["slf_wfc"],
                     p["slf_ln_g"], p["slf_ln_b"], n_head, d_k, d_v)
    y, a2 = _ref_mha(y, enc, p["enc_wq"], p["enc_wk"], p["enc_wv"], p["enc_wfc"],
                     p["enc_ln_g"], p["enc_ln_b"], n_head, d_k, d_v)
    h = jnp.maximum(y @ p["ffn_w1"] + p["ffn_b1"], 0.0)
    z = _ref_layer_norm(h @ p["ffn_w2"] + p["ffn_b2"] + y,
                        p["ffn_ln_g"], p["ffn_ln_b"])
    return z, a1, a2


if __name__ == "__main__":
    # Small shapes consistent with the module (Ld=16 so the q-tiling path runs
    # with 2 query tiles per batch element).
    B, L_dec, L_enc = 2, 16, 16
    d_model, d_inner, n_head, d_k, d_v = 32, 64, 4, 8, 8

    key = jax.random.PRNGKey(0)
    keys = jax.random.split(key, 16)

    def w(k, shape, s=0.1):
        return (s * jax.random.normal(k, shape)).astype(jnp.float32)

    params = {
        "slf_wq": w(keys[0], (d_model, n_head * d_k)),
        "slf_wk": w(keys[1], (d_model, n_head * d_k)),
        "slf_wv": w(keys[2], (d_model, n_head * d_v)),
        "slf_wfc": w(keys[3], (n_head * d_v, d_model)),
        "slf_ln_g": jnp.ones((1, d_model), jnp.float32),
        "slf_ln_b": jnp.zeros((1, d_model), jnp.float32),
        "enc_wq": w(keys[4], (d_model, n_head * d_k)),
        "enc_wk": w(keys[5], (d_model, n_head * d_k)),
        "enc_wv": w(keys[6], (d_model, n_head * d_v)),
        "enc_wfc": w(keys[7], (n_head * d_v, d_model)),
        "enc_ln_g": jnp.ones((1, d_model), jnp.float32),
        "enc_ln_b": jnp.zeros((1, d_model), jnp.float32),
        "ffn_w1": w(keys[8], (d_model, d_inner)),
        "ffn_b1": w(keys[9], (1, d_inner)),
        "ffn_w2": w(keys[10], (d_inner, d_model)),
        "ffn_b2": w(keys[11], (1, d_model)),
        "ffn_ln_g": jnp.ones((1, d_model), jnp.float32),
        "ffn_ln_b": jnp.zeros((1, d_model), jnp.float32),
    }

    decode_input = jax.random.normal(keys[12], (B, L_dec, d_model), jnp.float32)
    encode_output = jax.random.normal(keys[13], (B, L_enc, d_model), jnp.float32)

    ref_out, ref_a1, ref_a2 = _ref_decoder(
        decode_input, encode_output, params, n_head, d_k, d_v)

    # --- default fast path: bf16 MXU operands, f32 stats, 2 query tiles ---
    prep_bf16 = prepare_decoder_params(params, n_head=n_head, d_k=d_k, d_v=d_v,
                                       compute_dtype=jnp.bfloat16)
    out, slf_attn, enc_attn = decoder_layer(
        decode_input, encode_output, prep_bf16,
        n_head=n_head, d_k=d_k, d_v=d_v, q_block=8)
    out = jax.block_until_ready(out)
    slf_attn = jax.block_until_ready(slf_attn)
    enc_attn = jax.block_until_ready(enc_attn)

    assert out.shape == (B, L_dec, d_model)
    assert slf_attn.shape == (B, n_head, L_dec, L_dec)
    assert enc_attn.shape == (B, n_head, L_dec, L_enc)
    assert jnp.allclose(out, ref_out, atol=1e-1, rtol=1e-1)
    assert jnp.allclose(slf_attn, ref_a1, atol=5e-2, rtol=5e-2)
    assert jnp.allclose(enc_attn, ref_a2, atol=5e-2, rtol=5e-2)

    # --- outputs-only path: attention-prob writeback skipped flash-style ---
    out_only = decoder_layer(decode_input, encode_output, prep_bf16,
                             n_head=n_head, d_k=d_k, d_v=d_v, q_block=8,
                             return_attn=False)
    out_only = jax.block_until_ready(out_only)
    assert out_only.shape == (B, L_dec, d_model)
    assert jnp.allclose(out_only, out, atol=1e-3, rtol=1e-3)

    # --- f32 path (un-tiled q): strict semantic check vs pure-JAX reference ---
    prep_f32 = prepare_decoder_params(params, n_head=n_head, d_k=d_k, d_v=d_v,
                                      compute_dtype=jnp.float32)
    out32, a1_32, a2_32 = decoder_layer(decode_input, encode_output, prep_f32,
                                        n_head=n_head, d_k=d_k, d_v=d_v)
    out32 = jax.block_until_ready(out32)
    assert jnp.allclose(out32, ref_out, atol=1e-4, rtol=1e-4)
    assert jnp.allclose(a1_32, ref_a1, atol=1e-4, rtol=1e-4)
    assert jnp.allclose(a2_32, ref_a2, atol=1e-4, rtol=1e-4)

    print("KERNEL_OK")
</pallas_src>

<mosaic_0001>
module attributes {stable_mosaic.version = 11 : i64} {
  func.func @_decoder_layer_kernel(%arg0: i32, %arg1: i32, %arg2: memref<1x16x32xf32, #tpu.memory_space<vmem>>, %arg3: memref<1x16x32xf32, #tpu.memory_space<vmem>>, %arg4: memref<32x32xbf16, #tpu.memory_space<vmem>>, %arg5: memref<32x64xbf16, #tpu.memory_space<vmem>>, %arg6: memref<32x32xbf16, #tpu.memory_space<vmem>>, %arg7: memref<32x32xbf16, #tpu.memory_space<vmem>>, %arg8: memref<32x64xbf16, #tpu.memory_space<vmem>>, %arg9: memref<32x32xbf16, #tpu.memory_space<vmem>>, %arg10: memref<32x64xbf16, #tpu.memory_space<vmem>>, %arg11: memref<64x32xbf16, #tpu.memory_space<vmem>>, %arg12: memref<1x64xf32, #tpu.memory_space<vmem>>, %arg13: memref<8x32xf32, #tpu.memory_space<vmem>>, %arg14: memref<1x8x32xf32, #tpu.memory_space<vmem>>, %arg15: memref<1x4x8x16xf32, #tpu.memory_space<vmem>>, %arg16: memref<1x4x8x16xf32, #tpu.memory_space<vmem>>) attributes {dimension_semantics = [#tpu.dimension_semantics<parallel>, #tpu.dimension_semantics<parallel>], iteration_bounds = array<i64: 2, 2>, scalar_prefetch = 0 : i64, scratch_operands = 0 : i64, tpu.core_type = #tpu.core_type<tc>, window_params = [{transform_indices = @transform_0, window_bounds = array<i64: 1, 16, 32>}, {transform_indices = @transform_1, window_bounds = array<i64: 1, 16, 32>}, {pipeline_mode = #tpu.pipeline_mode<synchronous>, transform_indices = @transform_2, window_bounds = array<i64: 32, 32>}, {pipeline_mode = #tpu.pipeline_mode<synchronous>, transform_indices = @transform_3, window_bounds = array<i64: 32, 64>}, {pipeline_mode = #tpu.pipeline_mode<synchronous>, transform_indices = @transform_4, window_bounds = array<i64: 32, 32>}, {pipeline_mode = #tpu.pipeline_mode<synchronous>, transform_indices = @transform_5, window_bounds = array<i64: 32, 32>}, {pipeline_mode = #tpu.pipeline_mode<synchronous>, transform_indices = @transform_6, window_bounds = array<i64: 32, 64>}, {pipeline_mode = #tpu.pipeline_mode<synchronous>, transform_indices = @transform_7, window_bounds = array<i64: 32, 32>}, {pipeline_mode = #tpu.pipeline_mode<synchronous>, transform_indices = @transform_8, window_bounds = array<i64: 32, 64>}, {pipeline_mode = #tpu.pipeline_mode<synchronous>, transform_indices = @transform_9, window_bounds = array<i64: 64, 32>}, {pipeline_mode = #tpu.pipeline_mode<synchronous>, transform_indices = @transform_10, window_bounds = array<i64: 1, 64>}, {pipeline_mode = #tpu.pipeline_mode<synchronous>, transform_indices = @transform_11, window_bounds = array<i64: 8, 32>}, {transform_indices = @transform_12, window_bounds = array<i64: 1, 8, 32>}, {transform_indices = @transform_13, window_bounds = array<i64: 1, 4, 8, 16>}, {transform_indices = @transform_14, window_bounds = array<i64: 1, 4, 8, 16>}]} {
    %c8_i32 = arith.constant 8 : i32
    %0 = arith.muli %arg1, %c8_i32 : i32
    %1 = tpu.assume_multiple %0, 8 : i32
    %c0 = arith.constant 0 : index
    %2 = arith.index_cast %1 : i32 to index
    %c0_0 = arith.constant 0 : index
    %3 = vector.load %arg2[%c0, %2, %c0_0] : memref<1x16x32xf32, #tpu.memory_space<vmem>>, vector<1x8x32xf32>
    %4 = vector.shape_cast %3 : vector<1x8x32xf32> to vector<8x32xf32>
    %c0_1 = arith.constant 0 : index
    %c0_2 = arith.constant 0 : index
    %c0_3 = arith.constant 0 : index
    %5 = vector.load %arg2[%c0_1, %c0_2, %c0_3] : memref<1x16x32xf32, #tpu.memory_space<vmem>>, vector<1x16x32xf32>
    %6 = vector.shape_cast %5 : vector<1x16x32xf32> to vector<16x32xf32>
    %c0_4 = arith.constant 0 : index
    %c0_5 = arith.constant 0 : index
    %c0_6 = arith.constant 0 : index
    %7 = vector.load %arg3[%c0_4, %c0_5, %c0_6] : memref<1x16x32xf32, #tpu.memory_space<vmem>>, vector<1x16x32xf32>
    %8 = vector.shape_cast %7 : vector<1x16x32xf32> to vector<16x32xf32>
    %c0_7 = arith.constant 0 : index
    %c0_8 = arith.constant 0 : index
    %9 = vector.load %arg13[%c0_7, %c0_8] : memref<8x32xf32, #tpu.memory_space<vmem>>, vector<8x32xf32>
    %c0_9 = arith.constant 0 : index
    %c0_10 = arith.constant 0 : index
    %10 = vector.load %arg4[%c0_9, %c0_10] : memref<32x32xbf16, #tpu.memory_space<vmem>>, vector<32x32xbf16>
    %c0_11 = arith.constant 0 : index
    %c0_12 = arith.constant 0 : index
    %11 = vector.load %arg5[%c0_11, %c0_12] : memref<32x64xbf16, #tpu.memory_space<vmem>>, vector<32x64xbf16>
    %c0_13 = arith.constant 0 : index
    %c0_14 = arith.constant 0 : index
    %12 = vector.load %arg6[%c0_13, %c0_14] : memref<32x32xbf16, #tpu.memory_space<vmem>>, vector<32x32xbf16>
    %13 = vector.extract_strided_slice %9 {offsets = [0, 0], sizes = [1, 32], strides = [1, 1]} : vector<8x32xf32> to vector<1x32xf32>
    %14 = vector.extract_strided_slice %9 {offsets = [1, 0], sizes = [1, 32], strides = [1, 1]} : vector<8x32xf32> to vector<1x32xf32>
    %15 = arith.truncf %4 : vector<8x32xf32> to vector<8x32xbf16>
    %cst = arith.constant dense<0.000000e+00> : vector<8x32xf32>
    %16 = tpu.matmul %15, %10, %cst {dimension_numbers = #tpu.dot_dimension_numbers<[1], [0], [0], [1], [0, 0, 1, 1], [], []>} : vector<8x32xbf16>, vector<32x32xbf16>, vector<8x32xf32> -> vector<8x32xf32>
    %cst_15 = arith.constant 0.353553385 : f32
    %17 = vector.broadcast %cst_15 : f32 to vector<8x32xf32>
    %18 = arith.mulf %16, %17 : vector<8x32xf32>
    %19 = arith.truncf %6 : vector<16x32xf32> to vector<16x32xbf16>
    %cst_16 = arith.constant dense<0.000000e+00> : vector<16x64xf32>
    %20 = tpu.matmul %19, %11, %cst_16 {dimension_numbers = #tpu.dot_dimension_numbers<[1], [0], [0], [1], [0, 0, 1, 1], [], []>} : vector<16x32xbf16>, vector<32x64xbf16>, vector<16x64xf32> -> vector<16x64xf32>
    %21 = arith.truncf %18 : vector<8x32xf32> to vector<8x32xbf16>
    %22 = vector.extract_strided_slice %20 {offsets = [0, 0], sizes = [16, 32], strides = [1, 1]} : vector<16x64xf32> to vector<16x32xf32>
    %23 = arith.truncf %22 : vector<16x32xf32> to vector<16x32xbf16>
    %24 = vector.extract_strided_slice %20 {offsets = [0, 32], sizes = [16, 32], strides = [1, 1]} : vector<16x64xf32> to vector<16x32xf32>
    %25 = arith.truncf %24 : vector<16x32xf32> to vector<16x32xbf16>
    %26 = vector.extract_strided_slice %21 {offsets = [0, 0], sizes = [8, 8], strides = [1, 1]} : vector<8x32xbf16> to vector<8x8xbf16>
    %27 = vector.extract_strided_slice %23 {offsets = [0, 0], sizes = [16, 8], strides = [1, 1]} : vector<16x32xbf16> to vector<16x8xbf16>
    %28 = vector.extract_strided_slice %25 {offsets = [0, 0], sizes = [16, 8], strides = [1, 1]} : vector<16x32xbf16> to vector<16x8xbf16>
    %cst_17 = arith.constant dense<0.000000e+00> : vector<8x16xf32>
    %29 = tpu.matmul %26, %27, %cst_17 {dimension_numbers = #tpu.dot_dimension_numbers<[1], [1], [0], [0], [0, 0, 1, 0], [], []>} : vector<8x8xbf16>, vector<16x8xbf16>, vector<8x16xf32> -> vector<8x16xf32>
    %cst_18 = arith.constant dense<0xFF800000> : vector<8xf32>
    %30 = vector.multi_reduction <maximumf>, %29, %cst_18 [1] : vector<8x16xf32> to vector<8xf32>
    %31 = vector.shape_cast %30 : vector<8xf32> to vector<8x1xf32>
    %32 = vector.broadcast %31 : vector<8x1xf32> to vector<8x16xf32>
    %33 = arith.subf %29, %32 : vector<8x16xf32>
    %34 = math.exp %33 : vector<8x16xf32>
    %cst_19 = arith.constant dense<0.000000e+00> : vector<8xf32>
    %35 = vector.multi_reduction <add>, %34, %cst_19 [1] : vector<8x16xf32> to vector<8xf32>
    %36 = vector.shape_cast %35 : vector<8xf32> to vector<8x1xf32>
    %37 = tpu.reciprocal %36 {approx = true} : vector<8x1xf32> -> vector<8x1xf32>
    %38 = vector.broadcast %37 : vector<8x1xf32> to vector<8x16xf32>
    %39 = arith.mulf %34, %38 : vector<8x16xf32>
    %c0_20 = arith.constant 0 : index
    %c0_21 = arith.constant 0 : index
    %c0_22 = arith.constant 0 : index
    %c0_23 = arith.constant 0 : index
    %40 = vector.load %arg15[%c0_20, %c0_21, %c0_22, %c0_23] : memref<1x4x8x16xf32, #tpu.memory_space<vmem>>, vector<1x1x8x16xf32>
    %41 = vector.shape_cast %40 : vector<1x1x8x16xf32> to vector<8x16xf32>
    %42 = vector.shape_cast %39 : vector<8x16xf32> to vector<1x1x8x16xf32>
    tpu.vector_store %arg15[%c0_20, %c0_21, %c0_22, %c0_23], %42 {strides = array<i32>} : memref<1x4x8x16xf32, #tpu.memory_space<vmem>>, vector<1x1x8x16xf32>,
    %43 = arith.truncf %39 : vector<8x16xf32> to vector<8x16xbf16>
    %cst_24 = arith.constant dense<0.000000e+00> : vector<8x8xf32>
    %44 = tpu.matmul %43, %28, %cst_24 {dimension_numbers = #tpu.dot_dimension_numbers<[1], [0], [0], [1], [0, 0, 1, 1], [], []>} : vector<8x16xbf16>, vector<16x8xbf16>, vector<8x8xf32> -> vector<8x8xf32>
    %45 = vector.extract_strided_slice %21 {offsets = [0, 8], sizes = [8, 8], strides = [1, 1]} : vector<8x32xbf16> to vector<8x8xbf16>
    %46 = vector.extract_strided_slice %23 {offsets = [0, 8], sizes = [16, 8], strides = [1, 1]} : vector<16x32xbf16> to vector<16x8xbf16>
    %47 = vector.extract_strided_slice %25 {offsets = [0, 8], sizes = [16, 8], strides = [1, 1]} : vector<16x32xbf16> to vector<16x8xbf16>
    %cst_25 = arith.constant dense<0.000000e+00> : vector<8x16xf32>
    %48 = tpu.matmul %45, %46, %cst_25 {dimension_numbers = #tpu.dot_dimension_numbers<[1], [1], [0], [0], [0, 0, 1, 0], [], []>} : vector<8x8xbf16>, vector<16x8xbf16>, vector<8x16xf32> -> vector<8x16xf32>
    %cst_26 = arith.constant dense<0xFF800000> : vector<8xf32>
    %49 = vector.multi_reduction <maximumf>, %48, %cst_26 [1] : vector<8x16xf32> to vector<8xf32>
    %50 = vector.shape_cast %49 : vector<8xf32> to vector<8x1xf32>
    %51 = vector.broadcast %50 : vector<8x1xf32> to vector<8x16xf32>
    %52 = arith.subf %48, %51 : vector<8x16xf32>
    %53 = math.exp %52 : vector<8x16xf32>
    %cst_27 = arith.constant dense<0.000000e+00> : vector<8xf32>
    %54 = vector.multi_reduction <add>, %53, %cst_27 [1] : vector<8x16xf32> to vector<8xf32>
    %55 = vector.shape_cast %54 : vector<8xf32> to vector<8x1xf32>
    %56 = tpu.reciprocal %55 {approx = true} : vector<8x1xf32> -> vector<8x1xf32>
    %57 = vector.broadcast %56 : vector<8x1xf32> to vector<8x16xf32>
    %58 = arith.mulf %53, %57 : vector<8x16xf32>
    %c0_28 = arith.constant 0 : index
    %c1 = arith.constant 1 : index
    %c0_29 = arith.constant 0 : index
    %c0_30 = arith.constant 0 : index
    %59 = vector.load %arg15[%c0_28, %c1, %c0_29, %c0_30] : memref<1x4x8x16xf32, #tpu.memory_space<vmem>>, vector<1x1x8x16xf32>
    %60 = vector.shape_cast %59 : vector<1x1x8x16xf32> to vector<8x16xf32>
    %61 = vector.shape_cast %58 : vector<8x16xf32> to vector<1x1x8x16xf32>
    tpu.vector_store %arg15[%c0_28, %c1, %c0_29, %c0_30], %61 {strides = array<i32>} : memref<1x4x8x16xf32, #tpu.memory_space<vmem>>, vector<1x1x8x16xf32>,
    %62 = arith.truncf %58 : vector<8x16xf32> to vector<8x16xbf16>
    %cst_31 = arith.constant dense<0.000000e+00> : vector<8x8xf32>
    %63 = tpu.matmul %62, %47, %cst_31 {dimension_numbers = #tpu.dot_dimension_numbers<[1], [0], [0], [1], [0, 0, 1, 1], [], []>} : vector<8x16xbf16>, vector<16x8xbf16>, vector<8x8xf32> -> vector<8x8xf32>
    %64 = vector.extract_strided_slice %21 {offsets = [0, 16], sizes = [8, 8], strides = [1, 1]} : vector<8x32xbf16> to vector<8x8xbf16>
    %65 = vector.extract_strided_slice %23 {offsets = [0, 16], sizes = [16, 8], strides = [1, 1]} : vector<16x32xbf16> to vector<16x8xbf16>
    %66 = vector.extract_strided_slice %25 {offsets = [0, 16], sizes = [16, 8], strides = [1, 1]} : vector<16x32xbf16> to vector<16x8xbf16>
    %cst_32 = arith.constant dense<0.000000e+00> : vector<8x16xf32>
    %67 = tpu.matmul %64, %65, %cst_32 {dimension_numbers = #tpu.dot_dimension_numbers<[1], [1], [0], [0], [0, 0, 1, 0], [], []>} : vector<8x8xbf16>, vector<16x8xbf16>, vector<8x16xf32> -> vector<8x16xf32>
    %cst_33 = arith.constant dense<0xFF800000> : vector<8xf32>
    %68 = vector.multi_reduction <maximumf>, %67, %cst_33 [1] : vector<8x16xf32> to vector<8xf32>
    %69 = vector.shape_cast %68 : vector<8xf32> to vector<8x1xf32>
    %70 = vector.broadcast %69 : vector<8x1xf32> to vector<8x16xf32>
    %71 = arith.subf %67, %70 : vector<8x16xf32>
    %72 = math.exp %71 : vector<8x16xf32>
    %cst_34 = arith.constant dense<0.000000e+00> : vector<8xf32>
    %73 = vector.multi_reduction <add>, %72, %cst_34 [1] : vector<8x16xf32> to vector<8xf32>
    %74 = vector.shape_cast %73 : vector<8xf32> to vector<8x1xf32>
    %75 = tpu.reciprocal %74 {approx = true} : vector<8x1xf32> -> vector<8x1xf32>
    %76 = vector.broadcast %75 : vector<8x1xf32> to vector<8x16xf32>
    %77 = arith.mulf %72, %76 : vector<8x16xf32>
    %c0_35 = arith.constant 0 : index
    %c2 = arith.constant 2 : index
    %c0_36 = arith.constant 0 : index
    %c0_37 = arith.constant 0 : index
    %78 = vector.load %arg15[%c0_35, %c2, %c0_36, %c0_37] : memref<1x4x8x16xf32, #tpu.memory_space<vmem>>, vector<1x1x8x16xf32>
    %79 = vector.shape_cast %78 : vector<1x1x8x16xf32> to vector<8x16xf32>
    %80 = vector.shape_cast %77 : vector<8x16xf32> to vector<1x1x8x16xf32>
    tpu.vector_store %arg15[%c0_35, %c2, %c0_36, %c0_37], %80 {strides = array<i32>} : memref<1x4x8x16xf32, #tpu.memory_space<vmem>>, vector<1x1x8x16xf32>,
    %81 = arith.truncf %77 : vector<8x16xf32> to vector<8x16xbf16>
    %cst_38 = arith.constant dense<0.000000e+00> : vector<8x8xf32>
    %82 = tpu.matmul %81, %66, %cst_38 {dimension_numbers = #tpu.dot_dimension_numbers<[1], [0], [0], [1], [0, 0, 1, 1], [], []>} : vector<8x16xbf16>, vector<16x8xbf16>, vector<8x8xf32> -> vector<8x8xf32>
    %83 = vector.extract_strided_slice %21 {offsets = [0, 24], sizes = [8, 8], strides = [1, 1]} : vector<8x32xbf16> to vector<8x8xbf16>
    %84 = vector.extract_strided_slice %23 {offsets = [0, 24], sizes = [16, 8], strides = [1, 1]} : vector<16x32xbf16> to vector<16x8xbf16>
    %85 = vector.extract_strided_slice %25 {offsets = [0, 24], sizes = [16, 8], strides = [1, 1]} : vector<16x32xbf16> to vector<16x8xbf16>
    %cst_39 = arith.constant dense<0.000000e+00> : vector<8x16xf32>
    %86 = tpu.matmul %83, %84, %cst_39 {dimension_numbers = #tpu.dot_dimension_numbers<[1], [1], [0], [0], [0, 0, 1, 0], [], []>} : vector<8x8xbf16>, vector<16x8xbf16>, vector<8x16xf32> -> vector<8x16xf32>
    %cst_40 = arith.constant dense<0xFF800000> : vector<8xf32>
    %87 = vector.multi_reduction <maximumf>, %86, %cst_40 [1] : vector<8x16xf32> to vector<8xf32>
    %88 = vector.shape_cast %87 : vector<8xf32> to vector<8x1xf32>
    %89 = vector.broadcast %88 : vector<8x1xf32> to vector<8x16xf32>
    %90 = arith.subf %86, %89 : vector<8x16xf32>
    %91 = math.exp %90 : vector<8x16xf32>
    %cst_41 = arith.constant dense<0.000000e+00> : vector<8xf32>
    %92 = vector.multi_reduction <add>, %91, %cst_41 [1] : vector<8x16xf32> to vector<8xf32>
    %93 = vector.shape_cast %92 : vector<8xf32> to vector<8x1xf32>
    %94 = tpu.reciprocal %93 {approx = true} : vector<8x1xf32> -> vector<8x1xf32>
    %95 = vector.broadcast %94 : vector<8x1xf32> to vector<8x16xf32>
    %96 = arith.mulf %91, %95 : vector<8x16xf32>
    %c0_42 = arith.constant 0 : index
    %c3 = arith.constant 3 : index
    %c0_43 = arith.constant 0 : index
    %c0_44 = arith.constant 0 : index
    %97 = vector.load %arg15[%c0_42, %c3, %c0_43, %c0_44] : memref<1x4x8x16xf32, #tpu.memory_space<vmem>>, vector<1x1x8x16xf32>
    %98 = vector.shape_cast %97 : vector<1x1x8x16xf32> to vector<8x16xf32>
    %99 = vector.shape_cast %96 : vector<8x16xf32> to vector<1x1x8x16xf32>
    tpu.vector_store %arg15[%c0_42, %c3, %c0_43, %c0_44], %99 {strides = array<i32>} : memref<1x4x8x16xf32, #tpu.memory_space<vmem>>, vector<1x1x8x16xf32>,
    %100 = arith.truncf %96 : vector<8x16xf32> to vector<8x16xbf16>
    %cst_45 = arith.constant dense<0.000000e+00> : vector<8x8xf32>
    %101 = tpu.matmul %100, %85, %cst_45 {dimension_numbers = #tpu.dot_dimension_numbers<[1], [0], [0], [1], [0, 0, 1, 1], [], []>} : vector<8x16xbf16>, vector<16x8xbf16>, vector<8x8xf32> -> vector<8x8xf32>
    %102 = tpu.concatenate %44, %63, %82, %101 in 1 : vector<8x8xf32>, vector<8x8xf32>, vector<8x8xf32>, vector<8x8xf32> -> vector<8x32xf32>
    %103 = arith.truncf %102 : vector<8x32xf32> to vector<8x32xbf16>
    %cst_46 = arith.constant dense<0.000000e+00> : vector<8x32xf32>
    %104 = tpu.matmul %103, %12, %cst_46 {dimension_numbers = #tpu.dot_dimension_numbers<[1], [0], [0], [1], [0, 0, 1, 1], [], []>} : vector<8x32xbf16>, vector<32x32xbf16>, vector<8x32xf32> -> vector<8x32xf32>
    %105 = arith.addf %104, %4 : vector<8x32xf32>
    %cst_47 = arith.constant dense<0.000000e+00> : vector<8xf32>
    %106 = vector.multi_reduction <add>, %105, %cst_47 [1] : vector<8x32xf32> to vector<8xf32>
    %107 = vector.shape_cast %106 : vector<8xf32> to vector<8x1xf32>
    %cst_48 = arith.constant 3.200000e+01 : f32
    %108 = vector.broadcast %cst_48 : f32 to vector<8x1xf32>
    %109 = arith.divf %107, %108 : vector<8x1xf32>
    %110 = vector.broadcast %109 : vector<8x1xf32> to vector<8x32xf32>
    %111 = arith.subf %105, %110 : vector<8x32xf32>
    %112 = arith.mulf %111, %111 : vector<8x32xf32>
    %cst_49 = arith.constant dense<0.000000e+00> : vector<8xf32>
    %113 = vector.multi_reduction <add>, %112, %cst_49 [1] : vector<8x32xf32> to vector<8xf32>
    %114 = vector.shape_cast %113 : vector<8xf32> to vector<8x1xf32>
    %cst_50 = arith.constant 3.200000e+01 : f32
    %115 = vector.broadcast %cst_50 : f32 to vector<8x1xf32>
    %116 = arith.divf %114, %115 : vector<8x1xf32>
    %117 = vector.broadcast %109 : vector<8x1xf32> to vector<8x32xf32>
    %118 = arith.subf %105, %117 : vector<8x32xf32>
    %cst_51 = arith.constant 9.99999997E-7 : f32
    %119 = vector.broadcast %cst_51 : f32 to vector<8x1xf32>
    %120 = arith.addf %116, %119 : vector<8x1xf32>
    %121 = math.rsqrt %120 : vector<8x1xf32>
    %122 = vector.broadcast %121 : vector<8x1xf32> to vector<8x32xf32>
    %123 = arith.mulf %118, %122 : vector<8x32xf32>
    %124 = vector.broadcast %13 : vector<1x32xf32> to vector<8x32xf32>
    %125 = arith.mulf %123, %124 : vector<8x32xf32>
    %126 = vector.broadcast %14 : vector<1x32xf32> to vector<8x32xf32>
    %127 = arith.addf %125, %126 : vector<8x32xf32>
    %c0_52 = arith.constant 0 : index
    %c0_53 = arith.constant 0 : index
    %128 = vector.load %arg7[%c0_52, %c0_53] : memref<32x32xbf16, #tpu.memory_space<vmem>>, vector<32x32xbf16>
    %c0_54 = arith.constant 0 : index
    %c0_55 = arith.constant 0 : index
    %129 = vector.load %arg8[%c0_54, %c0_55] : memref<32x64xbf16, #tpu.memory_space<vmem>>, vector<32x64xbf16>
    %c0_56 = arith.constant 0 : index
    %c0_57 = arith.constant 0 : index
    %130 = vector.load %arg9[%c0_56, %c0_57] : memref<32x32xbf16, #tpu.memory_space<vmem>>, vector<32x32xbf16>
    %131 = vector.extract_strided_slice %9 {offsets = [2, 0], sizes = [1, 32], strides = [1, 1]} : vector<8x32xf32> to vector<1x32xf32>
    %132 = vector.extract_strided_slice %9 {offsets = [3, 0], sizes = [1, 32], strides = [1, 1]} : vector<8x32xf32> to vector<1x32xf32>
    %133 = arith.truncf %127 : vector<8x32xf32> to vector<8x32xbf16>
    %cst_58 = arith.constant dense<0.000000e+00> : vector<8x32xf32>
    %134 = tpu.matmul %133, %128, %cst_58 {dimension_numbers = #tpu.dot_dimension_numbers<[1], [0], [0], [1], [0, 0, 1, 1], [], []>} : vector<8x32xbf16>, vector<32x32xbf16>, vector<8x32xf32> -> vector<8x32xf32>
    %cst_59 = arith.constant 0.353553385 : f32
    %135 = vector.broadcast %cst_59 : f32 to vector<8x32xf32>
    %136 = arith.mulf %134, %135 : vector<8x32xf32>
    %137 = arith.truncf %8 : vector<16x32xf32> to vector<16x32xbf16>
    %cst_60 = arith.constant dense<0.000000e+00> : vector<16x64xf32>
    %138 = tpu.matmul %137, %129, %cst_60 {dimension_numbers = #tpu.dot_dimension_numbers<[1], [0], [0], [1], [0, 0, 1, 1], [], []>} : vector<16x32xbf16>, vector<32x64xbf16>, vector<16x64xf32> -> vector<16x64xf32>
    %139 = arith.truncf %136 : vector<8x32xf32> to vector<8x32xbf16>
    %140 = vector.extract_strided_slice %138 {offsets = [0, 0], sizes = [16, 32], strides = [1, 1]} : vector<16x64xf32> to vector<16x32xf32>
    %141 = arith.truncf %140 : vector<16x32xf32> to vector<16x32xbf16>
    %142 = vector.extract_strided_slice %138 {offsets = [0, 32], sizes = [16, 32], strides = [1, 1]} : vector<16x64xf32> to vector<16x32xf32>
    %143 = arith.truncf %142 : vector<16x32xf32> to vector<16x32xbf16>
    %144 = vector.extract_strided_slice %139 {offsets = [0, 0], sizes = [8, 8], strides = [1, 1]} : vector<8x32xbf16> to vector<8x8xbf16>
    %145 = vector.extract_strided_slice %141 {offsets = [0, 0], sizes = [16, 8], strides = [1, 1]} : vector<16x32xbf16> to vector<16x8xbf16>
    %146 = vector.extract_strided_slice %143 {offsets = [0, 0], sizes = [16, 8], strides = [1, 1]} : vector<16x32xbf16> to vector<16x8xbf16>
    %cst_61 = arith.constant dense<0.000000e+00> : vector<8x16xf32>
    %147 = tpu.matmul %144, %145, %cst_61 {dimension_numbers = #tpu.dot_dimension_numbers<[1], [1], [0], [0], [0, 0, 1, 0], [], []>} : vector<8x8xbf16>, vector<16x8xbf16>, vector<8x16xf32> -> vector<8x16xf32>
    %cst_62 = arith.constant dense<0xFF800000> : vector<8xf32>
    %148 = vector.multi_reduction <maximumf>, %147, %cst_62 [1] : vector<8x16xf32> to vector<8xf32>
    %149 = vector.shape_cast %148 : vector<8xf32> to vector<8x1xf32>
    %150 = vector.broadcast %149 : vector<8x1xf32> to vector<8x16xf32>
    %151 = arith.subf %147, %150 : vector<8x16xf32>
    %152 = math.exp %151 : vector<8x16xf32>
    %cst_63 = arith.constant dense<0.000000e+00> : vector<8xf32>
    %153 = vector.multi_reduction <add>, %152, %cst_63 [1] : vector<8x16xf32> to vector<8xf32>
    %154 = vector.shape_cast %153 : vector<8xf32> to vector<8x1xf32>
    %155 = tpu.reciprocal %154 {approx = true} : vector<8x1xf32> -> vector<8x1xf32>
    %156 = vector.broadcast %155 : vector<8x1xf32> to vector<8x16xf32>
    %157 = arith.mulf %152, %156 : vector<8x16xf32>
    %c0_64 = arith.constant 0 : index
    %c0_65 = arith.constant 0 : index
    %c0_66 = arith.constant 0 : index
    %c0_67 = arith.constant 0 : index
    %158 = vector.load %arg16[%c0_64, %c0_65, %c0_66, %c0_67] : memref<1x4x8x16xf32, #tpu.memory_space<vmem>>, vector<1x1x8x16xf32>
    %159 = vector.shape_cast %158 : vector<1x1x8x16xf32> to vector<8x16xf32>
    %160 = vector.shape_cast %157 : vector<8x16xf32> to vector<1x1x8x16xf32>
    tpu.vector_store %arg16[%c0_64, %c0_65, %c0_66, %c0_67], %160 {strides = array<i32>} : memref<1x4x8x16xf32, #tpu.memory_space<vmem>>, vector<1x1x8x16xf32>,
    %161 = arith.truncf %157 : vector<8x16xf32> to vector<8x16xbf16>
    %cst_68 = arith.constant dense<0.000000e+00> : vector<8x8xf32>
    %162 = tpu.matmul %161, %146, %cst_68 {dimension_numbers = #tpu.dot_dimension_numbers<[1], [0], [0], [1], [0, 0, 1, 1], [], []>} : vector<8x16xbf16>, vector<16x8xbf16>, vector<8x8xf32> -> vector<8x8xf32>
    %163 = vector.extract_strided_slice %139 {offsets = [0, 8], sizes = [8, 8], strides = [1, 1]} : vector<8x32xbf16> to vector<8x8xbf16>
    %164 = vector.extract_strided_slice %141 {offsets = [0, 8], sizes = [16, 8], strides = [1, 1]} : vector<16x32xbf16> to vector<16x8xbf16>
    %165 = vector.extract_strided_slice %143 {offsets = [0, 8], sizes = [16, 8], strides = [1, 1]} : vector<16x32xbf16> to vector<16x8xbf16>
    %cst_69 = arith.constant dense<0.000000e+00> : vector<8x16xf32>
    %166 = tpu.matmul %163, %164, %cst_69 {dimension_numbers = #tpu.dot_dimension_numbers<[1], [1], [0], [0], [0, 0, 1, 0], [], []>} : vector<8x8xbf16>, vector<16x8xbf16>, vector<8x16xf32> -> vector<8x16xf32>
    %cst_70 = arith.constant dense<0xFF800000> : vector<8xf32>
    %167 = vector.multi_reduction <maximumf>, %166, %cst_70 [1] : vector<8x16xf32> to vector<8xf32>
    %168 = vector.shape_cast %167 : vector<8xf32> to vector<8x1xf32>
    %169 = vector.broadcast %168 : vector<8x1xf32> to vector<8x16xf32>
    %170 = arith.subf %166, %169 : vector<8x16xf32>
    %171 = math.exp %170 : vector<8x16xf32>
    %cst_71 = arith.constant dense<0.000000e+00> : vector<8xf32>
    %172 = vector.multi_reduction <add>, %171, %cst_71 [1] : vector<8x16xf32> to vector<8xf32>
    %173 = vector.shape_cast %172 : vector<8xf32> to vector<8x1xf32>
    %174 = tpu.reciprocal %173 {approx = true} : vector<8x1xf32> -> vector<8x1xf32>
    %175 = vector.broadcast %174 : vector<8x1xf32> to vector<8x16xf32>
    %176 = arith.mulf %171, %175 : vector<8x16xf32>
    %c0_72 = arith.constant 0 : index
    %c1_73 = arith.constant 1 : index
    %c0_74 = arith.constant 0 : index
    %c0_75 = arith.constant 0 : index
    %177 = vector.load %arg16[%c0_72, %c1_73, %c0_74, %c0_75] : memref<1x4x8x16xf32, #tpu.memory_space<vmem>>, vector<1x1x8x16xf32>
    %178 = vector.shape_cast %177 : vector<1x1x8x16xf32> to vector<8x16xf32>
    %179 = vector.shape_cast %176 : vector<8x16xf32> to vector<1x1x8x16xf32>
    tpu.vector_store %arg16[%c0_72, %c1_73, %c0_74, %c0_75], %179 {strides = array<i32>} : memref<1x4x8x16xf32, #tpu.memory_space<vmem>>, vector<1x1x8x16xf32>,
    %180 = arith.truncf %176 : vector<8x16xf32> to vector<8x16xbf16>
    %cst_76 = arith.constant dense<0.000000e+00> : vector<8x8xf32>
    %181 = tpu.matmul %180, %165, %cst_76 {dimension_numbers = #tpu.dot_dimension_numbers<[1], [0], [0], [1], [0, 0, 1, 1], [], []>} : vector<8x16xbf16>, vector<16x8xbf16>, vector<8x8xf32> -> vector<8x8xf32>
    %182 = vector.extract_strided_slice %139 {offsets = [0, 16], sizes = [8, 8], strides = [1, 1]} : vector<8x32xbf16> to vector<8x8xbf16>
    %183 = vector.extract_strided_slice %141 {offsets = [0, 16], sizes = [16, 8], strides = [1, 1]} : vector<16x32xbf16> to vector<16x8xbf16>
    %184 = vector.extract_strided_slice %143 {offsets = [0, 16], sizes = [16, 8], strides = [1, 1]} : vector<16x32xbf16> to vector<16x8xbf16>
    %cst_77 = arith.constant dense<0.000000e+00> : vector<8x16xf32>
    %185 = tpu.matmul %182, %183, %cst_77 {dimension_numbers = #tpu.dot_dimension_numbers<[1], [1], [0], [0], [0, 0, 1, 0], [], []>} : vector<8x8xbf16>, vector<16x8xbf16>, vector<8x16xf32> -> vector<8x16xf32>
    %cst_78 = arith.constant dense<0xFF800000> : vector<8xf32>
    %186 = vector.multi_reduction <maximumf>, %185, %cst_78 [1] : vector<8x16xf32> to vector<8xf32>
    %187 = vector.shape_cast %186 : vector<8xf32> to vector<8x1xf32>
    %188 = vector.broadcast %187 : vector<8x1xf32> to vector<8x16xf32>
    %189 = arith.subf %185, %188 : vector<8x16xf32>
    %190 = math.exp %189 : vector<8x16xf32>
    %cst_79 = arith.constant dense<0.000000e+00> : vector<8xf32>
    %191 = vector.multi_reduction <add>, %190, %cst_79 [1] : vector<8x16xf32> to vector<8xf32>
    %192 = vector.shape_cast %191 : vector<8xf32> to vector<8x1xf32>
    %193 = tpu.reciprocal %192 {approx = true} : vector<8x1xf32> -> vector<8x1xf32>
    %194 = vector.broadcast %193 : vector<8x1xf32> to vector<8x16xf32>
    %195 = arith.mulf %190, %194 : vector<8x16xf32>
    %c0_80 = arith.constant 0 : index
    %c2_81 = arith.constant 2 : index
    %c0_82 = arith.constant 0 : index
    %c0_83 = arith.constant 0 : index
    %196 = vector.load %arg16[%c0_80, %c2_81, %c0_82, %c0_83] : memref<1x4x8x16xf32, #tpu.memory_space<vmem>>, vector<1x1x8x16xf32>
    %197 = vector.shape_cast %196 : vector<1x1x8x16xf32> to vector<8x16xf32>
    %198 = vector.shape_cast %195 : vector<8x16xf32> to vector<1x1x8x16xf32>
    tpu.vector_store %arg16[%c0_80, %c2_81, %c0_82, %c0_83], %198 {strides = array<i32>} : memref<1x4x8x16xf32, #tpu.memory_space<vmem>>, vector<1x1x8x16xf32>,
    %199 = arith.truncf %195 : vector<8x16xf32> to vector<8x16xbf16>
    %cst_84 = arith.constant dense<0.000000e+00> : vector<8x8xf32>
    %200 = tpu.matmul %199, %184, %cst_84 {dimension_numbers = #tpu.dot_dimension_numbers<[1], [0], [0], [1], [0, 0, 1, 1], [], []>} : vector<8x16xbf16>, vector<16x8xbf16>, vector<8x8xf32> -> vector<8x8xf32>
    %201 = vector.extract_strided_slice %139 {offsets = [0, 24], sizes = [8, 8], strides = [1, 1]} : vector<8x32xbf16> to vector<8x8xbf16>
    %202 = vector.extract_strided_slice %141 {offsets = [0, 24], sizes = [16, 8], strides = [1, 1]} : vector<16x32xbf16> to vector<16x8xbf16>
    %203 = vector.extract_strided_slice %143 {offsets = [0, 24], sizes = [16, 8], strides = [1, 1]} : vector<16x32xbf16> to vector<16x8xbf16>
    %cst_85 = arith.constant dense<0.000000e+00> : vector<8x16xf32>
    %204 = tpu.matmul %201, %202, %cst_85 {dimension_numbers = #tpu.dot_dimension_numbers<[1], [1], [0], [0], [0, 0, 1, 0], [], []>} : vector<8x8xbf16>, vector<16x8xbf16>, vector<8x16xf32> -> vector<8x16xf32>
    %cst_86 = arith.constant dense<0xFF800000> : vector<8xf32>
    %205 = vector.multi_reduction <maximumf>, %204, %cst_86 [1] : vector<8x16xf32> to vector<8xf32>
    %206 = vector.shape_cast %205 : vector<8xf32> to vector<8x1xf32>
    %207 = vector.broadcast %206 : vector<8x1xf32> to vector<8x16xf32>
    %208 = arith.subf %204, %207 : vector<8x16xf32>
    %209 = math.exp %208 : vector<8x16xf32>
    %cst_87 = arith.constant dense<0.000000e+00> : vector<8xf32>
    %210 = vector.multi_reduction <add>, %209, %cst_87 [1] : vector<8x16xf32> to vector<8xf32>
    %211 = vector.shape_cast %210 : vector<8xf32> to vector<8x1xf32>
    %212 = tpu.reciprocal %211 {approx = true} : vector<8x1xf32> -> vector<8x1xf32>
    %213 = vector.broadcast %212 : vector<8x1xf32> to vector<8x16xf32>
    %214 = arith.mulf %209, %213 : vector<8x16xf32>
    %c0_88 = arith.constant 0 : index
    %c3_89 = arith.constant 3 : index
    %c0_90 = arith.constant 0 : index
    %c0_91 = arith.constant 0 : index
    %215 = vector.load %arg16[%c0_88, %c3_89, %c0_90, %c0_91] : memref<1x4x8x16xf32, #tpu.memory_space<vmem>>, vector<1x1x8x16xf32>
    %216 = vector.shape_cast %215 : vector<1x1x8x16xf32> to vector<8x16xf32>
    %217 = vector.shape_cast %214 : vector<8x16xf32> to vector<1x1x8x16xf32>
    tpu.vector_store %arg16[%c0_88, %c3_89, %c0_90, %c0_91], %217 {strides = array<i32>} : memref<1x4x8x16xf32, #tpu.memory_space<vmem>>, vector<1x1x8x16xf32>,
    %218 = arith.truncf %214 : vector<8x16xf32> to vector<8x16xbf16>
    %cst_92 = arith.constant dense<0.000000e+00> : vector<8x8xf32>
    %219 = tpu.matmul %218, %203, %cst_92 {dimension_numbers = #tpu.dot_dimension_numbers<[1], [0], [0], [1], [0, 0, 1, 1], [], []>} : vector<8x16xbf16>, vector<16x8xbf16>, vector<8x8xf32> -> vector<8x8xf32>
    %220 = tpu.concatenate %162, %181, %200, %219 in 1 : vector<8x8xf32>, vector<8x8xf32>, vector<8x8xf32>, vector<8x8xf32> -> vector<8x32xf32>
    %221 = arith.truncf %220 : vector<8x32xf32> to vector<8x32xbf16>
    %cst_93 = arith.constant dense<0.000000e+00> : vector<8x32xf32>
    %222 = tpu.matmul %221, %130, %cst_93 {dimension_numbers = #tpu.dot_dimension_numbers<[1], [0], [0], [1], [0, 0, 1, 1], [], []>} : vector<8x32xbf16>, vector<32x32xbf16>, vector<8x32xf32> -> vector<8x32xf32>
    %223 = arith.addf %222, %127 : vector<8x32xf32>
    %cst_94 = arith.constant dense<0.000000e+00> : vector<8xf32>
    %224 = vector.multi_reduction <add>, %223, %cst_94 [1] : vector<8x32xf32> to vector<8xf32>
    %225 = vector.shape_cast %224 : vector<8xf32> to vector<8x1xf32>
    %cst_95 = arith.constant 3.200000e+01 : f32
    %226 = vector.broadcast %cst_95 : f32 to vector<8x1xf32>
    %227 = arith.divf %225, %226 : vector<8x1xf32>
    %228 = vector.broadcast %227 : vector<8x1xf32> to vector<8x32xf32>
    %229 = arith.subf %223, %228 : vector<8x32xf32>
    %230 = arith.mulf %229, %229 : vector<8x32xf32>
    %cst_96 = arith.constant dense<0.000000e+00> : vector<8xf32>
    %231 = vector.multi_reduction <add>, %230, %cst_96 [1] : vector<8x32xf32> to vector<8xf32>
    %232 = vector.shape_cast %231 : vector<8xf32> to vector<8x1xf32>
    %cst_97 = arith.constant 3.200000e+01 : f32
    %233 = vector.broadcast %cst_97 : f32 to vector<8x1xf32>
    %234 = arith.divf %232, %233 : vector<8x1xf32>
    %235 = vector.broadcast %227 : vector<8x1xf32> to vector<8x32xf32>
    %236 = arith.subf %223, %235 : vector<8x32xf32>
    %cst_98 = arith.constant 9.99999997E-7 : f32
    %237 = vector.broadcast %cst_98 : f32 to vector<8x1xf32>
    %238 = arith.addf %234, %237 : vector<8x1xf32>
    %239 = math.rsqrt %238 : vector<8x1xf32>
    %240 = vector.broadcast %239 : vector<8x1xf32> to vector<8x32xf32>
    %241 = arith.mulf %236, %240 : vector<8x32xf32>
    %242 = vector.broadcast %131 : vector<1x32xf32> to vector<8x32xf32>
    %243 = arith.mulf %241, %242 : vector<8x32xf32>
    %244 = vector.broadcast %132 : vector<1x32xf32> to vector<8x32xf32>
    %245 = arith.addf %243, %244 : vector<8x32xf32>
    %246 = arith.truncf %245 : vector<8x32xf32> to vector<8x32xbf16>
    %c0_99 = arith.constant 0 : index
    %c0_100 = arith.constant 0 : index
    %247 = vector.load %arg10[%c0_99, %c0_100] : memref<32x64xbf16, #tpu.memory_space<vmem>>, vector<32x64xbf16>
    %cst_101 = arith.constant dense<0.000000e+00> : vector<8x64xf32>
    %248 = tpu.matmul %246, %247, %cst_101 {dimension_numbers = #tpu.dot_dimension_numbers<[1], [0], [0], [1], [0, 0, 1, 1], [], []>} : vector<8x32xbf16>, vector<32x64xbf16>, vector<8x64xf32> -> vector<8x64xf32>
    %c0_102 = arith.constant 0 : index
    %c0_103 = arith.constant 0 : index
    %249 = vector.load %arg12[%c0_102, %c0_103] : memref<1x64xf32, #tpu.memory_space<vmem>>, vector<1x64xf32>
    %250 = vector.broadcast %249 : vector<1x64xf32> to vector<8x64xf32>
    %251 = arith.addf %248, %250 : vector<8x64xf32>
    %cst_104 = arith.constant 0.000000e+00 : f32
    %252 = vector.broadcast %cst_104 : f32 to vector<8x64xf32>
    %253 = arith.maximumf %251, %252 : vector<8x64xf32>
    %254 = arith.truncf %253 : vector<8x64xf32> to vector<8x64xbf16>
    %c0_105 = arith.constant 0 : index
    %c0_106 = arith.constant 0 : index
    %255 = vector.load %arg11[%c0_105, %c0_106] : memref<64x32xbf16, #tpu.memory_space<vmem>>, vector<64x32xbf16>
    %cst_107 = arith.constant dense<0.000000e+00> : vector<8x32xf32>
    %256 = tpu.matmul %254, %255, %cst_107 {dimension_numbers = #tpu.dot_dimension_numbers<[1], [0], [0], [1], [0, 0, 1, 1], [], []>} : vector<8x64xbf16>, vector<64x32xbf16>, vector<8x32xf32> -> vector<8x32xf32>
    %257 = vector.extract_strided_slice %9 {offsets = [4, 0], sizes = [1, 32], strides = [1, 1]} : vector<8x32xf32> to vector<1x32xf32>
    %258 = vector.broadcast %257 : vector<1x32xf32> to vector<8x32xf32>
    %259 = arith.addf %256, %258 : vector<8x32xf32>
    %260 = arith.addf %259, %245 : vector<8x32xf32>
    %261 = vector.extract_strided_slice %9 {offsets = [5, 0], sizes = [1, 32], strides = [1, 1]} : vector<8x32xf32> to vector<1x32xf32>
    %262 = vector.extract_strided_slice %9 {offsets = [6, 0], sizes = [1, 32], strides = [1, 1]} : vector<8x32xf32> to vector<1x32xf32>
    %cst_108 = arith.constant dense<0.000000e+00> : vector<8xf32>
    %263 = vector.multi_reduction <add>, %260, %cst_108 [1] : vector<8x32xf32> to vector<8xf32>
    %264 = vector.shape_cast %263 : vector<8xf32> to vector<8x1xf32>
    %cst_109 = arith.constant 3.200000e+01 : f32
    %265 = vector.broadcast %cst_109 : f32 to vector<8x1xf32>
    %266 = arith.divf %264, %265 : vector<8x1xf32>
    %267 = vector.broadcast %266 : vector<8x1xf32> to vector<8x32xf32>
    %268 = arith.subf %260, %267 : vector<8x32xf32>
    %269 = arith.mulf %268, %268 : vector<8x32xf32>
    %cst_110 = arith.constant dense<0.000000e+00> : vector<8xf32>
    %270 = vector.multi_reduction <add>, %269, %cst_110 [1] : vector<8x32xf32> to vector<8xf32>
    %271 = vector.shape_cast %270 : vector<8xf32> to vector<8x1xf32>
    %cst_111 = arith.constant 3.200000e+01 : f32
    %272 = vector.broadcast %cst_111 : f32 to vector<8x1xf32>
    %273 = arith.divf %271, %272 : vector<8x1xf32>
    %274 = vector.broadcast %266 : vector<8x1xf32> to vector<8x32xf32>
    %275 = arith.subf %260, %274 : vector<8x32xf32>
    %cst_112 = arith.constant 9.99999997E-7 : f32
    %276 = vector.broadcast %cst_112 : f32 to vector<8x1xf32>
    %277 = arith.addf %273, %276 : vector<8x1xf32>
    %278 = math.rsqrt %277 : vector<8x1xf32>
    %279 = vector.broadcast %278 : vector<8x1xf32> to vector<8x32xf32>
    %280 = arith.mulf %275, %279 : vector<8x32xf32>
    %281 = vector.broadcast %261 : vector<1x32xf32> to vector<8x32xf32>
    %282 = arith.mulf %280, %281 : vector<8x32xf32>
    %283 = vector.broadcast %262 : vector<1x32xf32> to vector<8x32xf32>
    %284 = arith.addf %282, %283 : vector<8x32xf32>
    %c0_113 = arith.constant 0 : index
    %c0_114 = arith.constant 0 : index
    %c0_115 = arith.constant 0 : index
    %285 = vector.load %arg14[%c0_113, %c0_114, %c0_115] : memref<1x8x32xf32, #tpu.memory_space<vmem>>, vector<1x8x32xf32>
    %286 = vector.shape_cast %285 : vector<1x8x32xf32> to vector<8x32xf32>
    %287 = vector.shape_cast %284 : vector<8x32xf32> to vector<1x8x32xf32>
    tpu.vector_store %arg14[%c0_113, %c0_114, %c0_115], %287 {strides = array<i32>} : memref<1x8x32xf32, #tpu.memory_space<vmem>>, vector<1x8x32xf32>,
    return
  }
  func.func @transform_0(%arg0: i32, %arg1: i32) -> (i32, i32, i32) {
    %c0_i32 = arith.constant 0 : i32
    %c0_i32_0 = arith.constant 0 : i32
    %c0_i32_1 = arith.constant 0 : i32
    return %arg0, %c0_i32, %c0_i32_0 : i32, i32, i32
  }
  func.func @transform_1(%arg0: i32, %arg1: i32) -> (i32, i32, i32) {
    %c0_i32 = arith.constant 0 : i32
    %c0_i32_0 = arith.constant 0 : i32
    %c0_i32_1 = arith.constant 0 : i32
    return %arg0, %c0_i32, %c0_i32_0 : i32, i32, i32
  }
  func.func @transform_2(%arg0: i32, %arg1: i32) -> (i32, i32) {
    %c0_i32 = arith.constant 0 : i32
    %c0_i32_0 = arith.constant 0 : i32
    %c0_i32_1 = arith.constant 0 : i32
    return %c0_i32, %c0_i32_0 : i32, i32
  }
  func.func @transform_3(%arg0: i32, %arg1: i32) -> (i32, i32) {
    %c0_i32 = arith.constant 0 : i32
    %c0_i32_0 = arith.constant 0 : i32
    %c0_i32_1 = arith.constant 0 : i32
    return %c0_i32, %c0_i32_0 : i32, i32
  }
  func.func @transform_4(%arg0: i32, %arg1: i32) -> (i32, i32) {
    %c0_i32 = arith.constant 0 : i32
    %c0_i32_0 = arith.constant 0 : i32
    %c0_i32_1 = arith.constant 0 : i32
    return %c0_i32, %c0_i32_0 : i32, i32
  }
  func.func @transform_5(%arg0: i32, %arg1: i32) -> (i32, i32) {
    %c0_i32 = arith.constant 0 : i32
    %c0_i32_0 = arith.constant 0 : i32
    %c0_i32_1 = arith.constant 0 : i32
    return %c0_i32, %c0_i32_0 : i32, i32
  }
  func.func @transform_6(%arg0: i32, %arg1: i32) -> (i32, i32) {
    %c0_i32 = arith.constant 0 : i32
    %c0_i32_0 = arith.constant 0 : i32
    %c0_i32_1 = arith.constant 0 : i32
    return %c0_i32, %c0_i32_0 : i32, i32
  }
  func.func @transform_7(%arg0: i32, %arg1: i32) -> (i32, i32) {
    %c0_i32 = arith.constant 0 : i32
    %c0_i32_0 = arith.constant 0 : i32
    %c0_i32_1 = arith.constant 0 : i32
    return %c0_i32, %c0_i32_0 : i32, i32
  }
  func.func @transform_8(%arg0: i32, %arg1: i32) -> (i32, i32) {
    %c0_i32 = arith.constant 0 : i32
    %c0_i32_0 = arith.constant 0 : i32
    %c0_i32_1 = arith.constant 0 : i32
    return %c0_i32, %c0_i32_0 : i32, i32
  }
  func.func @transform_9(%arg0: i32, %arg1: i32) -> (i32, i32) {
    %c0_i32 = arith.constant 0 : i32
    %c0_i32_0 = arith.constant 0 : i32
    %c0_i32_1 = arith.constant 0 : i32
    return %c0_i32, %c0_i32_0 : i32, i32
  }
  func.func @transform_10(%arg0: i32, %arg1: i32) -> (i32, i32) {
    %c0_i32 = arith.constant 0 : i32
    %c0_i32_0 = arith.constant 0 : i32
    %c0_i32_1 = arith.constant 0 : i32
    return %c0_i32, %c0_i32_0 : i32, i32
  }
  func.func @transform_11(%arg0: i32, %arg1: i32) -> (i32, i32) {
    %c0_i32 = arith.constant 0 : i32
    %c0_i32_0 = arith.constant 0 : i32
    %c0_i32_1 = arith.constant 0 : i32
    return %c0_i32, %c0_i32_0 : i32, i32
  }
  func.func @transform_12(%arg0: i32, %arg1: i32) -> (i32, i32, i32) {
    %c0_i32 = arith.constant 0 : i32
    %c0_i32_0 = arith.constant 0 : i32
    return %arg0, %arg1, %c0_i32 : i32, i32, i32
  }
  func.func @transform_13(%arg0: i32, %arg1: i32) -> (i32, i32, i32, i32) {
    %c0_i32 = arith.constant 0 : i32
    %c0_i32_0 = arith.constant 0 : i32
    %c0_i32_1 = arith.constant 0 : i32
    return %arg0, %c0_i32, %arg1, %c0_i32_0 : i32, i32, i32, i32
  }
  func.func @transform_14(%arg0: i32, %arg1: i32) -> (i32, i32, i32, i32) {
    %c0_i32 = arith.constant 0 : i32
    %c0_i32_0 = arith.constant 0 : i32
    %c0_i32_1 = arith.constant 0 : i32
    return %arg0, %c0_i32, %arg1, %c0_i32_0 : i32, i32, i32, i32
  }
}

module attributes {stable_mosaic.version = 11 : i64} {
  func.func @_decoder_layer_kernel(%arg0: i32, %arg1: i32, %arg2: memref<1x16x32xf32, #tpu.memory_space<vmem>>, %arg3: memref<1x16x32xf32, #tpu.memory_space<vmem>>, %arg4: memref<32x32xbf16, #tpu.memory_space<vmem>>, %arg5: memref<32x64xbf16, #tpu.memory_space<vmem>>, %arg6: memref<32x32xbf16, #tpu.memory_space<vmem>>, %arg7: memref<32x32xbf16, #tpu.memory_space<vmem>>, %arg8: memref<32x64xbf16, #tpu.memory_space<vmem>>, %arg9: memref<32x32xbf16, #tpu.memory_space<vmem>>, %arg10: memref<32x64xbf16, #tpu.memory_space<vmem>>, %arg11: memref<64x32xbf16, #tpu.memory_space<vmem>>, %arg12: memref<1x64xf32, #tpu.memory_space<vmem>>, %arg13: memref<8x32xf32, #tpu.memory_space<vmem>>, %arg14: memref<1x8x32xf32, #tpu.memory_space<vmem>>, %arg15: memref<1x4x8x16xf32, #tpu.memory_space<vmem>>, %arg16: memref<1x4x8x16xf32, #tpu.memory_space<vmem>>) attributes {dimension_semantics = [#tpu.dimension_semantics<parallel>, #tpu.dimension_semantics<parallel>], iteration_bounds = array<i64: 2, 2>, scalar_prefetch = 0 : i64, scratch_operands = 0 : i64, tpu.core_type = #tpu.core_type<tc>, window_params = [{transform_indices = @transform_0, window_bounds = array<i64: 1, 16, 32>}, {transform_indices = @transform_1, window_bounds = array<i64: 1, 16, 32>}, {pipeline_mode = #tpu.pipeline_mode<synchronous>, transform_indices = @transform_2, window_bounds = array<i64: 32, 32>}, {pipeline_mode = #tpu.pipeline_mode<synchronous>, transform_indices = @transform_3, window_bounds = array<i64: 32, 64>}, {pipeline_mode = #tpu.pipeline_mode<synchronous>, transform_indices = @transform_4, window_bounds = array<i64: 32, 32>}, {pipeline_mode = #tpu.pipeline_mode<synchronous>, transform_indices = @transform_5, window_bounds = array<i64: 32, 32>}, {pipeline_mode = #tpu.pipeline_mode<synchronous>, transform_indices = @transform_6, window_bounds = array<i64: 32, 64>}, {pipeline_mode = #tpu.pipeline_mode<synchronous>, transform_indices = @transform_7, window_bounds = array<i64: 32, 32>}, {pipeline_mode = #tpu.pipeline_mode<synchronous>, transform_indices = @transform_8, window_bounds = array<i64: 32, 64>}, {pipeline_mode = #tpu.pipeline_mode<synchronous>, transform_indices = @transform_9, window_bounds = array<i64: 64, 32>}, {pipeline_mode = #tpu.pipeline_mode<synchronous>, transform_indices = @transform_10, window_bounds = array<i64: 1, 64>}, {pipeline_mode = #tpu.pipeline_mode<synchronous>, transform_indices = @transform_11, window_bounds = array<i64: 8, 32>}, {transform_indices = @transform_12, window_bounds = array<i64: 1, 8, 32>}, {transform_indices = @transform_13, window_bounds = array<i64: 1, 4, 8, 16>}, {transform_indices = @transform_14, window_bounds = array<i64: 1, 4, 8, 16>}]} {
    %c8_i32 = arith.constant 8 : i32
    %0 = arith.muli %arg1, %c8_i32 : i32
    %1 = tpu.assume_multiple %0, 8 : i32
    %c0 = arith.constant 0 : index
    %2 = arith.index_cast %1 : i32 to index
    %c0_0 = arith.constant 0 : index
    %3 = vector.load %arg2[%c0, %2, %c0_0] : memref<1x16x32xf32, #tpu.memory_space<vmem>>, vector<1x8x32xf32>
    %4 = vector.shape_cast %3 : vector<1x8x32xf32> to vector<8x32xf32>
    %c0_1 = arith.constant 0 : index
    %c0_2 = arith.constant 0 : index
    %c0_3 = arith.constant 0 : index
    %5 = vector.load %arg2[%c0_1, %c0_2, %c0_3] : memref<1x16x32xf32, #tpu.memory_space<vmem>>, vector<1x16x32xf32>
    %6 = vector.shape_cast %5 : vector<1x16x32xf32> to vector<16x32xf32>
    %c0_4 = arith.constant 0 : index
    %c0_5 = arith.constant 0 : index
    %c0_6 = arith.constant 0 : index
    %7 = vector.load %arg3[%c0_4, %c0_5, %c0_6] : memref<1x16x32xf32, #tpu.memory_space<vmem>>, vector<1x16x32xf32>
    %8 = vector.shape_cast %7 : vector<1x16x32xf32> to vector<16x32xf32>
    %c0_7 = arith.constant 0 : index
    %c0_8 = arith.constant 0 : index
    %9 = vector.load %arg13[%c0_7, %c0_8] : memref<8x32xf32, #tpu.memory_space<vmem>>, vector<8x32xf32>
    %c0_9 = arith.constant 0 : index
    %c0_10 = arith.constant 0 : index
    %10 = vector.load %arg4[%c0_9, %c0_10] : memref<32x32xbf16, #tpu.memory_space<vmem>>, vector<32x32xbf16>
    %c0_11 = arith.constant 0 : index
    %c0_12 = arith.constant 0 : index
    %11 = vector.load %arg5[%c0_11, %c0_12] : memref<32x64xbf16, #tpu.memory_space<vmem>>, vector<32x64xbf16>
    %c0_13 = arith.constant 0 : index
    %c0_14 = arith.constant 0 : index
    %12 = vector.load %arg6[%c0_13, %c0_14] : memref<32x32xbf16, #tpu.memory_space<vmem>>, vector<32x32xbf16>
    %13 = vector.extract_strided_slice %9 {offsets = [0, 0], sizes = [1, 32], strides = [1, 1]} : vector<8x32xf32> to vector<1x32xf32>
    %14 = vector.extract_strided_slice %9 {offsets = [1, 0], sizes = [1, 32], strides = [1, 1]} : vector<8x32xf32> to vector<1x32xf32>
    %15 = arith.truncf %4 : vector<8x32xf32> to vector<8x32xbf16>
    %cst = arith.constant dense<0.000000e+00> : vector<8x32xf32>
    %16 = tpu.matmul %15, %10, %cst {dimension_numbers = #tpu.dot_dimension_numbers<[1], [0], [0], [1], [0, 0, 1, 1], [], []>} : vector<8x32xbf16>, vector<32x32xbf16>, vector<8x32xf32> -> vector<8x32xf32>
    %cst_15 = arith.constant 0.353553385 : f32
    %17 = vector.broadcast %cst_15 : f32 to vector<8x32xf32>
    %18 = arith.mulf %16, %17 : vector<8x32xf32>
    %19 = arith.truncf %6 : vector<16x32xf32> to vector<16x32xbf16>
    %cst_16 = arith.constant dense<0.000000e+00> : vector<16x64xf32>
    %20 = tpu.matmul %19, %11, %cst_16 {dimension_numbers = #tpu.dot_dimension_numbers<[1], [0], [0], [1], [0, 0, 1, 1], [], []>} : vector<16x32xbf16>, vector<32x64xbf16>, vector<16x64xf32> -> vector<16x64xf32>
    %21 = arith.truncf %18 : vector<8x32xf32> to vector<8x32xbf16>
    %22 = vector.extract_strided_slice %20 {offsets = [0, 0], sizes = [16, 32], strides = [1, 1]} : vector<16x64xf32> to vector<16x32xf32>
    %23 = arith.truncf %22 : vector<16x32xf32> to vector<16x32xbf16>
    %24 = vector.extract_strided_slice %20 {offsets = [0, 32], sizes = [16, 32], strides = [1, 1]} : vector<16x64xf32> to vector<16x32xf32>
    %25 = arith.truncf %24 : vector<16x32xf32> to vector<16x32xbf16>
    %26 = vector.extract_strided_slice %21 {offsets = [0, 0], sizes = [8, 8], strides = [1, 1]} : vector<8x32xbf16> to vector<8x8xbf16>
    %27 = vector.extract_strided_slice %23 {offsets = [0, 0], sizes = [16, 8], strides = [1, 1]} : vector<16x32xbf16> to vector<16x8xbf16>
    %28 = vector.extract_strided_slice %25 {offsets = [0, 0], sizes = [16, 8], strides = [1, 1]} : vector<16x32xbf16> to vector<16x8xbf16>
    %cst_17 = arith.constant dense<0.000000e+00> : vector<8x16xf32>
    %29 = tpu.matmul %26, %27, %cst_17 {dimension_numbers = #tpu.dot_dimension_numbers<[1], [1], [0], [0], [0, 0, 1, 0], [], []>} : vector<8x8xbf16>, vector<16x8xbf16>, vector<8x16xf32> -> vector<8x16xf32>
    %cst_18 = arith.constant dense<0xFF800000> : vector<8xf32>
    %30 = vector.multi_reduction <maximumf>, %29, %cst_18 [1] : vector<8x16xf32> to vector<8xf32>
    %31 = vector.shape_cast %30 : vector<8xf32> to vector<8x1xf32>
    %32 = vector.broadcast %31 : vector<8x1xf32> to vector<8x16xf32>
    %33 = arith.subf %29, %32 : vector<8x16xf32>
    %34 = math.exp %33 : vector<8x16xf32>
    %cst_19 = arith.constant dense<0.000000e+00> : vector<8xf32>
    %35 = vector.multi_reduction <add>, %34, %cst_19 [1] : vector<8x16xf32> to vector<8xf32>
    %36 = vector.shape_cast %35 : vector<8xf32> to vector<8x1xf32>
    %37 = tpu.reciprocal %36 {approx = true} : vector<8x1xf32> -> vector<8x1xf32>
    %38 = vector.broadcast %37 : vector<8x1xf32> to vector<8x16xf32>
    %39 = arith.mulf %34, %38 : vector<8x16xf32>
    %c0_20 = arith.constant 0 : index
    %c0_21 = arith.constant 0 : index
    %c0_22 = arith.constant 0 : index
    %c0_23 = arith.constant 0 : index
    %40 = vector.load %arg15[%c0_20, %c0_21, %c0_22, %c0_23] : memref<1x4x8x16xf32, #tpu.memory_space<vmem>>, vector<1x1x8x16xf32>
    %41 = vector.shape_cast %40 : vector<1x1x8x16xf32> to vector<8x16xf32>
    %42 = vector.shape_cast %39 : vector<8x16xf32> to vector<1x1x8x16xf32>
    tpu.vector_store %arg15[%c0_20, %c0_21, %c0_22, %c0_23], %42 {strides = array<i32>} : memref<1x4x8x16xf32, #tpu.memory_space<vmem>>, vector<1x1x8x16xf32>,
    %43 = arith.truncf %39 : vector<8x16xf32> to vector<8x16xbf16>
    %cst_24 = arith.constant dense<0.000000e+00> : vector<8x8xf32>
    %44 = tpu.matmul %43, %28, %cst_24 {dimension_numbers = #tpu.dot_dimension_numbers<[1], [0], [0], [1], [0, 0, 1, 1], [], []>} : vector<8x16xbf16>, vector<16x8xbf16>, vector<8x8xf32> -> vector<8x8xf32>
    %45 = vector.extract_strided_slice %21 {offsets = [0, 8], sizes = [8, 8], strides = [1, 1]} : vector<8x32xbf16> to vector<8x8xbf16>
    %46 = vector.extract_strided_slice %23 {offsets = [0, 8], sizes = [16, 8], strides = [1, 1]} : vector<16x32xbf16> to vector<16x8xbf16>
    %47 = vector.extract_strided_slice %25 {offsets = [0, 8], sizes = [16, 8], strides = [1, 1]} : vector<16x32xbf16> to vector<16x8xbf16>
    %cst_25 = arith.constant dense<0.000000e+00> : vector<8x16xf32>
    %48 = tpu.matmul %45, %46, %cst_25 {dimension_numbers = #tpu.dot_dimension_numbers<[1], [1], [0], [0], [0, 0, 1, 0], [], []>} : vector<8x8xbf16>, vector<16x8xbf16>, vector<8x16xf32> -> vector<8x16xf32>
    %cst_26 = arith.constant dense<0xFF800000> : vector<8xf32>
    %49 = vector.multi_reduction <maximumf>, %48, %cst_26 [1] : vector<8x16xf32> to vector<8xf32>
    %50 = vector.shape_cast %49 : vector<8xf32> to vector<8x1xf32>
    %51 = vector.broadcast %50 : vector<8x1xf32> to vector<8x16xf32>
    %52 = arith.subf %48, %51 : vector<8x16xf32>
    %53 = math.exp %52 : vector<8x16xf32>
    %cst_27 = arith.constant dense<0.000000e+00> : vector<8xf32>
    %54 = vector.multi_reduction <add>, %53, %cst_27 [1] : vector<8x16xf32> to vector<8xf32>
    %55 = vector.shape_cast %54 : vector<8xf32> to vector<8x1xf32>
    %56 = tpu.reciprocal %55 {approx = true} : vector<8x1xf32> -> vector<8x1xf32>
    %57 = vector.broadcast %56 : vector<8x1xf32> to vector<8x16xf32>
    %58 = arith.mulf %53, %57 : vector<8x16xf32>
    %c0_28 = arith.constant 0 : index
    %c1 = arith.constant 1 : index
    %c0_29 = arith.constant 0 : index
    %c0_30 = arith.constant 0 : index
    %59 = vector.load %arg15[%c0_28, %c1, %c0_29, %c0_30] : memref<1x4x8x16xf32, #tpu.memory_space<vmem>>, vector<1x1x8x16xf32>
    %60 = vector.shape_cast %59 : vector<1x1x8x16xf32> to vector<8x16xf32>
    %61 = vector.shape_cast %58 : vector<8x16xf32> to vector<1x1x8x16xf32>
    tpu.vector_store %arg15[%c0_28, %c1, %c0_29, %c0_30], %61 {strides = array<i32>} : memref<1x4x8x16xf32, #tpu.memory_space<vmem>>, vector<1x1x8x16xf32>,
    %62 = arith.truncf %58 : vector<8x16xf32> to vector<8x16xbf16>
    %cst_31 = arith.constant dense<0.000000e+00> : vector<8x8xf32>
    %63 = tpu.matmul %62, %47, %cst_31 {dimension_numbers = #tpu.dot_dimension_numbers<[1], [0], [0], [1], [0, 0, 1, 1], [], []>} : vector<8x16xbf16>, vector<16x8xbf16>, vector<8x8xf32> -> vector<8x8xf32>
    %64 = vector.extract_strided_slice %21 {offsets = [0, 16], sizes = [8, 8], strides = [1, 1]} : vector<8x32xbf16> to vector<8x8xbf16>
    %65 = vector.extract_strided_slice %23 {offsets = [0, 16], sizes = [16, 8], strides = [1, 1]} : vector<16x32xbf16> to vector<16x8xbf16>
    %66 = vector.extract_strided_slice %25 {offsets = [0, 16], sizes = [16, 8], strides = [1, 1]} : vector<16x32xbf16> to vector<16x8xbf16>
    %cst_32 = arith.constant dense<0.000000e+00> : vector<8x16xf32>
    %67 = tpu.matmul %64, %65, %cst_32 {dimension_numbers = #tpu.dot_dimension_numbers<[1], [1], [0], [0], [0, 0, 1, 0], [], []>} : vector<8x8xbf16>, vector<16x8xbf16>, vector<8x16xf32> -> vector<8x16xf32>
    %cst_33 = arith.constant dense<0xFF800000> : vector<8xf32>
    %68 = vector.multi_reduction <maximumf>, %67, %cst_33 [1] : vector<8x16xf32> to vector<8xf32>
    %69 = vector.shape_cast %68 : vector<8xf32> to vector<8x1xf32>
    %70 = vector.broadcast %69 : vector<8x1xf32> to vector<8x16xf32>
    %71 = arith.subf %67, %70 : vector<8x16xf32>
    %72 = math.exp %71 : vector<8x16xf32>
    %cst_34 = arith.constant dense<0.000000e+00> : vector<8xf32>
    %73 = vector.multi_reduction <add>, %72, %cst_34 [1] : vector<8x16xf32> to vector<8xf32>
    %74 = vector.shape_cast %73 : vector<8xf32> to vector<8x1xf32>
    %75 = tpu.reciprocal %74 {approx = true} : vector<8x1xf32> -> vector<8x1xf32>
    %76 = vector.broadcast %75 : vector<8x1xf32> to vector<8x16xf32>
    %77 = arith.mulf %72, %76 : vector<8x16xf32>
    %c0_35 = arith.constant 0 : index
    %c2 = arith.constant 2 : index
    %c0_36 = arith.constant 0 : index
    %c0_37 = arith.constant 0 : index
    %78 = vector.load %arg15[%c0_35, %c2, %c0_36, %c0_37] : memref<1x4x8x16xf32, #tpu.memory_space<vmem>>, vector<1x1x8x16xf32>
    %79 = vector.shape_cast %78 : vector<1x1x8x16xf32> to vector<8x16xf32>
    %80 = vector.shape_cast %77 : vector<8x16xf32> to vector<1x1x8x16xf32>
    tpu.vector_store %arg15[%c0_35, %c2, %c0_36, %c0_37], %80 {strides = array<i32>} : memref<1x4x8x16xf32, #tpu.memory_space<vmem>>, vector<1x1x8x16xf32>,
    %81 = arith.truncf %77 : vector<8x16xf32> to vector<8x16xbf16>
    %cst_38 = arith.constant dense<0.000000e+00> : vector<8x8xf32>
    %82 = tpu.matmul %81, %66, %cst_38 {dimension_numbers = #tpu.dot_dimension_numbers<[1], [0], [0], [1], [0, 0, 1, 1], [], []>} : vector<8x16xbf16>, vector<16x8xbf16>, vector<8x8xf32> -> vector<8x8xf32>
    %83 = vector.extract_strided_slice %21 {offsets = [0, 24], sizes = [8, 8], strides = [1, 1]} : vector<8x32xbf16> to vector<8x8xbf16>
    %84 = vector.extract_strided_slice %23 {offsets = [0, 24], sizes = [16, 8], strides = [1, 1]} : vector<16x32xbf16> to vector<16x8xbf16>
    %85 = vector.extract_strided_slice %25 {offsets = [0, 24], sizes = [16, 8], strides = [1, 1]} : vector<16x32xbf16> to vector<16x8xbf16>
    %cst_39 = arith.constant dense<0.000000e+00> : vector<8x16xf32>
    %86 = tpu.matmul %83, %84, %cst_39 {dimension_numbers = #tpu.dot_dimension_numbers<[1], [1], [0], [0], [0, 0, 1, 0], [], []>} : vector<8x8xbf16>, vector<16x8xbf16>, vector<8x16xf32> -> vector<8x16xf32>
    %cst_40 = arith.constant dense<0xFF800000> : vector<8xf32>
    %87 = vector.multi_reduction <maximumf>, %86, %cst_40 [1] : vector<8x16xf32> to vector<8xf32>
    %88 = vector.shape_cast %87 : vector<8xf32> to vector<8x1xf32>
    %89 = vector.broadcast %88 : vector<8x1xf32> to vector<8x16xf32>
    %90 = arith.subf %86, %89 : vector<8x16xf32>
    %91 = math.exp %90 : vector<8x16xf32>
    %cst_41 = arith.constant dense<0.000000e+00> : vector<8xf32>
    %92 = vector.multi_reduction <add>, %91, %cst_41 [1] : vector<8x16xf32> to vector<8xf32>
    %93 = vector.shape_cast %92 : vector<8xf32> to vector<8x1xf32>
    %94 = tpu.reciprocal %93 {approx = true} : vector<8x1xf32> -> vector<8x1xf32>
    %95 = vector.broadcast %94 : vector<8x1xf32> to vector<8x16xf32>
    %96 = arith.mulf %91, %95 : vector<8x16xf32>
    %c0_42 = arith.constant 0 : index
    %c3 = arith.constant 3 : index
    %c0_43 = arith.constant 0 : index
    %c0_44 = arith.constant 0 : index
    %97 = vector.load %arg15[%c0_42, %c3, %c0_43, %c0_44] : memref<1x4x8x16xf32, #tpu.memory_space<vmem>>, vector<1x1x8x16xf32>
    %98 = vector.shape_cast %97 : vector<1x1x8x16xf32> to vector<8x16xf32>
    %99 = vector.shape_cast %96 : vector<8x16xf32> to vector<1x1x8x16xf32>
    tpu.vector_store %arg15[%c0_42, %c3, %c0_43, %c0_44], %99 {strides = array<i32>} : memref<1x4x8x16xf32, #tpu.memory_space<vmem>>, vector<1x1x8x16xf32>,
    %100 = arith.truncf %96 : vector<8x16xf32> to vector<8x16xbf16>
    %cst_45 = arith.constant dense<0.000000e+00> : vector<8x8xf32>
    %101 = tpu.matmul %100, %85, %cst_45 {dimension_numbers = #tpu.dot_dimension_numbers<[1], [0], [0], [1], [0, 0, 1, 1], [], []>} : vector<8x16xbf16>, vector<16x8xbf16>, vector<8x8xf32> -> vector<8x8xf32>
    %102 = tpu.concatenate %44, %63, %82, %101 in 1 : vector<8x8xf32>, vector<8x8xf32>, vector<8x8xf32>, vector<8x8xf32> -> vector<8x32xf32>
    %103 = arith.truncf %102 : vector<8x32xf32> to vector<8x32xbf16>
    %cst_46 = arith.constant dense<0.000000e+00> : vector<8x32xf32>
    %104 = tpu.matmul %103, %12, %cst_46 {dimension_numbers = #tpu.dot_dimension_numbers<[1], [0], [0], [1], [0, 0, 1, 1], [], []>} : vector<8x32xbf16>, vector<32x32xbf16>, vector<8x32xf32> -> vector<8x32xf32>
    %105 = arith.addf %104, %4 : vector<8x32xf32>
    %cst_47 = arith.constant dense<0.000000e+00> : vector<8xf32>
    %106 = vector.multi_reduction <add>, %105, %cst_47 [1] : vector<8x32xf32> to vector<8xf32>
    %107 = vector.shape_cast %106 : vector<8xf32> to vector<8x1xf32>
    %cst_48 = arith.constant 3.200000e+01 : f32
    %108 = vector.broadcast %cst_48 : f32 to vector<8x1xf32>
    %109 = arith.divf %107, %108 : vector<8x1xf32>
    %110 = vector.broadcast %109 : vector<8x1xf32> to vector<8x32xf32>
    %111 = arith.subf %105, %110 : vector<8x32xf32>
    %112 = arith.mulf %111, %111 : vector<8x32xf32>
    %cst_49 = arith.constant dense<0.000000e+00> : vector<8xf32>
    %113 = vector.multi_reduction <add>, %112, %cst_49 [1] : vector<8x32xf32> to vector<8xf32>
    %114 = vector.shape_cast %113 : vector<8xf32> to vector<8x1xf32>
    %cst_50 = arith.constant 3.200000e+01 : f32
    %115 = vector.broadcast %cst_50 : f32 to vector<8x1xf32>
    %116 = arith.divf %114, %115 : vector<8x1xf32>
    %117 = vector.broadcast %109 : vector<8x1xf32> to vector<8x32xf32>
    %118 = arith.subf %105, %117 : vector<8x32xf32>
    %cst_51 = arith.constant 9.99999997E-7 : f32
    %119 = vector.broadcast %cst_51 : f32 to vector<8x1xf32>
    %120 = arith.addf %116, %119 : vector<8x1xf32>
    %121 = math.rsqrt %120 : vector<8x1xf32>
    %122 = vector.broadcast %121 : vector<8x1xf32> to vector<8x32xf32>
    %123 = arith.mulf %118, %122 : vector<8x32xf32>
    %124 = vector.broadcast %13 : vector<1x32xf32> to vector<8x32xf32>
    %125 = arith.mulf %123, %124 : vector<8x32xf32>
    %126 = vector.broadcast %14 : vector<1x32xf32> to vector<8x32xf32>
    %127 = arith.addf %125, %126 : vector<8x32xf32>
    %c0_52 = arith.constant 0 : index
    %c0_53 = arith.constant 0 : index
    %128 = vector.load %arg7[%c0_52, %c0_53] : memref<32x32xbf16, #tpu.memory_space<vmem>>, vector<32x32xbf16>
    %c0_54 = arith.constant 0 : index
    %c0_55 = arith.constant 0 : index
    %129 = vector.load %arg8[%c0_54, %c0_55] : memref<32x64xbf16, #tpu.memory_space<vmem>>, vector<32x64xbf16>
    %c0_56 = arith.constant 0 : index
    %c0_57 = arith.constant 0 : index
    %130 = vector.load %arg9[%c0_56, %c0_57] : memref<32x32xbf16, #tpu.memory_space<vmem>>, vector<32x32xbf16>
    %131 = vector.extract_strided_slice %9 {offsets = [2, 0], sizes = [1, 32], strides = [1, 1]} : vector<8x32xf32> to vector<1x32xf32>
    %132 = vector.extract_strided_slice %9 {offsets = [3, 0], sizes = [1, 32], strides = [1, 1]} : vector<8x32xf32> to vector<1x32xf32>
    %133 = arith.truncf %127 : vector<8x32xf32> to vector<8x32xbf16>
    %cst_58 = arith.constant dense<0.000000e+00> : vector<8x32xf32>
    %134 = tpu.matmul %133, %128, %cst_58 {dimension_numbers = #tpu.dot_dimension_numbers<[1], [0], [0], [1], [0, 0, 1, 1], [], []>} : vector<8x32xbf16>, vector<32x32xbf16>, vector<8x32xf32> -> vector<8x32xf32>
    %cst_59 = arith.constant 0.353553385 : f32
    %135 = vector.broadcast %cst_59 : f32 to vector<8x32xf32>
    %136 = arith.mulf %134, %135 : vector<8x32xf32>
    %137 = arith.truncf %8 : vector<16x32xf32> to vector<16x32xbf16>
    %cst_60 = arith.constant dense<0.000000e+00> : vector<16x64xf32>
    %138 = tpu.matmul %137, %129, %cst_60 {dimension_numbers = #tpu.dot_dimension_numbers<[1], [0], [0], [1], [0, 0, 1, 1], [], []>} : vector<16x32xbf16>, vector<32x64xbf16>, vector<16x64xf32> -> vector<16x64xf32>
    %139 = arith.truncf %136 : vector<8x32xf32> to vector<8x32xbf16>
    %140 = vector.extract_strided_slice %138 {offsets = [0, 0], sizes = [16, 32], strides = [1, 1]} : vector<16x64xf32> to vector<16x32xf32>
    %141 = arith.truncf %140 : vector<16x32xf32> to vector<16x32xbf16>
    %142 = vector.extract_strided_slice %138 {offsets = [0, 32], sizes = [16, 32], strides = [1, 1]} : vector<16x64xf32> to vector<16x32xf32>
    %143 = arith.truncf %142 : vector<16x32xf32> to vector<16x32xbf16>
    %144 = vector.extract_strided_slice %139 {offsets = [0, 0], sizes = [8, 8], strides = [1, 1]} : vector<8x32xbf16> to vector<8x8xbf16>
    %145 = vector.extract_strided_slice %141 {offsets = [0, 0], sizes = [16, 8], strides = [1, 1]} : vector<16x32xbf16> to vector<16x8xbf16>
    %146 = vector.extract_strided_slice %143 {offsets = [0, 0], sizes = [16, 8], strides = [1, 1]} : vector<16x32xbf16> to vector<16x8xbf16>
    %cst_61 = arith.constant dense<0.000000e+00> : vector<8x16xf32>
    %147 = tpu.matmul %144, %145, %cst_61 {dimension_numbers = #tpu.dot_dimension_numbers<[1], [1], [0], [0], [0, 0, 1, 0], [], []>} : vector<8x8xbf16>, vector<16x8xbf16>, vector<8x16xf32> -> vector<8x16xf32>
    %cst_62 = arith.constant dense<0xFF800000> : vector<8xf32>
    %148 = vector.multi_reduction <maximumf>, %147, %cst_62 [1] : vector<8x16xf32> to vector<8xf32>
    %149 = vector.shape_cast %148 : vector<8xf32> to vector<8x1xf32>
    %150 = vector.broadcast %149 : vector<8x1xf32> to vector<8x16xf32>
    %151 = arith.subf %147, %150 : vector<8x16xf32>
    %152 = math.exp %151 : vector<8x16xf32>
    %cst_63 = arith.constant dense<0.000000e+00> : vector<8xf32>
    %153 = vector.multi_reduction <add>, %152, %cst_63 [1] : vector<8x16xf32> to vector<8xf32>
    %154 = vector.shape_cast %153 : vector<8xf32> to vector<8x1xf32>
    %155 = tpu.reciprocal %154 {approx = true} : vector<8x1xf32> -> vector<8x1xf32>
    %156 = vector.broadcast %155 : vector<8x1xf32> to vector<8x16xf32>
    %157 = arith.mulf %152, %156 : vector<8x16xf32>
    %c0_64 = arith.constant 0 : index
    %c0_65 = arith.constant 0 : index
    %c0_66 = arith.constant 0 : index
    %c0_67 = arith.constant 0 : index
    %158 = vector.load %arg16[%c0_64, %c0_65, %c0_66, %c0_67] : memref<1x4x8x16xf32, #tpu.memory_space<vmem>>, vector<1x1x8x16xf32>
    %159 = vector.shape_cast %158 : vector<1x1x8x16xf32> to vector<8x16xf32>
    %160 = vector.shape_cast %157 : vector<8x16xf32> to vector<1x1x8x16xf32>
    tpu.vector_store %arg16[%c0_64, %c0_65, %c0_66, %c0_67], %160 {strides = array<i32>} : memref<1x4x8x16xf32, #tpu.memory_space<vmem>>, vector<1x1x8x16xf32>,
    %161 = arith.truncf %157 : vector<8x16xf32> to vector<8x16xbf16>
    %cst_68 = arith.constant dense<0.000000e+00> : vector<8x8xf32>
    %162 = tpu.matmul %161, %146, %cst_68 {dimension_numbers = #tpu.dot_dimension_numbers<[1], [0], [0], [1], [0, 0, 1, 1], [], []>} : vector<8x16xbf16>, vector<16x8xbf16>, vector<8x8xf32> -> vector<8x8xf32>
    %163 = vector.extract_strided_slice %139 {offsets = [0, 8], sizes = [8, 8], strides = [1, 1]} : vector<8x32xbf16> to vector<8x8xbf16>
    %164 = vector.extract_strided_slice %141 {offsets = [0, 8], sizes = [16, 8], strides = [1, 1]} : vector<16x32xbf16> to vector<16x8xbf16>
    %165 = vector.extract_strided_slice %143 {offsets = [0, 8], sizes = [16, 8], strides = [1, 1]} : vector<16x32xbf16> to vector<16x8xbf16>
    %cst_69 = arith.constant dense<0.000000e+00> : vector<8x16xf32>
    %166 = tpu.matmul %163, %164, %cst_69 {dimension_numbers = #tpu.dot_dimension_numbers<[1], [1], [0], [0], [0, 0, 1, 0], [], []>} : vector<8x8xbf16>, vector<16x8xbf16>, vector<8x16xf32> -> vector<8x16xf32>
    %cst_70 = arith.constant dense<0xFF800000> : vector<8xf32>
    %167 = vector.multi_reduction <maximumf>, %166, %cst_70 [1] : vector<8x16xf32> to vector<8xf32>
    %168 = vector.shape_cast %167 : vector<8xf32> to vector<8x1xf32>
    %169 = vector.broadcast %168 : vector<8x1xf32> to vector<8x16xf32>
    %170 = arith.subf %166, %169 : vector<8x16xf32>
    %171 = math.exp %170 : vector<8x16xf32>
    %cst_71 = arith.constant dense<0.000000e+00> : vector<8xf32>
    %172 = vector.multi_reduction <add>, %171, %cst_71 [1] : vector<8x16xf32> to vector<8xf32>
    %173 = vector.shape_cast %172 : vector<8xf32> to vector<8x1xf32>
    %174 = tpu.reciprocal %173 {approx = true} : vector<8x1xf32> -> vector<8x1xf32>
    %175 = vector.broadcast %174 : vector<8x1xf32> to vector<8x16xf32>
    %176 = arith.mulf %171, %175 : vector<8x16xf32>
    %c0_72 = arith.constant 0 : index
    %c1_73 = arith.constant 1 : index
    %c0_74 = arith.constant 0 : index
    %c0_75 = arith.constant 0 : index
    %177 = vector.load %arg16[%c0_72, %c1_73, %c0_74, %c0_75] : memref<1x4x8x16xf32, #tpu.memory_space<vmem>>, vector<1x1x8x16xf32>
    %178 = vector.shape_cast %177 : vector<1x1x8x16xf32> to vector<8x16xf32>
    %179 = vector.shape_cast %176 : vector<8x16xf32> to vector<1x1x8x16xf32>
    tpu.vector_store %arg16[%c0_72, %c1_73, %c0_74, %c0_75], %179 {strides = array<i32>} : memref<1x4x8x16xf32, #tpu.memory_space<vmem>>, vector<1x1x8x16xf32>,
    %180 = arith.truncf %176 : vector<8x16xf32> to vector<8x16xbf16>
    %cst_76 = arith.constant dense<0.000000e+00> : vector<8x8xf32>
    %181 = tpu.matmul %180, %165, %cst_76 {dimension_numbers = #tpu.dot_dimension_numbers<[1], [0], [0], [1], [0, 0, 1, 1], [], []>} : vector<8x16xbf16>, vector<16x8xbf16>, vector<8x8xf32> -> vector<8x8xf32>
    %182 = vector.extract_strided_slice %139 {offsets = [0, 16], sizes = [8, 8], strides = [1, 1]} : vector<8x32xbf16> to vector<8x8xbf16>
    %183 = vector.extract_strided_slice %141 {offsets = [0, 16], sizes = [16, 8], strides = [1, 1]} : vector<16x32xbf16> to vector<16x8xbf16>
    %184 = vector.extract_strided_slice %143 {offsets = [0, 16], sizes = [16, 8], strides = [1, 1]} : vector<16x32xbf16> to vector<16x8xbf16>
    %cst_77 = arith.constant dense<0.000000e+00> : vector<8x16xf32>
    %185 = tpu.matmul %182, %183, %cst_77 {dimension_numbers = #tpu.dot_dimension_numbers<[1], [1], [0], [0], [0, 0, 1, 0], [], []>} : vector<8x8xbf16>, vector<16x8xbf16>, vector<8x16xf32> -> vector<8x16xf32>
    %cst_78 = arith.constant dense<0xFF800000> : vector<8xf32>
    %186 = vector.multi_reduction <maximumf>, %185, %cst_78 [1] : vector<8x16xf32> to vector<8xf32>
    %187 = vector.shape_cast %186 : vector<8xf32> to vector<8x1xf32>
    %188 = vector.broadcast %187 : vector<8x1xf32> to vector<8x16xf32>
    %189 = arith.subf %185, %188 : vector<8x16xf32>
    %190 = math.exp %189 : vector<8x16xf32>
    %cst_79 = arith.constant dense<0.000000e+00> : vector<8xf32>
    %191 = vector.multi_reduction <add>, %190, %cst_79 [1] : vector<8x16xf32> to vector<8xf32>
    %192 = vector.shape_cast %191 : vector<8xf32> to vector<8x1xf32>
    %193 = tpu.reciprocal %192 {approx = true} : vector<8x1xf32> -> vector<8x1xf32>
    %194 = vector.broadcast %193 : vector<8x1xf32> to vector<8x16xf32>
    %195 = arith.mulf %190, %194 : vector<8x16xf32>
    %c0_80 = arith.constant 0 : index
    %c2_81 = arith.constant 2 : index
    %c0_82 = arith.constant 0 : index
    %c0_83 = arith.constant 0 : index
    %196 = vector.load %arg16[%c0_80, %c2_81, %c0_82, %c0_83] : memref<1x4x8x16xf32, #tpu.memory_space<vmem>>, vector<1x1x8x16xf32>
    %197 = vector.shape_cast %196 : vector<1x1x8x16xf32> to vector<8x16xf32>
    %198 = vector.shape_cast %195 : vector<8x16xf32> to vector<1x1x8x16xf32>
    tpu.vector_store %arg16[%c0_80, %c2_81, %c0_82, %c0_83], %198 {strides = array<i32>} : memref<1x4x8x16xf32, #tpu.memory_space<vmem>>, vector<1x1x8x16xf32>,
    %199 = arith.truncf %195 : vector<8x16xf32> to vector<8x16xbf16>
    %cst_84 = arith.constant dense<0.000000e+00> : vector<8x8xf32>
    %200 = tpu.matmul %199, %184, %cst_84 {dimension_numbers = #tpu.dot_dimension_numbers<[1], [0], [0], [1], [0, 0, 1, 1], [], []>} : vector<8x16xbf16>, vector<16x8xbf16>, vector<8x8xf32> -> vector<8x8xf32>
    %201 = vector.extract_strided_slice %139 {offsets = [0, 24], sizes = [8, 8], strides = [1, 1]} : vector<8x32xbf16> to vector<8x8xbf16>
    %202 = vector.extract_strided_slice %141 {offsets = [0, 24], sizes = [16, 8], strides = [1, 1]} : vector<16x32xbf16> to vector<16x8xbf16>
    %203 = vector.extract_strided_slice %143 {offsets = [0, 24], sizes = [16, 8], strides = [1, 1]} : vector<16x32xbf16> to vector<16x8xbf16>
    %cst_85 = arith.constant dense<0.000000e+00> : vector<8x16xf32>
    %204 = tpu.matmul %201, %202, %cst_85 {dimension_numbers = #tpu.dot_dimension_numbers<[1], [1], [0], [0], [0, 0, 1, 0], [], []>} : vector<8x8xbf16>, vector<16x8xbf16>, vector<8x16xf32> -> vector<8x16xf32>
    %cst_86 = arith.constant dense<0xFF800000> : vector<8xf32>
    %205 = vector.multi_reduction <maximumf>, %204, %cst_86 [1] : vector<8x16xf32> to vector<8xf32>
    %206 = vector.shape_cast %205 : vector<8xf32> to vector<8x1xf32>
    %207 = vector.broadcast %206 : vector<8x1xf32> to vector<8x16xf32>
    %208 = arith.subf %204, %207 : vector<8x16xf32>
    %209 = math.exp %208 : vector<8x16xf32>
    %cst_87 = arith.constant dense<0.000000e+00> : vector<8xf32>
    %210 = vector.multi_reduction <add>, %209, %cst_87 [1] : vector<8x16xf32> to vector<8xf32>
    %211 = vector.shape_cast %210 : vector<8xf32> to vector<8x1xf32>
    %212 = tpu.reciprocal %211 {approx = true} : vector<8x1xf32> -> vector<8x1xf32>
    %213 = vector.broadcast %212 : vector<8x1xf32> to vector<8x16xf32>
    %214 = arith.mulf %209, %213 : vector<8x16xf32>
    %c0_88 = arith.constant 0 : index
    %c3_89 = arith.constant 3 : index
    %c0_90 = arith.constant 0 : index
    %c0_91 = arith.constant 0 : index
    %215 = vector.load %arg16[%c0_88, %c3_89, %c0_90, %c0_91] : memref<1x4x8x16xf32, #tpu.memory_space<vmem>>, vector<1x1x8x16xf32>
    %216 = vector.shape_cast %215 : vector<1x1x8x16xf32> to vector<8x16xf32>
    %217 = vector.shape_cast %214 : vector<8x16xf32> to vector<1x1x8x16xf32>
    tpu.vector_store %arg16[%c0_88, %c3_89, %c0_90, %c0_91], %217 {strides = array<i32>} : memref<1x4x8x16xf32, #tpu.memory_space<vmem>>, vector<1x1x8x16xf32>,
    %218 = arith.truncf %214 : vector<8x16xf32> to vector<8x16xbf16>
    %cst_92 = arith.constant dense<0.000000e+00> : vector<8x8xf32>
    %219 = tpu.matmul %218, %203, %cst_92 {dimension_numbers = #tpu.dot_dimension_numbers<[1], [0], [0], [1], [0, 0, 1, 1], [], []>} : vector<8x16xbf16>, vector<16x8xbf16>, vector<8x8xf32> -> vector<8x8xf32>
    %220 = tpu.concatenate %162, %181, %200, %219 in 1 : vector<8x8xf32>, vector<8x8xf32>, vector<8x8xf32>, vector<8x8xf32> -> vector<8x32xf32>
    %221 = arith.truncf %220 : vector<8x32xf32> to vector<8x32xbf16>
    %cst_93 = arith.constant dense<0.000000e+00> : vector<8x32xf32>
    %222 = tpu.matmul %221, %130, %cst_93 {dimension_numbers = #tpu.dot_dimension_numbers<[1], [0], [0], [1], [0, 0, 1, 1], [], []>} : vector<8x32xbf16>, vector<32x32xbf16>, vector<8x32xf32> -> vector<8x32xf32>
    %223 = arith.addf %222, %127 : vector<8x32xf32>
    %cst_94 = arith.constant dense<0.000000e+00> : vector<8xf32>
    %224 = vector.multi_reduction <add>, %223, %cst_94 [1] : vector<8x32xf32> to vector<8xf32>
    %225 = vector.shape_cast %224 : vector<8xf32> to vector<8x1xf32>
    %cst_95 = arith.constant 3.200000e+01 : f32
    %226 = vector.broadcast %cst_95 : f32 to vector<8x1xf32>
    %227 = arith.divf %225, %226 : vector<8x1xf32>
    %228 = vector.broadcast %227 : vector<8x1xf32> to vector<8x32xf32>
    %229 = arith.subf %223, %228 : vector<8x32xf32>
    %230 = arith.mulf %229, %229 : vector<8x32xf32>
    %cst_96 = arith.constant dense<0.000000e+00> : vector<8xf32>
    %231 = vector.multi_reduction <add>, %230, %cst_96 [1] : vector<8x32xf32> to vector<8xf32>
    %232 = vector.shape_cast %231 : vector<8xf32> to vector<8x1xf32>
    %cst_97 = arith.constant 3.200000e+01 : f32
    %233 = vector.broadcast %cst_97 : f32 to vector<8x1xf32>
    %234 = arith.divf %232, %233 : vector<8x1xf32>
    %235 = vector.broadcast %227 : vector<8x1xf32> to vector<8x32xf32>
    %236 = arith.subf %223, %235 : vector<8x32xf32>
    %cst_98 = arith.constant 9.99999997E-7 : f32
    %237 = vector.broadcast %cst_98 : f32 to vector<8x1xf32>
    %238 = arith.addf %234, %237 : vector<8x1xf32>
    %239 = math.rsqrt %238 : vector<8x1xf32>
    %240 = vector.broadcast %239 : vector<8x1xf32> to vector<8x32xf32>
    %241 = arith.mulf %236, %240 : vector<8x32xf32>
    %242 = vector.broadcast %131 : vector<1x32xf32> to vector<8x32xf32>
    %243 = arith.mulf %241, %242 : vector<8x32xf32>
    %244 = vector.broadcast %132 : vector<1x32xf32> to vector<8x32xf32>
    %245 = arith.addf %243, %244 : vector<8x32xf32>
    %246 = arith.truncf %245 : vector<8x32xf32> to vector<8x32xbf16>
    %c0_99 = arith.constant 0 : index
    %c0_100 = arith.constant 0 : index
    %247 = vector.load %arg10[%c0_99, %c0_100] : memref<32x64xbf16, #tpu.memory_space<vmem>>, vector<32x64xbf16>
    %cst_101 = arith.constant dense<0.000000e+00> : vector<8x64xf32>
    %248 = tpu.matmul %246, %247, %cst_101 {dimension_numbers = #tpu.dot_dimension_numbers<[1], [0], [0], [1], [0, 0, 1, 1], [], []>} : vector<8x32xbf16>, vector<32x64xbf16>, vector<8x64xf32> -> vector<8x64xf32>
    %c0_102 = arith.constant 0 : index
    %c0_103 = arith.constant 0 : index
    %249 = vector.load %arg12[%c0_102, %c0_103] : memref<1x64xf32, #tpu.memory_space<vmem>>, vector<1x64xf32>
    %250 = vector.broadcast %249 : vector<1x64xf32> to vector<8x64xf32>
    %251 = arith.addf %248, %250 : vector<8x64xf32>
    %cst_104 = arith.constant 0.000000e+00 : f32
    %252 = vector.broadcast %cst_104 : f32 to vector<8x64xf32>
    %253 = arith.maximumf %251, %252 : vector<8x64xf32>
    %254 = arith.truncf %253 : vector<8x64xf32> to vector<8x64xbf16>
    %c0_105 = arith.constant 0 : index
    %c0_106 = arith.constant 0 : index
    %255 = vector.load %arg11[%c0_105, %c0_106] : memref<64x32xbf16, #tpu.memory_space<vmem>>, vector<64x32xbf16>
    %cst_107 = arith.constant dense<0.000000e+00> : vector<8x32xf32>
    %256 = tpu.matmul %254, %255, %cst_107 {dimension_numbers = #tpu.dot_dimension_numbers<[1], [0], [0], [1], [0, 0, 1, 1], [], []>} : vector<8x64xbf16>, vector<64x32xbf16>, vector<8x32xf32> -> vector<8x32xf32>
    %257 = vector.extract_strided_slice %9 {offsets = [4, 0], sizes = [1, 32], strides = [1, 1]} : vector<8x32xf32> to vector<1x32xf32>
    %258 = vector.broadcast %257 : vector<1x32xf32> to vector<8x32xf32>
    %259 = arith.addf %256, %258 : vector<8x32xf32>
    %260 = arith.addf %259, %245 : vector<8x32xf32>
    %261 = vector.extract_strided_slice %9 {offsets = [5, 0], sizes = [1, 32], strides = [1, 1]} : vector<8x32xf32> to vector<1x32xf32>
    %262 = vector.extract_strided_slice %9 {offsets = [6, 0], sizes = [1, 32], strides = [1, 1]} : vector<8x32xf32> to vector<1x32xf32>
    %cst_108 = arith.constant dense<0.000000e+00> : vector<8xf32>
    %263 = vector.multi_reduction <add>, %260, %cst_108 [1] : vector<8x32xf32> to vector<8xf32>
    %264 = vector.shape_cast %263 : vector<8xf32> to vector<8x1xf32>
    %cst_109 = arith.constant 3.200000e+01 : f32
    %265 = vector.broadcast %cst_109 : f32 to vector<8x1xf32>
    %266 = arith.divf %264, %265 : vector<8x1xf32>
    %267 = vector.broadcast %266 : vector<8x1xf32> to vector<8x32xf32>
    %268 = arith.subf %260, %267 : vector<8x32xf32>
    %269 = arith.mulf %268, %268 : vector<8x32xf32>
    %cst_110 = arith.constant dense<0.000000e+00> : vector<8xf32>
    %270 = vector.multi_reduction <add>, %269, %cst_110 [1] : vector<8x32xf32> to vector<8xf32>
    %271 = vector.shape_cast %270 : vector<8xf32> to vector<8x1xf32>
    %cst_111 = arith.constant 3.200000e+01 : f32
    %272 = vector.broadcast %cst_111 : f32 to vector<8x1xf32>
    %273 = arith.divf %271, %272 : vector<8x1xf32>
    %274 = vector.broadcast %266 : vector<8x1xf32> to vector<8x32xf32>
    %275 = arith.subf %260, %274 : vector<8x32xf32>
    %cst_112 = arith.constant 9.99999997E-7 : f32
    %276 = vector.broadcast %cst_112 : f32 to vector<8x1xf32>
    %277 = arith.addf %273, %276 : vector<8x1xf32>
    %278 = math.rsqrt %277 : vector<8x1xf32>
    %279 = vector.broadcast %278 : vector<8x1xf32> to vector<8x32xf32>
    %280 = arith.mulf %275, %279 : vector<8x32xf32>
    %281 = vector.broadcast %261 : vector<1x32xf32> to vector<8x32xf32>
    %282 = arith.mulf %280, %281 : vector<8x32xf32>
    %283 = vector.broadcast %262 : vector<1x32xf32> to vector<8x32xf32>
    %284 = arith.addf %282, %283 : vector<8x32xf32>
    %c0_113 = arith.constant 0 : index
    %c0_114 = arith.constant 0 : index
    %c0_115 = arith.constant 0 : index
    %285 = vector.load %arg14[%c0_113, %c0_114, %c0_115] : memref<1x8x32xf32, #tpu.memory_space<vmem>>, vector<1x8x32xf32>
    %286 = vector.shape_cast %285 : vector<1x8x32xf32> to vector<8x32xf32>
    %287 = vector.shape_cast %284 : vector<8x32xf32> to vector<1x8x32xf32>
    tpu.vector_store %arg14[%c0_113, %c0_114, %c0_115], %287 {strides = array<i32>} : memref<1x8x32xf32, #tpu.memory_space<vmem>>, vector<1x8x32xf32>,
    return
  }
  func.func @transform_0(%arg0: i32, %arg1: i32) -> (i32, i32, i32) {
    %c0_i32 = arith.constant 0 : i32
    %c0_i32_0 = arith.constant 0 : i32
    %c0_i32_1 = arith.constant 0 : i32
    return %arg0, %c0_i32, %c0_i32_0 : i32, i32, i32
  }
  func.func @transform_1(%arg0: i32, %arg1: i32) -> (i32, i32, i32) {
    %c0_i32 = arith.constant 0 : i32
    %c0_i32_0 = arith.constant 0 : i32
    %c0_i32_1 = arith.constant 0 : i32
    return %arg0, %c0_i32, %c0_i32_0 : i32, i32, i32
  }
  func.func @transform_2(%arg0: i32, %arg1: i32) -> (i32, i32) {
    %c0_i32 = arith.constant 0 : i32
    %c0_i32_0 = arith.constant 0 : i32
    %c0_i32_1 = arith.constant 0 : i32
    return %c0_i32, %c0_i32_0 : i32, i32
  }
  func.func @transform_3(%arg0: i32, %arg1: i32) -> (i32, i32) {
    %c0_i32 = arith.constant 0 : i32
    %c0_i32_0 = arith.constant 0 : i32
    %c0_i32_1 = arith.constant 0 : i32
    return %c0_i32, %c0_i32_0 : i32, i32
  }
  func.func @transform_4(%arg0: i32, %arg1: i32) -> (i32, i32) {
    %c0_i32 = arith.constant 0 : i32
    %c0_i32_0 = arith.constant 0 : i32
    %c0_i32_1 = arith.constant 0 : i32
    return %c0_i32, %c0_i32_0 : i32, i32
  }
  func.func @transform_5(%arg0: i32, %arg1: i32) -> (i32, i32) {
    %c0_i32 = arith.constant 0 : i32
    %c0_i32_0 = arith.constant 0 : i32
    %c0_i32_1 = arith.constant 0 : i32
    return %c0_i32, %c0_i32_0 : i32, i32
  }
  func.func @transform_6(%arg0: i32, %arg1: i32) -> (i32, i32) {
    %c0_i32 = arith.constant 0 : i32
    %c0_i32_0 = arith.constant 0 : i32
    %c0_i32_1 = arith.constant 0 : i32
    return %c0_i32, %c0_i32_0 : i32, i32
  }
  func.func @transform_7(%arg0: i32, %arg1: i32) -> (i32, i32) {
    %c0_i32 = arith.constant 0 : i32
    %c0_i32_0 = arith.constant 0 : i32
    %c0_i32_1 = arith.constant 0 : i32
    return %c0_i32, %c0_i32_0 : i32, i32
  }
  func.func @transform_8(%arg0: i32, %arg1: i32) -> (i32, i32) {
    %c0_i32 = arith.constant 0 : i32
    %c0_i32_0 = arith.constant 0 : i32
    %c0_i32_1 = arith.constant 0 : i32
    return %c0_i32, %c0_i32_0 : i32, i32
  }
  func.func @transform_9(%arg0: i32, %arg1: i32) -> (i32, i32) {
    %c0_i32 = arith.constant 0 : i32
    %c0_i32_0 = arith.constant 0 : i32
    %c0_i32_1 = arith.constant 0 : i32
    return %c0_i32, %c0_i32_0 : i32, i32
  }
  func.func @transform_10(%arg0: i32, %arg1: i32) -> (i32, i32) {
    %c0_i32 = arith.constant 0 : i32
    %c0_i32_0 = arith.constant 0 : i32
    %c0_i32_1 = arith.constant 0 : i32
    return %c0_i32, %c0_i32_0 : i32, i32
  }
  func.func @transform_11(%arg0: i32, %arg1: i32) -> (i32, i32) {
    %c0_i32 = arith.constant 0 : i32
    %c0_i32_0 = arith.constant 0 : i32
    %c0_i32_1 = arith.constant 0 : i32
    return %c0_i32, %c0_i32_0 : i32, i32
  }
  func.func @transform_12(%arg0: i32, %arg1: i32) -> (i32, i32, i32) {
    %c0_i32 = arith.constant 0 : i32
    %c0_i32_0 = arith.constant 0 : i32
    return %arg0, %arg1, %c0_i32 : i32, i32, i32
  }
  func.func @transform_13(%arg0: i32, %arg1: i32) -> (i32, i32, i32, i32) {
    %c0_i32 = arith.constant 0 : i32
    %c0_i32_0 = arith.constant 0 : i32
    %c0_i32_1 = arith.constant 0 : i32
    return %arg0, %c0_i32, %arg1, %c0_i32_0 : i32, i32, i32, i32
  }
  func.func @transform_14(%arg0: i32, %arg1: i32) -> (i32, i32, i32, i32) {
    %c0_i32 = arith.constant 0 : i32
    %c0_i32_0 = arith.constant 0 : i32
    %c0_i32_1 = arith.constant 0 : i32
    return %arg0, %c0_i32, %arg1, %c0_i32_0 : i32, i32, i32, i32
  }
}

</mosaic_0001>

<llo_original>
// kernel: tpu_custom_call.1
$region0: #{tpu_custom_call.1}
  #allocation0 [shape = 'u32[]', space=smem, size = 0x4, offset = 0x4, fixed_abs, tag = 'smem constant byte address 0x4 - core index']
  #allocation1 [shape = 'u32[72,128]{1,0:T(1,128)}', space=vmem, size = 0x9000, scoped, tag = 'internal scratch']
  %s0 = inlined_call_operand.vmem [shape: f32[2,16,32], index: 0, kind: input, shape index: {}]
  %s1 = inlined_call_operand.hbm [shape: f32[2,16,32], index: 1, kind: input, shape index: {}]
  %s2 = inlined_call_operand.vmem [shape: bf16[32,32], index: 2, kind: input, shape index: {}]
  %s3 = inlined_call_operand.hbm [shape: bf16[32,64], index: 3, kind: input, shape index: {}]
  %s4 = inlined_call_operand.hbm [shape: bf16[32,32], index: 4, kind: input, shape index: {}]
  %s5 = inlined_call_operand.hbm [shape: bf16[32,32], index: 5, kind: input, shape index: {}]
  %s6 = inlined_call_operand.hbm [shape: bf16[32,64], index: 6, kind: input, shape index: {}]
  %s7 = inlined_call_operand.hbm [shape: bf16[32,32], index: 7, kind: input, shape index: {}]
  %s8 = inlined_call_operand.hbm [shape: bf16[32,64], index: 8, kind: input, shape index: {}]
  %s9 = inlined_call_operand.vmem [shape: bf16[64,32], index: 9, kind: input, shape index: {}]
  %s10 = inlined_call_operand.vmem [shape: f32[1,64], index: 10, kind: input, shape index: {}]
  %s11 = inlined_call_operand.vmem [shape: f32[8,32], index: 11, kind: input, shape index: {}]
  %s12 = inlined_call_operand.hbm [shape: f32[2,16,32], index: 12, kind: output, shape index: {0}]
  %s13 = inlined_call_operand.hbm [shape: f32[2,4,16,16], index: 13, kind: output, shape index: {1}]
  %s14 = inlined_call_operand.hbm [shape: f32[2,4,16,16], index: 14, kind: output, shape index: {2}]
  %15 = xla_tuple %s12, %s13, %s14
  %s16 = sld [smem:[#allocation0]]
  $region125: #{tpu_custom_call.1} parent=0
    _
  %s18 = ssub.s32 1, %s16
  %s19 = scalar_select 0, %s18, %s16
  $region1: #{tpu_custom_call.1} parent=0
    #allocation2 [shape = 'u8[16384]{0}', space=vmem, size = 0x4000, scoped, tag = 'input window, operand 1']
    #allocation3 [shape = 's32[2]{0}', space=sflag, size = 0x8, scoped, tag = 'scoped memory for tpu_custom_call.1']
    #allocation4 [shape = 's32[2]{0}', space=sflag, size = 0x8, scoped, tag = 'scoped memory for tpu_custom_call.1']
    #allocation5 [shape = 'u8[8192]{0}', space=vmem, size = 0x2000, scoped, tag = 'input window, operand 3, single buffered']
    #allocation6 [shape = 's32[1]{0}', space=sflag, size = 0x4, scoped, tag = 'scoped memory for tpu_custom_call.1']
    #allocation7 [shape = 'u8[8192]{0}', space=vmem, size = 0x2000, scoped, tag = 'input window, operand 4, single buffered']
    #allocation8 [shape = 'u8[8192]{0}', space=vmem, size = 0x2000, scoped, tag = 'input window, operand 5, single buffered']
    #allocation9 [shape = 's32[1]{0}', space=sflag, size = 0x4, scoped, tag = 'scoped memory for tpu_custom_call.1']
    #allocation10 [shape = 'u8[8192]{0}', space=vmem, size = 0x2000, scoped, tag = 'input window, operand 6, single buffered']
    #allocation11 [shape = 'u8[8192]{0}', space=vmem, size = 0x2000, scoped, tag = 'input window, operand 7, single buffered']
    #allocation12 [shape = 's32[1]{0}', space=sflag, size = 0x4, scoped, tag = 'scoped memory for tpu_custom_call.1']
    #allocation13 [shape = 'u8[8192]{0}', space=vmem, size = 0x2000, scoped, tag = 'input window, operand 8, single buffered']
    #allocation14 [shape = 'u8[8192]{0}', space=vmem, size = 0x2000, scoped, tag = 'output window, operand 0']
    #allocation15 [shape = 'u8[32768]{0}', space=vmem, size = 0x8000, scoped, tag = 'output window, operand 1']
    #allocation16 [shape = 's32[2]{0}', space=sflag, size = 0x8, scoped, tag = 'scoped memory for tpu_custom_call.1']
    #allocation17 [shape = 'u8[32768]{0}', space=vmem, size = 0x8000, scoped, tag = 'output window, operand 2']
    %20 = vsyncpa [#allocation3], 0
    %s21 = scalar_lea.sflag [#allocation3], 1
    %22 = vsyncpa %s21, 0
    %23 = vsyncpa [#allocation6], 0
    %24 = vsyncpa [#allocation9], 0
    %25 = vsyncpa [#allocation12], 0
    %26 = vsyncpa [#allocation4], 0
    %s27 = scalar_lea.sflag [#allocation4], 1
    %28 = vsyncpa %s27, 0
    %29 = vsyncpa [#allocation16], 0
    %s30 = scalar_lea.sflag [#allocation16], 1
    %31 = vsyncpa %s30, 0
    loop: start=0, step=1, limit=6
    $region2: #{tpu_custom_call.1} parent=1 // loop_pre_header
      _
    $region3: #{tpu_custom_call.1} parent=1 // loop_header
      %s33 = sphi 0, %s37
      %p34 = scmp.ge.s32.totalorder %s33, 6
      %s40 = sphi 0, %s52
      %s41 = sphi 0, %s48
      %s42 = sphi 0, %s40
      %s43 = sphi 0, %s41
      %s44 = sphi 0, %s42
      %s45 = sphi 0, %s43
      %s55 = sphi 0, %s57
      %s58 = sphi 0, %s55
      %s59 = sphi 0, %s58
      %s75 = sphi 0, %s59
      %s81 = sphi 0, %s83
      %s84 = sphi 0, %s81
      %s85 = sphi 0, %s84
      %s101 = sphi 0, %s85
      %s105 = sphi 0, %s105
      %s107 = sphi 0, %s105
      %s108 = sphi 0, %s107
      %s122 = sphi 0, %s108
      %s126 = sphi 0, %s126
      %s128 = sphi 0, %s126
      %s129 = sphi 0, %s128
      %s143 = sphi 0, %s129
      %s147 = sphi 0, %s147
      %s149 = sphi 0, %s147
      %s150 = sphi 0, %s149
      %s164 = sphi 0, %s150
      %s168 = sphi 0, %s168
      %s170 = sphi 0, %s168
      %s171 = sphi 0, %s170
      %s185 = sphi 0, %s171
      %s189 = sphi 0, %s189
      %s191 = sphi 0, %s189
      %s192 = sphi 0, %s191
      %s206 = sphi 0, %s192
      %s210 = sphi 0, %s210
      %s212 = sphi 0, %s210
      %s213 = sphi 0, %s212
      %s227 = sphi 0, %s213
      %s231 = sphi 0, %s231
      %s233 = sphi 0, %s231
      %s234 = sphi 0, %s233
      %s248 = sphi 0, %s234
      %s252 = sphi 0, %s252
      %s254 = sphi 0, %s252
      %s255 = sphi 0, %s254
      %s269 = sphi 0, %s255
      %s273 = sphi 0, %s273
      %s275 = sphi 0, %s273
      %s276 = sphi 0, %s275
      %s290 = sphi 0, %s276
      %s294 = sphi 0, %s294
      %s296 = sphi 0, %s294
      %s297 = sphi 0, %s296
      %s311 = sphi 0, %s297
      %s319 = sphi 0, %s321
      %s322 = sphi 0, %s319
      %s323 = sphi 0, %s322
      %s339 = sphi 0, %s323
      %s347 = sphi 0, %s349
      %s350 = sphi 0, %s347
      %s351 = sphi 0, %s350
      %s367 = sphi 0, %s351
      %s375 = sphi 0, %s377
      %s378 = sphi 0, %s375
      %s379 = sphi 0, %s378
      %s395 = sphi 0, %s379
    $region4: #{tpu_custom_call.1} parent=1 // loop_header_branch
      %36 = sbr.rel (%p34) target = $region8
    $region5: #{tpu_custom_call.1} parent=1 // loop_body
      %s38 = ssub.s32 %s33, 1
      %s39 = ssub.s32 %s33, 2
      %s46 = sadd.s32 1, %s41
      %p47 = scmp.ge.s32.totalorder %s46, 2
      %s48 = scalar_select %p47, 0, %s46
      %s49 = sadd.s32 1, %s40
      %s50 = scalar_select %p47, %s49, %s40
      %p51 = scmp.ge.s32.totalorder %s50, 2
      %s52 = scalar_select %p51, 0, %s50
      %s53 = ssub.s32 %s40, %s52
      %p54 = scmp.eq.s32.totalorder %s53, 0
      %s56 = sadd.s32 %s55, 1
      %s57 = scalar_select %p54, %s55, %s56
      %p60 = pneg %p54
      %p61 = scmp.eq.s32.totalorder %s33, 3
      %p62 = por %p60, %p61
      %p63 = scmp.ne.s32.totalorder %s55, %s58
      %p64 = scmp.eq.s32.totalorder %s33, 0
      %p65 = por %p63, %p64
      %p66 = scmp.ne.s32.totalorder %s55, %s58
      %p67 = scmp.eq.s32.totalorder %s38, 3
      %p68 = por %p66, %p67
      %p69 = scmp.ne.s32.totalorder %s58, %s59
      %p70 = scmp.eq.s32.totalorder %s38, 0
      %p71 = por %p69, %p70
      %p72 = scmp.ne.s32.totalorder %s58, %s59
      %p73 = scmp.eq.s32.totalorder %s39, 3
      %p74 = por %p72, %p73
      %p76 = scmp.ne.s32.totalorder %s59, %s75
      %p77 = scmp.eq.s32.totalorder %s39, 0
      %p78 = por %p76, %p77
      %s79 = ssub.s32 %s40, %s52
      %p80 = scmp.eq.s32.totalorder %s79, 0
      %s82 = sadd.s32 %s81, 1
      %s83 = scalar_select %p80, %s81, %s82
      %p86 = pneg %p80
      %p87 = scmp.eq.s32.totalorder %s33, 3
      %p88 = por %p86, %p87
      %p89 = scmp.ne.s32.totalorder %s81, %s84
      %p90 = scmp.eq.s32.totalorder %s33, 0
      %p91 = por %p89, %p90
      %p92 = scmp.ne.s32.totalorder %s81, %s84
      %p93 = scmp.eq.s32.totalorder %s38, 3
      %p94 = por %p92, %p93
      %p95 = scmp.ne.s32.totalorder %s84, %s85
      %p96 = scmp.eq.s32.totalorder %s38, 0
      %p97 = por %p95, %p96
      %p98 = scmp.ne.s32.totalorder %s84, %s85
      %p99 = scmp.eq.s32.totalorder %s39, 3
      %p100 = por %p98, %p99
      %p102 = scmp.ne.s32.totalorder %s85, %s101
      %p103 = scmp.eq.s32.totalorder %s39, 0
      %p104 = por %p102, %p103
      %s106 = sadd.s32 %s105, 1
      %p109 = scmp.eq.s32.totalorder %s33, 3
      %p110 = scmp.ne.s32.totalorder %s105, %s107
      %p111 = scmp.eq.s32.totalorder %s33, 0
      %p112 = por %p110, %p111
      %p113 = scmp.ne.s32.totalorder %s105, %s107
      %p114 = scmp.eq.s32.totalorder %s38, 3
      %p115 = por %p113, %p114
      %p116 = scmp.ne.s32.totalorder %s107, %s108
      %p117 = scmp.eq.s32.totalorder %s38, 0
      %p118 = por %p116, %p117
      %p119 = scmp.ne.s32.totalorder %s107, %s108
      %p120 = scmp.eq.s32.totalorder %s39, 3
      %p121 = por %p119, %p120
      %p123 = scmp.ne.s32.totalorder %s108, %s122
      %p124 = scmp.eq.s32.totalorder %s39, 0
      %p125 = por %p123, %p124
      %s127 = sadd.s32 %s126, 1
      %p130 = scmp.eq.s32.totalorder %s33, 3
      %p131 = scmp.ne.s32.totalorder %s126, %s128
      %p132 = scmp.eq.s32.totalorder %s33, 0
      %p133 = por %p131, %p132
      %p134 = scmp.ne.s32.totalorder %s126, %s128
      %p135 = scmp.eq.s32.totalorder %s38, 3
      %p136 = por %p134, %p135
      %p137 = scmp.ne.s32.totalorder %s128, %s129
      %p138 = scmp.eq.s32.totalorder %s38, 0
      %p139 = por %p137, %p138
      %p140 = scmp.ne.s32.totalorder %s128, %s129
      %p141 = scmp.eq.s32.totalorder %s39, 3
      %p142 = por %p140, %p141
      %p144 = scmp.ne.s32.totalorder %s129, %s143
      %p145 = scmp.eq.s32.totalorder %s39, 0
      %p146 = por %p144, %p145
      %s148 = sadd.s32 %s147, 1
      %p151 = scmp.eq.s32.totalorder %s33, 3
      %p152 = scmp.ne.s32.totalorder %s147, %s149
      %p153 = scmp.eq.s32.totalorder %s33, 0
      %p154 = por %p152, %p153
      %p155 = scmp.ne.s32.totalorder %s147, %s149
      %p156 = scmp.eq.s32.totalorder %s38, 3
      %p157 = por %p155, %p156
      %p158 = scmp.ne.s32.totalorder %s149, %s150
      %p159 = scmp.eq.s32.totalorder %s38, 0
      %p160 = por %p158, %p159
      %p161 = scmp.ne.s32.totalorder %s149, %s150
      %p162 = scmp.eq.s32.totalorder %s39, 3
      %p163 = por %p161, %p162
      %p165 = scmp.ne.s32.totalorder %s150, %s164
      %p166 = scmp.eq.s32.totalorder %s39, 0
      %p167 = por %p165, %p166
      %s169 = sadd.s32 %s168, 1
      %p172 = scmp.eq.s32.totalorder %s33, 3
      %p173 = scmp.ne.s32.totalorder %s168, %s170
      %p174 = scmp.eq.s32.totalorder %s33, 0
      %p175 = por %p173, %p174
      %p176 = scmp.ne.s32.totalorder %s168, %s170
      %p177 = scmp.eq.s32.totalorder %s38, 3
      %p178 = por %p176, %p177
      %p179 = scmp.ne.s32.totalorder %s170, %s171
      %p180 = scmp.eq.s32.totalorder %s38, 0
      %p181 = por %p179, %p180
      %p182 = scmp.ne.s32.totalorder %s170, %s171
      %p183 = scmp.eq.s32.totalorder %s39, 3
      %p184 = por %p182, %p183
      %p186 = scmp.ne.s32.totalorder %s171, %s185
      %p187 = scmp.eq.s32.totalorder %s39, 0
      %p188 = por %p186, %p187
      %s190 = sadd.s32 %s189, 1
      %p193 = scmp.eq.s32.totalorder %s33, 3
      %p194 = scmp.ne.s32.totalorder %s189, %s191
      %p195 = scmp.eq.s32.totalorder %s33, 0
      %p196 = por %p194, %p195
      %p197 = scmp.ne.s32.totalorder %s189, %s191
      %p198 = scmp.eq.s32.totalorder %s38, 3
      %p199 = por %p197, %p198
      %p200 = scmp.ne.s32.totalorder %s191, %s192
      %p201 = scmp.eq.s32.totalorder %s38, 0
      %p202 = por %p200, %p201
      %p203 = scmp.ne.s32.totalorder %s191, %s192
      %p204 = scmp.eq.s32.totalorder %s39, 3
      %p205 = por %p203, %p204
      %p207 = scmp.ne.s32.totalorder %s192, %s206
      %p208 = scmp.eq.s32.totalorder %s39, 0
      %p209 = por %p207, %p208
      %s211 = sadd.s32 %s210, 1
      %p214 = scmp.eq.s32.totalorder %s33, 3
      %p215 = scmp.ne.s32.totalorder %s210, %s212
      %p216 = scmp.eq.s32.totalorder %s33, 0
      %p217 = por %p215, %p216
      %p218 = scmp.ne.s32.totalorder %s210, %s212
      %p219 = scmp.eq.s32.totalorder %s38, 3
      %p220 = por %p218, %p219
      %p221 = scmp.ne.s32.totalorder %s212, %s213
      %p222 = scmp.eq.s32.totalorder %s38, 0
      %p223 = por %p221, %p222
      %p224 = scmp.ne.s32.totalorder %s212, %s213
      %p225 = scmp.eq.s32.totalorder %s39, 3
      %p226 = por %p224, %p225
      %p228 = scmp.ne.s32.totalorder %s213, %s227
      %p229 = scmp.eq.s32.totalorder %s39, 0
      %p230 = por %p228, %p229
      %s232 = sadd.s32 %s231, 1
      %p235 = scmp.eq.s32.totalorder %s33, 3
      %p236 = scmp.ne.s32.totalorder %s231, %s233
      %p237 = scmp.eq.s32.totalorder %s33, 0
      %p238 = por %p236, %p237
      %p239 = scmp.ne.s32.totalorder %s231, %s233
      %p240 = scmp.eq.s32.totalorder %s38, 3
      %p241 = por %p239, %p240
      %p242 = scmp.ne.s32.totalorder %s233, %s234
      %p243 = scmp.eq.s32.totalorder %s38, 0
      %p244 = por %p242, %p243
      %p245 = scmp.ne.s32.totalorder %s233, %s234
      %p246 = scmp.eq.s32.totalorder %s39, 3
      %p247 = por %p245, %p246
      %p249 = scmp.ne.s32.totalorder %s234, %s248
      %p250 = scmp.eq.s32.totalorder %s39, 0
      %p251 = por %p249, %p250
      %s253 = sadd.s32 %s252, 1
      %p256 = scmp.eq.s32.totalorder %s33, 3
      %p257 = scmp.ne.s32.totalorder %s252, %s254
      %p258 = scmp.eq.s32.totalorder %s33, 0
      %p259 = por %p257, %p258
      %p260 = scmp.ne.s32.totalorder %s252, %s254
      %p261 = scmp.eq.s32.totalorder %s38, 3
      %p262 = por %p260, %p261
      %p263 = scmp.ne.s32.totalorder %s254, %s255
      %p264 = scmp.eq.s32.totalorder %s38, 0
      %p265 = por %p263, %p264
      %p266 = scmp.ne.s32.totalorder %s254, %s255
      %p267 = scmp.eq.s32.totalorder %s39, 3
      %p268 = por %p266, %p267
      %p270 = scmp.ne.s32.totalorder %s255, %s269
      %p271 = scmp.eq.s32.totalorder %s39, 0
      %p272 = por %p270, %p271
      %s274 = sadd.s32 %s273, 1
      %p277 = scmp.eq.s32.totalorder %s33, 3
      %p278 = scmp.ne.s32.totalorder %s273, %s275
      %p279 = scmp.eq.s32.totalorder %s33, 0
      %p280 = por %p278, %p279
      %p281 = scmp.ne.s32.totalorder %s273, %s275
      %p282 = scmp.eq.s32.totalorder %s38, 3
      %p283 = por %p281, %p282
      %p284 = scmp.ne.s32.totalorder %s275, %s276
      %p285 = scmp.eq.s32.totalorder %s38, 0
      %p286 = por %p284, %p285
      %p287 = scmp.ne.s32.totalorder %s275, %s276
      %p288 = scmp.eq.s32.totalorder %s39, 3
      %p289 = por %p287, %p288
      %p291 = scmp.ne.s32.totalorder %s276, %s290
      %p292 = scmp.eq.s32.totalorder %s39, 0
      %p293 = por %p291, %p292
      %s295 = sadd.s32 %s294, 1
      %p298 = scmp.eq.s32.totalorder %s33, 3
      %p299 = scmp.ne.s32.totalorder %s294, %s296
      %p300 = scmp.eq.s32.totalorder %s33, 0
      %p301 = por %p299, %p300
      %p302 = scmp.ne.s32.totalorder %s294, %s296
      %p303 = scmp.eq.s32.totalorder %s38, 3
      %p304 = por %p302, %p303
      %p305 = scmp.ne.s32.totalorder %s296, %s297
      %p306 = scmp.eq.s32.totalorder %s38, 0
      %p307 = por %p305, %p306
      %p308 = scmp.ne.s32.totalorder %s296, %s297
      %p309 = scmp.eq.s32.totalorder %s39, 3
      %p310 = por %p308, %p309
      %p312 = scmp.ne.s32.totalorder %s297, %s311
      %p313 = scmp.eq.s32.totalorder %s39, 0
      %p314 = por %p312, %p313
      %s315 = ssub.s32 %s40, %s52
      %s316 = ssub.s32 %s41, %s48
      %s317 = sor.u32 %s315, %s316
      %p318 = scmp.eq.s32.totalorder %s317, 0
      %s320 = sadd.s32 %s319, 1
      %s321 = scalar_select %p318, %s319, %s320
      %p324 = pneg %p318
      %p325 = scmp.eq.s32.totalorder %s33, 3
      %p326 = por %p324, %p325
      %p327 = scmp.ne.s32.totalorder %s319, %s322
      %p328 = scmp.eq.s32.totalorder %s33, 0
      %p329 = por %p327, %p328
      %p330 = scmp.ne.s32.totalorder %s319, %s322
      %p331 = scmp.eq.s32.totalorder %s38, 3
      %p332 = por %p330, %p331
      %p333 = scmp.ne.s32.totalorder %s322, %s323
      %p334 = scmp.eq.s32.totalorder %s38, 0
      %p335 = por %p333, %p334
      %p336 = scmp.ne.s32.totalorder %s322, %s323
      %p337 = scmp.eq.s32.totalorder %s39, 3
      %p338 = por %p336, %p337
      %p340 = scmp.ne.s32.totalorder %s323, %s339
      %p341 = scmp.eq.s32.totalorder %s39, 0
      %p342 = por %p340, %p341
      %s343 = ssub.s32 %s40, %s52
      %s344 = ssub.s32 %s41, %s48
      %s345 = sor.u32 %s343, %s344
      %p346 = scmp.eq.s32.totalorder %s345, 0
      %s348 = sadd.s32 %s347, 1
      %s349 = scalar_select %p346, %s347, %s348
      %p352 = pneg %p346
      %p353 = scmp.eq.s32.totalorder %s33, 3
      %p354 = por %p352, %p353
      %p355 = scmp.ne.s32.totalorder %s347, %s350
      %p356 = scmp.eq.s32.totalorder %s33, 0
      %p357 = por %p355, %p356
      %p358 = scmp.ne.s32.totalorder %s347, %s350
      %p359 = scmp.eq.s32.totalorder %s38, 3
      %p360 = por %p358, %p359
      %p361 = scmp.ne.s32.totalorder %s350, %s351
      %p362 = scmp.eq.s32.totalorder %s38, 0
      %p363 = por %p361, %p362
      %p364 = scmp.ne.s32.totalorder %s350, %s351
      %p365 = scmp.eq.s32.totalorder %s39, 3
      %p366 = por %p364, %p365
      %p368 = scmp.ne.s32.totalorder %s351, %s367
      %p369 = scmp.eq.s32.totalorder %s39, 0
      %p370 = por %p368, %p369
      %s371 = ssub.s32 %s40, %s52
      %s372 = ssub.s32 %s41, %s48
      %s373 = sor.u32 %s371, %s372
      %p374 = scmp.eq.s32.totalorder %s373, 0
      %s376 = sadd.s32 %s375, 1
      %s377 = scalar_select %p374, %s375, %s376
      %p380 = pneg %p374
      %p381 = scmp.eq.s32.totalorder %s33, 3
      %p382 = por %p380, %p381
      %p383 = scmp.ne.s32.totalorder %s375, %s378
      %p384 = scmp.eq.s32.totalorder %s33, 0
      %p385 = por %p383, %p384
      %p386 = scmp.ne.s32.totalorder %s375, %s378
      %p387 = scmp.eq.s32.totalorder %s38, 3
      %p388 = por %p386, %p387
      %p389 = scmp.ne.s32.totalorder %s378, %s379
      %p390 = scmp.eq.s32.totalorder %s38, 0
      %p391 = por %p389, %p390
      %p392 = scmp.ne.s32.totalorder %s378, %s379
      %p393 = scmp.eq.s32.totalorder %s39, 3
      %p394 = por %p392, %p393
      %p396 = scmp.ne.s32.totalorder %s379, %s395
      %p397 = scmp.eq.s32.totalorder %s39, 0
      %p398 = por %p396, %p397
      %p399 = scmp.le.s32.totalorder 1, %s33
      %p400 = scmp.lt.s32.totalorder %s33, 5
      %p401 = pnand %p399, %p400
      %p402 = pneg %p401
      // Predicated region
      $region9: #{tpu_custom_call.1} parent=5 // pred_check
        _
      $region10: #{tpu_custom_call.1} parent=5 // pred_check_branch
        %404 = sbr.rel (%p401) target = $region12
      $region11: #{tpu_custom_call.1} parent=5 // pred_region
        %s405 = ssub.s32 %s33, 1
        // Predicated region
        $region13: #{tpu_custom_call.1} parent=11 // pred_check
          %p406 = pneg %p118
        $region14: #{tpu_custom_call.1} parent=11 // pred_check_branch
          %408 = sbr.rel (%p406) target = $region16
        $region15: #{tpu_custom_call.1} parent=11 // pred_region
          _
        $region16: #{tpu_custom_call.1} parent=11 // pred_fallthru
          _
        // Predicated region
        $region17: #{tpu_custom_call.1} parent=11 // pred_check
          %p409 = pneg %p139
        $region18: #{tpu_custom_call.1} parent=11 // pred_check_branch
          %411 = sbr.rel (%p409) target = $region20
        $region19: #{tpu_custom_call.1} parent=11 // pred_region
          %413 = vsyncadd [#allocation6], 0
          %s414 = sshll.u32 %s3, 4
          %s415 = int_to_ptr.hbm [resolvable:$true] %s414
          %s416 = sshll.u32 [#allocation5], 4
          %s417 = int_to_ptr.vmem [resolvable:$true] %s416
          %422 = dma.hbm_to_vmem [thread:$0]  %s415, 256, %s417, [#allocation6], 64, 64, 4
        $region20: #{tpu_custom_call.1} parent=11 // pred_fallthru
          _
        // Predicated region
        $region21: #{tpu_custom_call.1} parent=11 // pred_check
          %p423 = pneg %p160
        $region22: #{tpu_custom_call.1} parent=11 // pred_check_branch
          %425 = sbr.rel (%p423) target = $region24
        $region23: #{tpu_custom_call.1} parent=11 // pred_region
          %427 = vsyncadd [#allocation6], 0
          %s428 = sshll.u32 %s4, 4
          %s429 = int_to_ptr.hbm [resolvable:$true] %s428
          %s430 = sshll.u32 [#allocation7], 4
          %s431 = int_to_ptr.vmem [resolvable:$true] %s430
          %436 = dma.hbm_to_vmem [thread:$0]  %s429, 256, %s431, [#allocation6], 64, 64, 4
        $region24: #{tpu_custom_call.1} parent=11 // pred_fallthru
          _
        // Predicated region
        $region25: #{tpu_custom_call.1} parent=11 // pred_check
          %p437 = pneg %p181
        $region26: #{tpu_custom_call.1} parent=11 // pred_check_branch
          %439 = sbr.rel (%p437) target = $region28
        $region27: #{tpu_custom_call.1} parent=11 // pred_region
          %441 = vsyncadd [#allocation9], 0
          %s442 = sshll.u32 %s5, 4
          %s443 = int_to_ptr.hbm [resolvable:$true] %s442
          %s444 = sshll.u32 [#allocation8], 4
          %s445 = int_to_ptr.vmem [resolvable:$true] %s444
          %450 = dma.hbm_to_vmem [thread:$0]  %s443, 256, %s445, [#allocation9], 64, 64, 4
        $region28: #{tpu_custom_call.1} parent=11 // pred_fallthru
          _
        // Predicated region
        $region29: #{tpu_custom_call.1} parent=11 // pred_check
          %p451 = pneg %p202
        $region30: #{tpu_custom_call.1} parent=11 // pred_check_branch
          %453 = sbr.rel (%p451) target = $region32
        $region31: #{tpu_custom_call.1} parent=11 // pred_region
          %455 = vsyncadd [#allocation9], 0
          %s456 = sshll.u32 %s6, 4
          %s457 = int_to_ptr.hbm [resolvable:$true] %s456
          %s458 = sshll.u32 [#allocation10], 4
          %s459 = int_to_ptr.vmem [resolvable:$true] %s458
          %464 = dma.hbm_to_vmem [thread:$0]  %s457, 256, %s459, [#allocation9], 64, 64, 4
        $region32: #{tpu_custom_call.1} parent=11 // pred_fallthru
          _
        // Predicated region
        $region33: #{tpu_custom_call.1} parent=11 // pred_check
          %p465 = pneg %p223
        $region34: #{tpu_custom_call.1} parent=11 // pred_check_branch
          %467 = sbr.rel (%p465) target = $region36
        $region35: #{tpu_custom_call.1} parent=11 // pred_region
          %469 = vsyncadd [#allocation12], 0
          %s470 = sshll.u32 %s7, 4
          %s471 = int_to_ptr.hbm [resolvable:$true] %s470
          %s472 = sshll.u32 [#allocation11], 4
          %s473 = int_to_ptr.vmem [resolvable:$true] %s472
          %478 = dma.hbm_to_vmem [thread:$0]  %s471, 256, %s473, [#allocation12], 64, 64, 4
        $region36: #{tpu_custom_call.1} parent=11 // pred_fallthru
          _
        // Predicated region
        $region37: #{tpu_custom_call.1} parent=11 // pred_check
          %p479 = pneg %p244
        $region38: #{tpu_custom_call.1} parent=11 // pred_check_branch
          %481 = sbr.rel (%p479) target = $region40
        $region39: #{tpu_custom_call.1} parent=11 // pred_region
          %483 = vsyncadd [#allocation12], 0
          %s484 = sshll.u32 %s8, 4
          %s485 = int_to_ptr.hbm [resolvable:$true] %s484
          %s486 = sshll.u32 [#allocation13], 4
          %s487 = int_to_ptr.vmem [resolvable:$true] %s486
          %492 = dma.hbm_to_vmem [thread:$0]  %s485, 256, %s487, [#allocation12], 64, 64, 4
        $region40: #{tpu_custom_call.1} parent=11 // pred_fallthru
          _
        // Predicated region
        $region41: #{tpu_custom_call.1} parent=11 // pred_check
          %p493 = pneg %p265
        $region42: #{tpu_custom_call.1} parent=11 // pred_check_branch
          %495 = sbr.rel (%p493) target = $region44
        $region43: #{tpu_custom_call.1} parent=11 // pred_region
          _
        $region44: #{tpu_custom_call.1} parent=11 // pred_fallthru
          _
        // Predicated region
        $region45: #{tpu_custom_call.1} parent=11 // pred_check
          %p496 = pneg %p286
        $region46: #{tpu_custom_call.1} parent=11 // pred_check_branch
          %498 = sbr.rel (%p496) target = $region48
        $region47: #{tpu_custom_call.1} parent=11 // pred_region
          _
        $region48: #{tpu_custom_call.1} parent=11 // pred_fallthru
          _
        // Predicated region
        $region49: #{tpu_custom_call.1} parent=11 // pred_check
          %p499 = pneg %p307
        $region50: #{tpu_custom_call.1} parent=11 // pred_check_branch
          %501 = sbr.rel (%p499) target = $region52
        $region51: #{tpu_custom_call.1} parent=11 // pred_region
          _
        $region52: #{tpu_custom_call.1} parent=11 // pred_fallthru
          _
      $region12: #{tpu_custom_call.1} parent=5 // pred_fallthru
        _
      %p502 = scmp.lt.s32.totalorder %s33, 4
      // Predicated region
      $region53: #{tpu_custom_call.1} parent=5 // pred_check
        %p503 = pneg %p502
      $region54: #{tpu_custom_call.1} parent=5 // pred_check_branch
        %505 = sbr.rel (%p503) target = $region56
      $region55: #{tpu_custom_call.1} parent=5 // pred_region
        // Predicated region
        $region57: #{tpu_custom_call.1} parent=55 // pred_check
          %p506 = pneg %p65
        $region58: #{tpu_custom_call.1} parent=55 // pred_check_branch
          %508 = sbr.rel (%p506) target = $region60
        $region59: #{tpu_custom_call.1} parent=55 // pred_region
          %p509 = scmp.lt.s32.totalorder %s40, 1
          %s510 = scalar_select %p509, %s40, 1
          %s511 = smul.addr %s510, 2
          %s512 = smul.addr %s511, 8
          %s513 = scalar_lea.vmem %s0, %s512
        $region60: #{tpu_custom_call.1} parent=55 // pred_fallthru
          _
        // Predicated region
        $region61: #{tpu_custom_call.1} parent=55 // pred_check
          %p514 = pneg %p91
        $region62: #{tpu_custom_call.1} parent=55 // pred_check_branch
          %516 = sbr.rel (%p514) target = $region64
        $region63: #{tpu_custom_call.1} parent=55 // pred_region
          %s517 = sand.u32 %s81, 1
          %s518 = scalar_lea.sflag [#allocation3], %s517
          %s519 = sand.u32 %s81, 1
          %s520 = smul.addr %s519, 16
          %s521 = scalar_lea.vmem [#allocation2], %s520
          %523 = vsyncadd %s518, 0
          %s524 = smul.addr %s40, 2
          %s525 = smul.addr %s524, 8
          %s526 = scalar_lea.hbm %s1, %s525
          %s527 = sshll.u32 %s526, 4
          %s528 = int_to_ptr.hbm [resolvable:$true] %s527
          %s529 = sshll.u32 %s521, 4
          %s530 = int_to_ptr.vmem [resolvable:$true] %s529
          %535 = dma.hbm_to_vmem [thread:$0]  %s528, 256, %s530, %s518, 128, 128, 8
        $region64: #{tpu_custom_call.1} parent=55 // pred_fallthru
          _
      $region56: #{tpu_custom_call.1} parent=5 // pred_fallthru
        _
      %p536 = scmp.le.s32.totalorder 1, %s33
      %p537 = scmp.lt.s32.totalorder %s33, 5
      %p538 = pnand %p536, %p537
      %p539 = pneg %p538
      // Predicated region
      $region65: #{tpu_custom_call.1} parent=5 // pred_check
        _
      $region66: #{tpu_custom_call.1} parent=5 // pred_check_branch
        %541 = sbr.rel (%p538) target = $region68
      $region67: #{tpu_custom_call.1} parent=5 // pred_region
        %s542 = ssub.s32 %s33, 1
        %s543 = sand.u32 %s84, 1
        %s544 = scalar_lea.sflag [#allocation3], %s543
        %s545 = sand.u32 %s84, 1
        %s546 = smul.addr %s545, 16
        %s547 = scalar_lea.vmem [#allocation2], %s546
        // Predicated region
        $region69: #{tpu_custom_call.1} parent=67 // pred_check
          %p548 = pneg %p97
        $region70: #{tpu_custom_call.1} parent=67 // pred_check_branch
          %550 = sbr.rel (%p548) target = $region72
        $region71: #{tpu_custom_call.1} parent=67 // pred_region
          %552 = dma.done %s544, 256
        $region72: #{tpu_custom_call.1} parent=67 // pred_fallthru
          _
        // Predicated region
        $region73: #{tpu_custom_call.1} parent=67 // pred_check
          %p553 = pneg %p139
        $region74: #{tpu_custom_call.1} parent=67 // pred_check_branch
          %555 = sbr.rel (%p553) target = $region76
        $region75: #{tpu_custom_call.1} parent=67 // pred_region
          %557 = dma.done [#allocation6], 256
        $region76: #{tpu_custom_call.1} parent=67 // pred_fallthru
          _
        // Predicated region
        $region77: #{tpu_custom_call.1} parent=67 // pred_check
          %p558 = pneg %p160
        $region78: #{tpu_custom_call.1} parent=67 // pred_check_branch
          %560 = sbr.rel (%p558) target = $region80
        $region79: #{tpu_custom_call.1} parent=67 // pred_region
          %562 = dma.done [#allocation6], 256
        $region80: #{tpu_custom_call.1} parent=67 // pred_fallthru
          _
        // Predicated region
        $region81: #{tpu_custom_call.1} parent=67 // pred_check
          %p563 = pneg %p181
        $region82: #{tpu_custom_call.1} parent=67 // pred_check_branch
          %565 = sbr.rel (%p563) target = $region84
        $region83: #{tpu_custom_call.1} parent=67 // pred_region
          %567 = dma.done [#allocation9], 256
        $region84: #{tpu_custom_call.1} parent=67 // pred_fallthru
          _
        // Predicated region
        $region85: #{tpu_custom_call.1} parent=67 // pred_check
          %p568 = pneg %p202
        $region86: #{tpu_custom_call.1} parent=67 // pred_check_branch
          %570 = sbr.rel (%p568) target = $region88
        $region87: #{tpu_custom_call.1} parent=67 // pred_region
          %572 = dma.done [#allocation9], 256
        $region88: #{tpu_custom_call.1} parent=67 // pred_fallthru
          _
        // Predicated region
        $region89: #{tpu_custom_call.1} parent=67 // pred_check
          %p573 = pneg %p223
        $region90: #{tpu_custom_call.1} parent=67 // pred_check_branch
          %575 = sbr.rel (%p573) target = $region92
        $region91: #{tpu_custom_call.1} parent=67 // pred_region
          %577 = dma.done [#allocation12], 256
        $region92: #{tpu_custom_call.1} parent=67 // pred_fallthru
          _
        // Predicated region
        $region93: #{tpu_custom_call.1} parent=67 // pred_check
          %p578 = pneg %p244
        $region94: #{tpu_custom_call.1} parent=67 // pred_check_branch
          %580 = sbr.rel (%p578) target = $region96
        $region95: #{tpu_custom_call.1} parent=67 // pred_region
          %582 = dma.done [#allocation12], 256
        $region96: #{tpu_custom_call.1} parent=67 // pred_fallthru
          _
        %p583 = scmp.lt.s32.totalorder %s42, 1
        %s584 = scalar_select %p583, %s42, 1
        %s585 = smul.addr %s584, 2
        %s586 = smul.addr %s585, 8
        %s587 = scalar_lea.vmem %s0, %s586
        %p588 = pneg %p71
        %p589 = pneg %p68
        %s590 = sand.u32 %s84, 1
        %s591 = scalar_lea.sflag [#allocation3], %s590
        %s592 = sand.u32 %s84, 1
        %s593 = smul.addr %s592, 16
        %s594 = scalar_lea.vmem [#allocation2], %s593
        %p595 = pneg %p97
        %p596 = pneg %p94
        %p597 = pneg %p118
        %p598 = pneg %p115
        %p599 = pneg %p139
        %p600 = pneg %p136
        %p601 = pneg %p160
        %p602 = pneg %p157
        %p603 = pneg %p181
        %p604 = pneg %p178
        %p605 = pneg %p202
        %p606 = pneg %p199
        %p607 = pneg %p223
        %p608 = pneg %p220
        %p609 = pneg %p244
        %p610 = pneg %p241
        %p611 = pneg %p265
        %p612 = pneg %p262
        %p613 = pneg %p286
        %p614 = pneg %p283
        %p615 = pneg %p307
        %p616 = pneg %p304
        %p617 = pneg %p335
        %p618 = pneg %p332
        %s619 = sand.u32 %s322, 1
        %s620 = scalar_lea.sflag [#allocation4], %s619
        %s621 = sand.u32 %s322, 1
        %s622 = smul.addr %s621, 8
        %s623 = scalar_lea.vmem [#allocation14], %s622
        %p624 = pneg %p363
        %p625 = pneg %p360
        %s626 = sand.u32 %s38, 1
        %s627 = scalar_lea.sflag [#allocation16], %s626
        %s628 = sand.u32 %s350, 1
        %s629 = smul.addr %s628, 32
        %s630 = scalar_lea.vmem [#allocation15], %s629
        %p631 = pneg %p391
        %p632 = pneg %p388
        %s633 = sand.u32 %s38, 1
        %s634 = scalar_lea.sflag [#allocation16], %s633
        %s635 = sand.u32 %s378, 1
        %s636 = smul.addr %s635, 32
        %s637 = scalar_lea.vmem [#allocation17], %s636
        %p638 = scmp.lt.s32.totalorder %s42, 1
        %s639 = scalar_select %p638, %s42, 1
        %s640 = smul.addr %s639, 2
        %s641 = smul.addr %s640, 8
        %s642 = scalar_lea.vmem %s0, %s641
        %s644 = smul.u32 %s43, 8
        %s645 = scalar_lea.vmem %s642, %s644
        %v646 = vld [vmem:[%s645] sm:$0xff]
        %v647 = vld [vmem:[%s642] sm:$0xff]
        %v648 = vld [vmem:[%s642 + $0x8] sm:$0xff]
        %v649 = vld [vmem:[%s547] sm:$0xff]
        %v650 = vld [vmem:[%s547 + $0x8] sm:$0xff]
        %v651 = vld [vmem:[%s11] sm:$0xff]
        %v652 = vld [vmem:[%s2] sm:$0xf]
        %v653 = vld [vmem:[%s2 + $0x4] sm:$0xf]
        %v654 = vld [vmem:[%s2 + $0x8] sm:$0xf]
        %v655 = vld [vmem:[%s2 + $0xc] sm:$0xf]
        %v656 = vld [vmem:[#allocation5] sm:$0xf]
        %v657 = vld [vmem:[#allocation5 + $0x4] sm:$0xf]
        %v658 = vld [vmem:[#allocation5 + $0x8] sm:$0xf]
        %v659 = vld [vmem:[#allocation5 + $0xc] sm:$0xf]
        %v660 = vld [vmem:[#allocation7] sm:$0xf]
        %v661 = vld [vmem:[#allocation7 + $0x4] sm:$0xf]
        %v662 = vld [vmem:[#allocation7 + $0x8] sm:$0xf]
        %v663 = vld [vmem:[#allocation7 + $0xc] sm:$0xf]
        %v664 = vpack.c.bf16 %v646, %v646
        %v669 = vunpack.c.l.b16 %v652
        %v670 = vunpack.c.l.b16 %v653
        %v671 = vunpack.c.l.b16 %v654
        %v672 = vunpack.c.l.b16 %v655
        %v673 = vpack.c.b16 %v670, %v669
        %v674 = vpack.c.b16 %v672, %v671
        %vm677 = vcmask 261120
        %v679 = vsel %vm677, %v664, 0
        %681 = vmatpush.bf16.msra.mxu0 0
        %682 = vmatpush.bf16.msra.mxu0 0
        %683 = vmatpush.bf16.msra.mxu0 0
        %684 = vmatpush.bf16.msra.mxu0 0
        %685 = vmatpush.bf16.msra.mxu0 0
        %686 = vmatpush.bf16.msra.mxu0 0
        %687 = vmatpush.bf16.msra.mxu0 %v674
        %688 = vmatpush.bf16.msra.mxu0 %v673
        %689 = vmatmul.bf16.gmra.mxu0 %v679
        %v690 = vpop.f32.mrf.mxu0
        %v691 = vadd.f32 0.0, %v690
        %v692 = vpop.f32.mrf.mxu0
        %693 = vdwg.mxu0
        %v694 = vmul.f32 %v691, 0.35355338
        %v695 = vpack.c.bf16 %v648, %v647
        %v700 = vunpack.c.l.b16 %v656
        %v701 = vunpack.c.l.b16 %v657
        %v702 = vunpack.c.l.b16 %v658
        %v703 = vunpack.c.l.b16 %v659
        %v704 = vpack.c.b16 %v701, %v700
        %v705 = vpack.c.b16 %v703, %v702
        %v709 = vsel %vm677, %v695, 0
        %711 = vmatpush.bf16.msra.mxu0 0
        %712 = vmatpush.bf16.msra.mxu0 0
        %713 = vmatpush.bf16.msra.mxu0 0
        %714 = vmatpush.bf16.msra.mxu0 0
        %715 = vmatpush.bf16.msra.mxu0 0
        %716 = vmatpush.bf16.msra.mxu0 0
        %717 = vmatpush.bf16.msra.mxu0 %v705
        %718 = vmatpush.bf16.msra.mxu0 %v704
        %719 = vmatmul.bf16.gmra.mxu0 %v709
        %v720 = vpop.f32.mrf.mxu0
        %v721 = vadd.f32 0.0, %v720
        %v722 = vpop.f32.mrf.mxu0
        %v723 = vadd.f32 0.0, %v722
        %724 = vdwg.mxu0
        %v725 = vpack.c.bf16 %v694, %v694
        %v726 = vpack.c.bf16 %v721, %v721
        %v727 = vpack.c.bf16 %v723, %v723
        %v730 = vunpack.c.l.b16 %v726
        %v731 = vunpack.c.l.b16 %v727
        %v732 = vpack.c.b16 %v731, %v730
        %vm733 = vcmask 64512
        %v735 = vsel %vm733, %v725, 0
        %v738 = vsel %vm733, %v732, 0
        %740 = vmatpush.bf16.xpose.msra.mxu0 0
        %741 = vmatpush.bf16.xpose.msra.mxu0 0
        %742 = vmatpush.bf16.xpose.msra.mxu0 0
        %743 = vmatpush.bf16.xpose.msra.mxu0 0
        %744 = vmatpush.bf16.xpose.msra.mxu0 0
        %745 = vmatpush.bf16.xpose.msra.mxu0 0
        %746 = vmatpush.bf16.xpose.msra.mxu0 0
        %747 = vmatpush.bf16.xpose.msra.mxu0 %v738
        %748 = vmatmul.bf16.gmra.mxu0 %v735
        %v749 = vpop.f32.mrf.mxu0
        %v750 = vadd.f32 0.0, %v749
        %v751 = vpop.f32.mrf.mxu0
        %752 = vdwg.mxu0
        %vm753 = vcmask 130048
        %v754 = vsel %vm753, %v750, -inf
        %755 = vmax.xlane.f32.xlu0 %v754
        %v756 = vpop.xlane.xlu0 %755
        %v757 = vsub.f32 %v750, %v756
        %v758 = vmul.f32 %v757, 1.442695
        %v759 = vpow.pop %v758
        %v760 = vsel %vm753, %v759, 0.0
        %761 = vadd.xlane.f32.xlu0 %v760
        %v762 = vpop.xlane.xlu0 %761
        %v763 = vrcp.pop %v762
        %v764 = vmul.f32 %v759, %v763
        %765 = vst.msk [vmem:[%s630] sm:$0xff] %vm753, %v764
        %v766 = vpack.c.bf16 %v764, %v764
        %767 = vrot.lane.b32.xlu0 %v732, 96
        %v768 = vpop.permute.xlu0 %767
        %v771 = vsel %vm753, %v766, 0
        %773 = vmatpush.bf16.msra.mxu0 0
        %774 = vmatpush.bf16.msra.mxu0 0
        %775 = vmatpush.bf16.msra.mxu0 0
        %776 = vmatpush.bf16.msra.mxu0 0
        %777 = vmatpush.bf16.msra.mxu0 0
        %778 = vmatpush.bf16.msra.mxu0 0
        %779 = vmatpush.bf16.msra.mxu0 0
        %780 = vmatpush.bf16.msra.mxu0 %v768
        %781 = vmatmul.bf16.gmra.mxu0 %v771
        %v782 = vpop.f32.mrf.mxu0
        %v783 = vadd.f32 0.0, %v782
        %v784 = vpop.f32.mrf.mxu0
        %785 = vdwg.mxu0
        %v787 = vunpack.c.l.b16 %v725
        %v788 = vpack.c.b16 %v787, %v787
        %789 = vrot.lane.b32.xlu0 %v788, 120
        %v790 = vpop.permute.xlu0 %789
        %791 = vrot.lane.b32.xlu0 %v732, 120
        %v792 = vpop.permute.xlu0 %791
        %v794 = vsel %vm733, %v790, 0
        %v797 = vsel %vm733, %v792, 0
        %799 = vmatpush.bf16.xpose.msra.mxu0 0
        %800 = vmatpush.bf16.xpose.msra.mxu0 0
        %801 = vmatpush.bf16.xpose.msra.mxu0 0
        %802 = vmatpush.bf16.xpose.msra.mxu0 0
        %803 = vmatpush.bf16.xpose.msra.mxu0 0
        %804 = vmatpush.bf16.xpose.msra.mxu0 0
        %805 = vmatpush.bf16.xpose.msra.mxu0 0
        %806 = vmatpush.bf16.xpose.msra.mxu0 %v797
        %807 = vmatmul.bf16.gmra.mxu0 %v794
        %v808 = vpop.f32.mrf.mxu0
        %v809 = vadd.f32 0.0, %v808
        %v810 = vpop.f32.mrf.mxu0
        %811 = vdwg.mxu0
        %v812 = vsel %vm753, %v809, -inf
        %813 = vmax.xlane.f32.xlu0 %v812
        %v814 = vpop.xlane.xlu0 %813
        %v815 = vsub.f32 %v809, %v814
        %v816 = vmul.f32 %v815, 1.442695
        %v817 = vpow.pop %v816
        %v818 = vsel %vm753, %v817, 0.0
        %819 = vadd.xlane.f32.xlu0 %v818
        %v820 = vpop.xlane.xlu0 %819
        %v821 = vrcp.pop %v820
        %v822 = vmul.f32 %v817, %v821
        %s823 = scalar_lea.vmem %s630, 8 [#allocation15]
        %824 = vst.msk [vmem:[%s823] sm:$0xff] %vm753, %v822
        %v825 = vpack.c.bf16 %v822, %v822
        %826 = vrot.lane.b32.xlu0 %v732, 88
        %v827 = vpop.permute.xlu0 %826
        %v830 = vsel %vm753, %v825, 0
        %832 = vmatpush.bf16.msra.mxu0 0
        %833 = vmatpush.bf16.msra.mxu0 0
        %834 = vmatpush.bf16.msra.mxu0 0
        %835 = vmatpush.bf16.msra.mxu0 0
        %836 = vmatpush.bf16.msra.mxu0 0
        %837 = vmatpush.bf16.msra.mxu0 0
        %838 = vmatpush.bf16.msra.mxu0 0
        %839 = vmatpush.bf16.msra.mxu0 %v827
        %840 = vmatmul.bf16.gmra.mxu0 %v830
        %v841 = vpop.f32.mrf.mxu0
        %v842 = vadd.f32 0.0, %v841
        %v843 = vpop.f32.mrf.mxu0
        %844 = vdwg.mxu0
        %845 = vrot.lane.b32.xlu0 %v788, 112
        %v846 = vpop.permute.xlu0 %845
        %847 = vrot.lane.b32.xlu0 %v732, 112
        %v848 = vpop.permute.xlu0 %847
        %v850 = vsel %vm733, %v846, 0
        %v853 = vsel %vm733, %v848, 0
        %855 = vmatpush.bf16.xpose.msra.mxu0 0
        %856 = vmatpush.bf16.xpose.msra.mxu0 0
        %857 = vmatpush.bf16.xpose.msra.mxu0 0
        %858 = vmatpush.bf16.xpose.msra.mxu0 0
        %859 = vmatpush.bf16.xpose.msra.mxu0 0
        %860 = vmatpush.bf16.xpose.msra.mxu0 0
        %861 = vmatpush.bf16.xpose.msra.mxu0 0
        %862 = vmatpush.bf16.xpose.msra.mxu0 %v853
        %863 = vmatmul.bf16.gmra.mxu0 %v850
        %v864 = vpop.f32.mrf.mxu0
        %v865 = vadd.f32 0.0, %v864
        %v866 = vpop.f32.mrf.mxu0
        %867 = vdwg.mxu0
        %v868 = vsel %vm753, %v865, -inf
        %869 = vmax.xlane.f32.xlu0 %v868
        %v870 = vpop.xlane.xlu0 %869
        %v871 = vsub.f32 %v865, %v870
        %v872 = vmul.f32 %v871, 1.442695
        %v873 = vpow.pop %v872
        %v874 = vsel %vm753, %v873, 0.0
        %875 = vadd.xlane.f32.xlu0 %v874
        %v876 = vpop.xlane.xlu0 %875
        %v877 = vrcp.pop %v876
        %v878 = vmul.f32 %v873, %v877
        %s879 = scalar_lea.vmem %s630, 16 [#allocation15]
        %880 = vst.msk [vmem:[%s879] sm:$0xff] %vm753, %v878
        %v881 = vpack.c.bf16 %v878, %v878
        %882 = vrot.lane.b32.xlu0 %v732, 80
        %v883 = vpop.permute.xlu0 %882
        %v886 = vsel %vm753, %v881, 0
        %888 = vmatpush.bf16.msra.mxu0 0
        %889 = vmatpush.bf16.msra.mxu0 0
        %890 = vmatpush.bf16.msra.mxu0 0
        %891 = vmatpush.bf16.msra.mxu0 0
        %892 = vmatpush.bf16.msra.mxu0 0
        %893 = vmatpush.bf16.msra.mxu0 0
        %894 = vmatpush.bf16.msra.mxu0 0
        %895 = vmatpush.bf16.msra.mxu0 %v883
        %896 = vmatmul.bf16.gmra.mxu0 %v886
        %v897 = vpop.f32.mrf.mxu0
        %v898 = vadd.f32 0.0, %v897
        %v899 = vpop.f32.mrf.mxu0
        %900 = vdwg.mxu0
        %901 = vrot.lane.b32.xlu0 %v788, 104
        %v902 = vpop.permute.xlu0 %901
        %903 = vrot.lane.b32.xlu0 %v732, 104
        %v904 = vpop.permute.xlu0 %903
        %v906 = vsel %vm733, %v902, 0
        %v909 = vsel %vm733, %v904, 0
        %911 = vmatpush.bf16.xpose.msra.mxu0 0
        %912 = vmatpush.bf16.xpose.msra.mxu0 0
        %913 = vmatpush.bf16.xpose.msra.mxu0 0
        %914 = vmatpush.bf16.xpose.msra.mxu0 0
        %915 = vmatpush.bf16.xpose.msra.mxu0 0
        %916 = vmatpush.bf16.xpose.msra.mxu0 0
        %917 = vmatpush.bf16.xpose.msra.mxu0 0
        %918 = vmatpush.bf16.xpose.msra.mxu0 %v909
        %919 = vmatmul.bf16.gmra.mxu0 %v906
        %v920 = vpop.f32.mrf.mxu0
        %v921 = vadd.f32 0.0, %v920
        %v922 = vpop.f32.mrf.mxu0
        %923 = vdwg.mxu0
        %v924 = vsel %vm753, %v921, -inf
        %925 = vmax.xlane.f32.xlu0 %v924
        %v926 = vpop.xlane.xlu0 %925
        %v927 = vsub.f32 %v921, %v926
        %v928 = vmul.f32 %v927, 1.442695
        %v929 = vpow.pop %v928
        %v930 = vsel %vm753, %v929, 0.0
        %931 = vadd.xlane.f32.xlu0 %v930
        %v932 = vpop.xlane.xlu0 %931
        %v933 = vrcp.pop %v932
        %v934 = vmul.f32 %v929, %v933
        %s935 = scalar_lea.vmem %s630, 24 [#allocation15]
        %936 = vst.msk [vmem:[%s935] sm:$0xff] %vm753, %v934
        %v937 = vpack.c.bf16 %v934, %v934
        %938 = vrot.lane.b32.xlu0 %v732, 72
        %v939 = vpop.permute.xlu0 %938
        %v942 = vsel %vm753, %v937, 0
        %944 = vmatpush.bf16.msra.mxu0 0
        %945 = vmatpush.bf16.msra.mxu0 0
        %946 = vmatpush.bf16.msra.mxu0 0
        %947 = vmatpush.bf16.msra.mxu0 0
        %948 = vmatpush.bf16.msra.mxu0 0
        %949 = vmatpush.bf16.msra.mxu0 0
        %950 = vmatpush.bf16.msra.mxu0 0
        %951 = vmatpush.bf16.msra.mxu0 %v939
        %952 = vmatmul.bf16.gmra.mxu0 %v942
        %v953 = vpop.f32.mrf.mxu0
        %v954 = vadd.f32 0.0, %v953
        %v955 = vpop.f32.mrf.mxu0
        %956 = vdwg.mxu0
        %958 = vrot.lane.b32.xlu0 %v842, 8
        %v959 = vpop.permute.xlu0 %958
        %962 = vrot.lane.b32.xlu0 %v898, 16
        %v963 = vpop.permute.xlu0 %962
        %966 = vrot.lane.b32.xlu0 %v954, 24
        %v967 = vpop.permute.xlu0 %966
        %v969 = vsel %vm733, %v783, %v959
        %v970 = vsel %vm753, %v969, %v963
        %vm971 = vcmask 195584
        %v972 = vsel %vm971, %v970, %v967
        %v973 = vpack.c.bf16 %v972, %v972
        %v978 = vunpack.c.l.b16 %v660
        %v979 = vunpack.c.l.b16 %v661
        %v980 = vunpack.c.l.b16 %v662
        %v981 = vunpack.c.l.b16 %v663
        %v982 = vpack.c.b16 %v979, %v978
        %v983 = vpack.c.b16 %v981, %v980
        %v987 = vsel %vm677, %v973, 0
        %989 = vmatpush.bf16.msra.mxu0 0
        %990 = vmatpush.bf16.msra.mxu0 0
        %991 = vmatpush.bf16.msra.mxu0 0
        %992 = vmatpush.bf16.msra.mxu0 0
        %993 = vmatpush.bf16.msra.mxu0 0
        %994 = vmatpush.bf16.msra.mxu0 0
        %995 = vmatpush.bf16.msra.mxu0 %v983
        %996 = vmatpush.bf16.msra.mxu0 %v982
        %997 = vmatmul.bf16.gmra.mxu0 %v987
        %v998 = vpop.f32.mrf.mxu0
        %v999 = vadd.f32 %v646, %v998
        %v1000 = vpop.f32.mrf.mxu0
        %1001 = vdwg.mxu0
        %v1002 = vsel %vm677, %v999, 0.0
        %1003 = vadd.xlane.f32.xlu0 %v1002
        %v1004 = vpop.xlane.xlu0 %1003
        %v1005 = vrcp.pop 32.0
        %v1006 = vmul.f32 32.0, %v1005
        %v1007 = vsub.f32 1.0, %v1006
        %v1008 = vmul.f32 %v1005, %v1007
        %v1009 = vadd.f32 %v1005, %v1008
        %vm1010 = vweird.f32 %v1005
        %v1011 = vsel %vm1010, %v1005, %v1009
        %v1012 = vmul.f32 %v1004, %v1011
        %v1013 = vsub.f32 %v999, %v1012
        %v1014 = vmul.f32 %v1013, %v1013
        %v1015 = vsel %vm677, %v1014, 0.0
        %1016 = vadd.xlane.f32.xlu0 %v1015
        %v1017 = vpop.xlane.xlu0 %1016
        %v1018 = vmul.f32 %v1017, %v1011
        %v1019 = vadd.f32 %v1018, 1e-06
        %v1020 = vrsqrt.pop %v1019
        %v1021 = vmul.f32 %v1020, %v1019
        %v1022 = vmul.f32 %v1021, %v1020
        %v1023 = vmul.f32 0.5, %v1022
        %v1024 = vsub.f32 1.5, %v1023
        %v1025 = vmul.f32 %v1020, %v1024
        %vm1026 = vweird.f32 %v1019
        %vm1027 = vweird.f32 %v1020
        %vm1028 = vmor %vm1026, %vm1027
        %v1029 = vsel %vm1028, %v1020, %v1025
        %v1030 = vmul.f32 %v1013, %v1029
        %v1031 = vperm.slane %v651, 0
        %v1032 = vmul.f32 %v1030, %v1031
        %v1033 = vperm.slane %v651, 1
        %v1034 = vadd.f32 %v1032, %v1033
        %v1035 = vld [vmem:[#allocation8] sm:$0xf]
        %v1036 = vld [vmem:[#allocation8 + $0x4] sm:$0xf]
        %v1037 = vld [vmem:[#allocation8 + $0x8] sm:$0xf]
        %v1038 = vld [vmem:[#allocation8 + $0xc] sm:$0xf]
        %v1039 = vld [vmem:[#allocation10] sm:$0xf]
        %v1040 = vld [vmem:[#allocation10 + $0x4] sm:$0xf]
        %v1041 = vld [vmem:[#allocation10 + $0x8] sm:$0xf]
        %v1042 = vld [vmem:[#allocation10 + $0xc] sm:$0xf]
        %v1043 = vld [vmem:[#allocation11] sm:$0xf]
        %v1044 = vld [vmem:[#allocation11 + $0x4] sm:$0xf]
        %v1045 = vld [vmem:[#allocation11 + $0x8] sm:$0xf]
        %v1046 = vld [vmem:[#allocation11 + $0xc] sm:$0xf]
        %v1047 = vpack.c.bf16 %v1034, %v1034
        %v1052 = vunpack.c.l.b16 %v1035
        %v1053 = vunpack.c.l.b16 %v1036
        %v1054 = vunpack.c.l.b16 %v1037
        %v1055 = vunpack.c.l.b16 %v1038
        %v1056 = vpack.c.b16 %v1053, %v1052
        %v1057 = vpack.c.b16 %v1055, %v1054
        %v1061 = vsel %vm677, %v1047, 0
        %1063 = vmatpush.bf16.msra.mxu0 0
        %1064 = vmatpush.bf16.msra.mxu0 0
        %1065 = vmatpush.bf16.msra.mxu0 0
        %1066 = vmatpush.bf16.msra.mxu0 0
        %1067 = vmatpush.bf16.msra.mxu0 0
        %1068 = vmatpush.bf16.msra.mxu0 0
        %1069 = vmatpush.bf16.msra.mxu0 %v1057
        %1070 = vmatpush.bf16.msra.mxu0 %v1056
        %1071 = vmatmul.bf16.gmra.mxu0 %v1061
        %v1072 = vpop.f32.mrf.mxu0
        %v1073 = vadd.f32 0.0, %v1072
        %v1074 = vpop.f32.mrf.mxu0
        %1075 = vdwg.mxu0
        %v1076 = vmul.f32 %v1073, 0.35355338
        %v1077 = vpack.c.bf16 %v650, %v649
        %v1082 = vunpack.c.l.b16 %v1039
        %v1083 = vunpack.c.l.b16 %v1040
        %v1084 = vunpack.c.l.b16 %v1041
        %v1085 = vunpack.c.l.b16 %v1042
        %v1086 = vpack.c.b16 %v1083, %v1082
        %v1087 = vpack.c.b16 %v1085, %v1084
        %v1091 = vsel %vm677, %v1077, 0
        %1093 = vmatpush.bf16.msra.mxu0 0
        %1094 = vmatpush.bf16.msra.mxu0 0
        %1095 = vmatpush.bf16.msra.mxu0 0
        %1096 = vmatpush.bf16.msra.mxu0 0
        %1097 = vmatpush.bf16.msra.mxu0 0
        %1098 = vmatpush.bf16.msra.mxu0 0
        %1099 = vmatpush.bf16.msra.mxu0 %v1087
        %1100 = vmatpush.bf16.msra.mxu0 %v1086
        %1101 = vmatmul.bf16.gmra.mxu0 %v1091
        %v1102 = vpop.f32.mrf.mxu0
        %v1103 = vadd.f32 0.0, %v1102
        %v1104 = vpop.f32.mrf.mxu0
        %v1105 = vadd.f32 0.0, %v1104
        %1106 = vdwg.mxu0
        %v1107 = vpack.c.bf16 %v1076, %v1076
        %v1108 = vpack.c.bf16 %v1103, %v1103
        %v1109 = vpack.c.bf16 %v1105, %v1105
        %v1112 = vunpack.c.l.b16 %v1108
        %v1113 = vunpack.c.l.b16 %v1109
        %v1114 = vpack.c.b16 %v1113, %v1112
        %v1116 = vsel %vm733, %v1107, 0
        %v1119 = vsel %vm733, %v1114, 0
        %1121 = vmatpush.bf16.xpose.msra.mxu0 0
        %1122 = vmatpush.bf16.xpose.msra.mxu0 0
        %1123 = vmatpush.bf16.xpose.msra.mxu0 0
        %1124 = vmatpush.bf16.xpose.msra.mxu0 0
        %1125 = vmatpush.bf16.xpose.msra.mxu0 0
        %1126 = vmatpush.bf16.xpose.msra.mxu0 0
        %1127 = vmatpush.bf16.xpose.msra.mxu0 0
        %1128 = vmatpush.bf16.xpose.msra.mxu0 %v1119
        %1129 = vmatmul.bf16.gmra.mxu0 %v1116
        %v1130 = vpop.f32.mrf.mxu0
        %v1131 = vadd.f32 0.0, %v1130
        %v1132 = vpop.f32.mrf.mxu0
        %1133 = vdwg.mxu0
        %v1134 = vsel %vm753, %v1131, -inf
        %1135 = vmax.xlane.f32.xlu0 %v1134
        %v1136 = vpop.xlane.xlu0 %1135
        %v1137 = vsub.f32 %v1131, %v1136
        %v1138 = vmul.f32 %v1137, 1.442695
        %v1139 = vpow.pop %v1138
        %v1140 = vsel %vm753, %v1139, 0.0
        %1141 = vadd.xlane.f32.xlu0 %v1140
        %v1142 = vpop.xlane.xlu0 %1141
        %v1143 = vrcp.pop %v1142
        %v1144 = vmul.f32 %v1139, %v1143
        %1145 = vst.msk [vmem:[%s637] sm:$0xff] %vm753, %v1144
        %v1146 = vpack.c.bf16 %v1144, %v1144
        %1147 = vrot.lane.b32.xlu0 %v1114, 96
        %v1148 = vpop.permute.xlu0 %1147
        %v1151 = vsel %vm753, %v1146, 0
        %1153 = vmatpush.bf16.msra.mxu0 0
        %1154 = vmatpush.bf16.msra.mxu0 0
        %1155 = vmatpush.bf16.msra.mxu0 0
        %1156 = vmatpush.bf16.msra.mxu0 0
        %1157 = vmatpush.bf16.msra.mxu0 0
        %1158 = vmatpush.bf16.msra.mxu0 0
        %1159 = vmatpush.bf16.msra.mxu0 0
        %1160 = vmatpush.bf16.msra.mxu0 %v1148
        %1161 = vmatmul.bf16.gmra.mxu0 %v1151
        %v1162 = vpop.f32.mrf.mxu0
        %v1163 = vadd.f32 0.0, %v1162
        %v1164 = vpop.f32.mrf.mxu0
        %1165 = vdwg.mxu0
        %v1167 = vunpack.c.l.b16 %v1107
        %v1168 = vpack.c.b16 %v1167, %v1167
        %1169 = vrot.lane.b32.xlu0 %v1168, 120
        %v1170 = vpop.permute.xlu0 %1169
        %1171 = vrot.lane.b32.xlu0 %v1114, 120
        %v1172 = vpop.permute.xlu0 %1171
        %v1174 = vsel %vm733, %v1170, 0
        %v1177 = vsel %vm733, %v1172, 0
        %1179 = vmatpush.bf16.xpose.msra.mxu0 0
        %1180 = vmatpush.bf16.xpose.msra.mxu0 0
        %1181 = vmatpush.bf16.xpose.msra.mxu0 0
        %1182 = vmatpush.bf16.xpose.msra.mxu0 0
        %1183 = vmatpush.bf16.xpose.msra.mxu0 0
        %1184 = vmatpush.bf16.xpose.msra.mxu0 0
        %1185 = vmatpush.bf16.xpose.msra.mxu0 0
        %1186 = vmatpush.bf16.xpose.msra.mxu0 %v1177
        %1187 = vmatmul.bf16.gmra.mxu0 %v1174
        %v1188 = vpop.f32.mrf.mxu0
        %v1189 = vadd.f32 0.0, %v1188
        %v1190 = vpop.f32.mrf.mxu0
        %1191 = vdwg.mxu0
        %v1192 = vsel %vm753, %v1189, -inf
        %1193 = vmax.xlane.f32.xlu0 %v1192
        %v1194 = vpop.xlane.xlu0 %1193
        %v1195 = vsub.f32 %v1189, %v1194
        %v1196 = vmul.f32 %v1195, 1.442695
        %v1197 = vpow.pop %v1196
        %v1198 = vsel %vm753, %v1197, 0.0
        %1199 = vadd.xlane.f32.xlu0 %v1198
        %v1200 = vpop.xlane.xlu0 %1199
        %v1201 = vrcp.pop %v1200
        %v1202 = vmul.f32 %v1197, %v1201
        %s1203 = scalar_lea.vmem %s637, 8 [#allocation17]
        %1204 = vst.msk [vmem:[%s1203] sm:$0xff] %vm753, %v1202
        %v1205 = vpack.c.bf16 %v1202, %v1202
        %1206 = vrot.lane.b32.xlu0 %v1114, 88
        %v1207 = vpop.permute.xlu0 %1206
        %v1210 = vsel %vm753, %v1205, 0
        %1212 = vmatpush.bf16.msra.mxu0 0
        %1213 = vmatpush.bf16.msra.mxu0 0
        %1214 = vmatpush.bf16.msra.mxu0 0
        %1215 = vmatpush.bf16.msra.mxu0 0
        %1216 = vmatpush.bf16.msra.mxu0 0
        %1217 = vmatpush.bf16.msra.mxu0 0
        %1218 = vmatpush.bf16.msra.mxu0 0
        %1219 = vmatpush.bf16.msra.mxu0 %v1207
        %1220 = vmatmul.bf16.gmra.mxu0 %v1210
        %v1221 = vpop.f32.mrf.mxu0
        %v1222 = vadd.f32 0.0, %v1221
        %v1223 = vpop.f32.mrf.mxu0
        %1224 = vdwg.mxu0
        %1225 = vrot.lane.b32.xlu0 %v1168, 112
        %v1226 = vpop.permute.xlu0 %1225
        %1227 = vrot.lane.b32.xlu0 %v1114, 112
        %v1228 = vpop.permute.xlu0 %1227
        %v1230 = vsel %vm733, %v1226, 0
        %v1233 = vsel %vm733, %v1228, 0
        %1235 = vmatpush.bf16.xpose.msra.mxu0 0
        %1236 = vmatpush.bf16.xpose.msra.mxu0 0
        %1237 = vmatpush.bf16.xpose.msra.mxu0 0
        %1238 = vmatpush.bf16.xpose.msra.mxu0 0
        %1239 = vmatpush.bf16.xpose.msra.mxu0 0
        %1240 = vmatpush.bf16.xpose.msra.mxu0 0
        %1241 = vmatpush.bf16.xpose.msra.mxu0 0
        %1242 = vmatpush.bf16.xpose.msra.mxu0 %v1233
        %1243 = vmatmul.bf16.gmra.mxu0 %v1230
        %v1244 = vpop.f32.mrf.mxu0
        %v1245 = vadd.f32 0.0, %v1244
        %v1246 = vpop.f32.mrf.mxu0
        %1247 = vdwg.mxu0
        %v1248 = vsel %vm753, %v1245, -inf
        %1249 = vmax.xlane.f32.xlu0 %v1248
        %v1250 = vpop.xlane.xlu0 %1249
        %v1251 = vsub.f32 %v1245, %v1250
        %v1252 = vmul.f32 %v1251, 1.442695
        %v1253 = vpow.pop %v1252
        %v1254 = vsel %vm753, %v1253, 0.0
        %1255 = vadd.xlane.f32.xlu0 %v1254
        %v1256 = vpop.xlane.xlu0 %1255
        %v1257 = vrcp.pop %v1256
        %v1258 = vmul.f32 %v1253, %v1257
        %s1259 = scalar_lea.vmem %s637, 16 [#allocation17]
        %1260 = vst.msk [vmem:[%s1259] sm:$0xff] %vm753, %v1258
        %v1261 = vpack.c.bf16 %v1258, %v1258
        %1262 = vrot.lane.b32.xlu0 %v1114, 80
        %v1263 = vpop.permute.xlu0 %1262
        %v1266 = vsel %vm753, %v1261, 0
        %1268 = vmatpush.bf16.msra.mxu0 0
        %1269 = vmatpush.bf16.msra.mxu0 0
        %1270 = vmatpush.bf16.msra.mxu0 0
        %1271 = vmatpush.bf16.msra.mxu0 0
        %1272 = vmatpush.bf16.msra.mxu0 0
        %1273 = vmatpush.bf16.msra.mxu0 0
        %1274 = vmatpush.bf16.msra.mxu0 0
        %1275 = vmatpush.bf16.msra.mxu0 %v1263
        %1276 = vmatmul.bf16.gmra.mxu0 %v1266
        %v1277 = vpop.f32.mrf.mxu0
        %v1278 = vadd.f32 0.0, %v1277
        %v1279 = vpop.f32.mrf.mxu0
        %1280 = vdwg.mxu0
        %1281 = vrot.lane.b32.xlu0 %v1168, 104
        %v1282 = vpop.permute.xlu0 %1281
        %1283 = vrot.lane.b32.xlu0 %v1114, 104
        %v1284 = vpop.permute.xlu0 %1283
        %v1286 = vsel %vm733, %v1282, 0
        %v1289 = vsel %vm733, %v1284, 0
        %1291 = vmatpush.bf16.xpose.msra.mxu0 0
        %1292 = vmatpush.bf16.xpose.msra.mxu0 0
        %1293 = vmatpush.bf16.xpose.msra.mxu0 0
        %1294 = vmatpush.bf16.xpose.msra.mxu0 0
        %1295 = vmatpush.bf16.xpose.msra.mxu0 0
        %1296 = vmatpush.bf16.xpose.msra.mxu0 0
        %1297 = vmatpush.bf16.xpose.msra.mxu0 0
        %1298 = vmatpush.bf16.xpose.msra.mxu0 %v1289
        %1299 = vmatmul.bf16.gmra.mxu0 %v1286
        %v1300 = vpop.f32.mrf.mxu0
        %v1301 = vadd.f32 0.0, %v1300
        %v1302 = vpop.f32.mrf.mxu0
        %1303 = vdwg.mxu0
        %v1304 = vsel %vm753, %v1301, -inf
        %1305 = vmax.xlane.f32.xlu0 %v1304
        %v1306 = vpop.xlane.xlu0 %1305
        %v1307 = vsub.f32 %v1301, %v1306
        %v1308 = vmul.f32 %v1307, 1.442695
        %v1309 = vpow.pop %v1308
        %v1310 = vsel %vm753, %v1309, 0.0
        %1311 = vadd.xlane.f32.xlu0 %v1310
        %v1312 = vpop.xlane.xlu0 %1311
        %v1313 = vrcp.pop %v1312
        %v1314 = vmul.f32 %v1309, %v1313
        %s1315 = scalar_lea.vmem %s637, 24 [#allocation17]
        %1316 = vst.msk [vmem:[%s1315] sm:$0xff] %vm753, %v1314
        %v1317 = vpack.c.bf16 %v1314, %v1314
        %1318 = vrot.lane.b32.xlu0 %v1114, 72
        %v1319 = vpop.permute.xlu0 %1318
        %v1322 = vsel %vm753, %v1317, 0
        %1324 = vmatpush.bf16.msra.mxu0 0
        %1325 = vmatpush.bf16.msra.mxu0 0
        %1326 = vmatpush.bf16.msra.mxu0 0
        %1327 = vmatpush.bf16.msra.mxu0 0
        %1328 = vmatpush.bf16.msra.mxu0 0
        %1329 = vmatpush.bf16.msra.mxu0 0
        %1330 = vmatpush.bf16.msra.mxu0 0
        %1331 = vmatpush.bf16.msra.mxu0 %v1319
        %1332 = vmatmul.bf16.gmra.mxu0 %v1322
        %v1333 = vpop.f32.mrf.mxu0
        %v1334 = vadd.f32 0.0, %v1333
        %v1335 = vpop.f32.mrf.mxu0
        %1336 = vdwg.mxu0
        %1338 = vrot.lane.b32.xlu0 %v1222, 8
        %v1339 = vpop.permute.xlu0 %1338
        %1342 = vrot.lane.b32.xlu0 %v1278, 16
        %v1343 = vpop.permute.xlu0 %1342
        %1346 = vrot.lane.b32.xlu0 %v1334, 24
        %v1347 = vpop.permute.xlu0 %1346
        %v1349 = vsel %vm733, %v1163, %v1339
        %v1350 = vsel %vm753, %v1349, %v1343
        %v1351 = vsel %vm971, %v1350, %v1347
        %v1352 = vpack.c.bf16 %v1351, %v1351
        %v1357 = vunpack.c.l.b16 %v1043
        %v1358 = vunpack.c.l.b16 %v1044
        %v1359 = vunpack.c.l.b16 %v1045
        %v1360 = vunpack.c.l.b16 %v1046
        %v1361 = vpack.c.b16 %v1358, %v1357
        %v1362 = vpack.c.b16 %v1360, %v1359
        %v1366 = vsel %vm677, %v1352, 0
        %1368 = vmatpush.bf16.msra.mxu0 0
        %1369 = vmatpush.bf16.msra.mxu0 0
        %1370 = vmatpush.bf16.msra.mxu0 0
        %1371 = vmatpush.bf16.msra.mxu0 0
        %1372 = vmatpush.bf16.msra.mxu0 0
        %1373 = vmatpush.bf16.msra.mxu0 0
        %1374 = vmatpush.bf16.msra.mxu0 %v1362
        %1375 = vmatpush.bf16.msra.mxu0 %v1361
        %1376 = vmatmul.bf16.gmra.mxu0 %v1366
        %v1377 = vpop.f32.mrf.mxu0
        %v1378 = vadd.f32 %v1034, %v1377
        %v1379 = vpop.f32.mrf.mxu0
        %1380 = vdwg.mxu0
        %v1381 = vsel %vm677, %v1378, 0.0
        %1382 = vadd.xlane.f32.xlu0 %v1381
        %v1383 = vpop.xlane.xlu0 %1382
        %v1384 = vmul.f32 %v1383, %v1011
        %v1385 = vsub.f32 %v1378, %v1384
        %v1386 = vmul.f32 %v1385, %v1385
        %v1387 = vsel %vm677, %v1386, 0.0
        %1388 = vadd.xlane.f32.xlu0 %v1387
        %v1389 = vpop.xlane.xlu0 %1388
        %v1390 = vmul.f32 %v1389, %v1011
        %v1391 = vadd.f32 %v1390, 1e-06
        %v1392 = vrsqrt.pop %v1391
        %v1393 = vmul.f32 %v1392, %v1391
        %v1394 = vmul.f32 %v1393, %v1392
        %v1395 = vmul.f32 0.5, %v1394
        %v1396 = vsub.f32 1.5, %v1395
        %v1397 = vmul.f32 %v1392, %v1396
        %vm1398 = vweird.f32 %v1391
        %vm1399 = vweird.f32 %v1392
        %vm1400 = vmor %vm1398, %vm1399
        %v1401 = vsel %vm1400, %v1392, %v1397
        %v1402 = vmul.f32 %v1385, %v1401
        %v1403 = vperm.slane %v651, 2
        %v1404 = vmul.f32 %v1402, %v1403
        %v1405 = vperm.slane %v651, 3
        %v1406 = vadd.f32 %v1404, %v1405
        %v1407 = vpack.c.bf16 %v1406, %v1406
        %v1408 = vld [vmem:[#allocation13] sm:$0xf]
        %v1409 = vld [vmem:[#allocation13 + $0x4] sm:$0xf]
        %v1410 = vld [vmem:[#allocation13 + $0x8] sm:$0xf]
        %v1411 = vld [vmem:[#allocation13 + $0xc] sm:$0xf]
        %v1412 = vld [vmem:[%s10] sm:$0x1]
        %v1414 = vperm.slane %v1412, 0
        %v1420 = vunpack.c.l.b16 %v1408
        %v1421 = vunpack.c.l.b16 %v1409
        %v1422 = vunpack.c.l.b16 %v1410
        %v1423 = vunpack.c.l.b16 %v1411
        %v1424 = vpack.c.b16 %v1421, %v1420
        %v1425 = vpack.c.b16 %v1423, %v1422
        %v1429 = vsel %vm677, %v1407, 0
        %1431 = vmatpush.bf16.msra.mxu0 0
        %1432 = vmatpush.bf16.msra.mxu0 0
        %1433 = vmatpush.bf16.msra.mxu0 0
        %1434 = vmatpush.bf16.msra.mxu0 0
        %1435 = vmatpush.bf16.msra.mxu0 0
        %1436 = vmatpush.bf16.msra.mxu0 0
        %1437 = vmatpush.bf16.msra.mxu0 %v1425
        %1438 = vmatpush.bf16.msra.mxu0 %v1424
        %1439 = vmatmul.bf16.gmra.mxu0 %v1429
        %v1440 = vpop.f32.mrf.mxu0
        %v1441 = vadd.f32 %v1414, %v1440
        %v1442 = vpop.f32.mrf.mxu0
        %1443 = vdwg.mxu0
        %v1444 = vmax.f32 %v1441, 0.0
        %v1445 = vpack.c.bf16 %v1444, %v1444
        %v1446 = vld [vmem:[%s9] sm:$0xf]
        %v1447 = vld [vmem:[%s9 + $0x4] sm:$0xf]
        %v1448 = vld [vmem:[%s9 + $0x8] sm:$0xf]
        %v1449 = vld [vmem:[%s9 + $0xc] sm:$0xf]
        %v1450 = vld [vmem:[%s9 + $0x10] sm:$0xf]
        %v1451 = vld [vmem:[%s9 + $0x14] sm:$0xf]
        %v1452 = vld [vmem:[%s9 + $0x18] sm:$0xf]
        %v1453 = vld [vmem:[%s9 + $0x1c] sm:$0xf]
        %v1454 = vperm.slane %v651, 4
        %v1463 = vunpack.c.l.b16 %v1446
        %v1464 = vunpack.c.l.b16 %v1447
        %v1465 = vunpack.c.l.b16 %v1448
        %v1466 = vunpack.c.l.b16 %v1449
        %v1467 = vunpack.c.l.b16 %v1450
        %v1468 = vunpack.c.l.b16 %v1451
        %v1469 = vunpack.c.l.b16 %v1452
        %v1470 = vunpack.c.l.b16 %v1453
        %v1471 = vpack.c.b16 %v1464, %v1463
        %v1472 = vpack.c.b16 %v1466, %v1465
        %v1473 = vpack.c.b16 %v1468, %v1467
        %v1474 = vpack.c.b16 %v1470, %v1469
        %vm1479 = vcmask 523264
        %v1481 = vsel %vm1479, %v1445, 0
        %1483 = vmatpush.bf16.msra.mxu0 0
        %1484 = vmatpush.bf16.msra.mxu0 0
        %1485 = vmatpush.bf16.msra.mxu0 0
        %1486 = vmatpush.bf16.msra.mxu0 0
        %1487 = vmatpush.bf16.msra.mxu0 %v1474
        %1488 = vmatpush.bf16.msra.mxu0 %v1473
        %1489 = vmatpush.bf16.msra.mxu0 %v1472
        %1490 = vmatpush.bf16.msra.mxu0 %v1471
        %1491 = vmatmul.bf16.gmra.mxu0 %v1481
        %v1492 = vpop.f32.mrf.mxu0
        %v1493 = vadd.f32 %v1454, %v1492
        %v1494 = vpop.f32.mrf.mxu0
        %1495 = vdwg.mxu0
        %v1496 = vadd.f32 %v1493, %v1406
        %v1497 = vsel %vm677, %v1496, 0.0
        %1498 = vadd.xlane.f32.xlu0 %v1497
        %v1499 = vpop.xlane.xlu0 %1498
        %v1500 = vmul.f32 %v1499, %v1011
        %v1501 = vsub.f32 %v1496, %v1500
        %v1502 = vmul.f32 %v1501, %v1501
        %v1503 = vsel %vm677, %v1502, 0.0
        %1504 = vadd.xlane.f32.xlu0 %v1503
        %v1505 = vpop.xlane.xlu0 %1504
        %v1506 = vmul.f32 %v1505, %v1011
        %v1507 = vadd.f32 %v1506, 1e-06
        %v1508 = vrsqrt.pop %v1507
        %v1509 = vmul.f32 %v1508, %v1507
        %v1510 = vmul.f32 %v1509, %v1508
        %v1511 = vmul.f32 0.5, %v1510
        %v1512 = vsub.f32 1.5, %v1511
        %v1513 = vmul.f32 %v1508, %v1512
        %vm1514 = vweird.f32 %v1507
        %vm1515 = vweird.f32 %v1508
        %vm1516 = vmor %vm1514, %vm1515
        %v1517 = vsel %vm1516, %v1508, %v1513
        %v1518 = vmul.f32 %v1501, %v1517
        %v1519 = vperm.slane %v651, 5
        %v1520 = vmul.f32 %v1518, %v1519
        %v1521 = vperm.slane %v651, 6
        %v1522 = vadd.f32 %v1520, %v1521
        %1523 = vst.msk [vmem:[%s623] sm:$0xff] %vm677, %v1522
        %s1524 = sand.u32 %s322, 1
        %s1525 = scalar_lea.sflag [#allocation4], %s1524
        %s1526 = sand.u32 %s322, 1
        %s1527 = smul.addr %s1526, 8
        %s1528 = scalar_lea.vmem [#allocation14], %s1527
        %s1529 = sand.u32 %s38, 1
        %s1530 = scalar_lea.sflag [#allocation16], %s1529
        %s1531 = sand.u32 %s350, 1
        %s1532 = smul.addr %s1531, 32
        %s1533 = scalar_lea.vmem [#allocation15], %s1532
        %s1534 = sand.u32 %s38, 1
        %s1535 = scalar_lea.sflag [#allocation16], %s1534
        %s1536 = sand.u32 %s378, 1
        %s1537 = smul.addr %s1536, 32
        %s1538 = scalar_lea.vmem [#allocation17], %s1537
        // Predicated region
        $region97: #{tpu_custom_call.1} parent=67 // pred_check
          %p1539 = pneg %p332
        $region98: #{tpu_custom_call.1} parent=67 // pred_check_branch
          %1541 = sbr.rel (%p1539) target = $region100
        $region99: #{tpu_custom_call.1} parent=67 // pred_region
          %1543 = vsyncadd %s1525, 0
          %s1544 = smul.addr %s42, 2
          %s1545 = sadd.s32 %s43, %s1544
          %s1546 = smul.addr %s1545, 8
          %s1547 = scalar_lea.hbm %s12, %s1546
          %s1549 = sshll.u32 %s1528, 4
          %s1550 = int_to_ptr.vmem [resolvable:$true] %s1549
          %s1551 = sshll.u32 %s1547, 4
          %s1552 = int_to_ptr.hbm [resolvable:$true] %s1551
          %1554 = dma.vmem_to_hbm [thread:$0]  %s1550, 128, %s1552, %s1525
        $region100: #{tpu_custom_call.1} parent=67 // pred_fallthru
          _
        // Predicated region
        $region101: #{tpu_custom_call.1} parent=67 // pred_check
          %p1555 = pneg %p360
        $region102: #{tpu_custom_call.1} parent=67 // pred_check_branch
          %1557 = sbr.rel (%p1555) target = $region104
        $region103: #{tpu_custom_call.1} parent=67 // pred_region
          %1559 = vsyncadd %s1530, 0
          %s1560 = smul.addr %s42, 8
          %s1561 = sadd.s32 %s43, %s1560
          %s1562 = smul.addr %s1561, 8
          %s1563 = scalar_lea.hbm %s13, %s1562
          %s1564 = sshll.u32 %s1533, 4
          %s1565 = int_to_ptr.vmem [resolvable:$true] %s1564
          %s1566 = sshll.u32 %s1563, 4
          %s1567 = int_to_ptr.hbm [resolvable:$true] %s1566
          %1572 = dma.vmem_to_hbm [thread:$0]  %s1565, 512, %s1567, %s1530, 128, 256, 8
        $region104: #{tpu_custom_call.1} parent=67 // pred_fallthru
          _
        // Predicated region
        $region105: #{tpu_custom_call.1} parent=67 // pred_check
          %p1573 = pneg %p388
        $region106: #{tpu_custom_call.1} parent=67 // pred_check_branch
          %1575 = sbr.rel (%p1573) target = $region108
        $region107: #{tpu_custom_call.1} parent=67 // pred_region
          %1577 = vsyncadd %s1535, 0
          %s1578 = smul.addr %s42, 8
          %s1579 = sadd.s32 %s43, %s1578
          %s1580 = smul.addr %s1579, 8
          %s1581 = scalar_lea.hbm %s14, %s1580
          %s1582 = sshll.u32 %s1538, 4
          %s1583 = int_to_ptr.vmem [resolvable:$true] %s1582
          %s1584 = sshll.u32 %s1581, 4
          %s1585 = int_to_ptr.hbm [resolvable:$true] %s1584
          %1590 = dma.vmem_to_hbm [thread:$0]  %s1583, 512, %s1585, %s1535, 128, 256, 8
        $region108: #{tpu_custom_call.1} parent=67 // pred_fallthru
          _
      $region68: #{tpu_custom_call.1} parent=5 // pred_fallthru
        _
      %p1591 = scmp.le.s32.totalorder 2, %s33
      // Predicated region
      $region109: #{tpu_custom_call.1} parent=5 // pred_check
        %p1592 = pneg %p1591
      $region110: #{tpu_custom_call.1} parent=5 // pred_check_branch
        %1594 = sbr.rel (%p1592) target = $region112
      $region111: #{tpu_custom_call.1} parent=5 // pred_region
        %s1595 = ssub.s32 %s33, 2
        // Predicated region
        $region113: #{tpu_custom_call.1} parent=111 // pred_check
          %p1596 = pneg %p338
        $region114: #{tpu_custom_call.1} parent=111 // pred_check_branch
          %1598 = sbr.rel (%p1596) target = $region116
        $region115: #{tpu_custom_call.1} parent=111 // pred_region
          %s1599 = sand.u32 %s323, 1
          %s1600 = scalar_lea.sflag [#allocation4], %s1599
          %s1601 = sand.u32 %s323, 1
          %s1602 = smul.addr %s1601, 8
          %s1603 = scalar_lea.vmem [#allocation14], %s1602
          %1605 = dma.done %s1600, 128
        $region116: #{tpu_custom_call.1} parent=111 // pred_fallthru
          _
        // Predicated region
        $region117: #{tpu_custom_call.1} parent=111 // pred_check
          %p1606 = pneg %p366
        $region118: #{tpu_custom_call.1} parent=111 // pred_check_branch
          %1608 = sbr.rel (%p1606) target = $region120
        $region119: #{tpu_custom_call.1} parent=111 // pred_region
          %s1609 = sand.u32 %s39, 1
          %s1610 = scalar_lea.sflag [#allocation16], %s1609
          %s1611 = sand.u32 %s351, 1
          %s1612 = smul.addr %s1611, 32
          %s1613 = scalar_lea.vmem [#allocation15], %s1612
          %1615 = dma.done %s1610, 512
        $region120: #{tpu_custom_call.1} parent=111 // pred_fallthru
          _
        // Predicated region
        $region121: #{tpu_custom_call.1} parent=111 // pred_check
          %p1616 = pneg %p394
        $region122: #{tpu_custom_call.1} parent=111 // pred_check_branch
          %1618 = sbr.rel (%p1616) target = $region124
        $region123: #{tpu_custom_call.1} parent=111 // pred_region
          %s1619 = sand.u32 %s39, 1
          %s1620 = scalar_lea.sflag [#allocation16], %s1619
          %s1621 = sand.u32 %s379, 1
          %s1622 = smul.addr %s1621, 32
          %s1623 = scalar_lea.vmem [#allocation17], %s1622
          %1625 = dma.done %s1620, 512
        $region124: #{tpu_custom_call.1} parent=111 // pred_fallthru
          _
      $region112: #{tpu_custom_call.1} parent=5 // pred_fallthru
        _
    $region6: #{tpu_custom_call.1} parent=1 // loop_footer
      %s37 = sadd.s32 1, %s33
    $region7: #{tpu_custom_call.1} parent=1 // loop_footer_branch
      %32 = sbr.rel target = $region3
    $region8: #{tpu_custom_call.1} parent=1 // loop_exit
      _
    %1626 = vsyncpa [#allocation3], 1
    %s1627 = scalar_lea.sflag [#allocation3], 1
    %1628 = vsyncpa %s1627, 1
    %1629 = vsyncpa [#allocation6], 1
    %1630 = vsyncpa [#allocation9], 1
    %1631 = vsyncpa [#allocation12], 1
    %1632 = vsyncpa [#allocation4], 1
    %s1633 = scalar_lea.sflag [#allocation4], 1
    %1634 = vsyncpa %s1633, 1
    %1635 = vsyncpa [#allocation16], 1
    %s1636 = scalar_lea.sflag [#allocation16], 1
    %1637 = vsyncpa %s1636, 1

// kernel: tpu_custom_call.1
$region0: #{tpu_custom_call.1}
  #allocation0 [shape = 'u32[]', space=smem, size = 0x4, offset = 0x4, fixed_abs, tag = 'smem constant byte address 0x4 - core index']
  #allocation1 [shape = 'u32[72,128]{1,0:T(1,128)}', space=vmem, size = 0x9000, scoped, tag = 'internal scratch']
  %s0 = inlined_call_operand.vmem [shape: f32[2,16,32], index: 0, kind: input, shape index: {}]
  %s1 = inlined_call_operand.hbm [shape: f32[2,16,32], index: 1, kind: input, shape index: {}]
  %s2 = inlined_call_operand.vmem [shape: bf16[32,32], index: 2, kind: input, shape index: {}]
  %s3 = inlined_call_operand.hbm [shape: bf16[32,64], index: 3, kind: input, shape index: {}]
  %s4 = inlined_call_operand.hbm [shape: bf16[32,32], index: 4, kind: input, shape index: {}]
  %s5 = inlined_call_operand.hbm [shape: bf16[32,32], index: 5, kind: input, shape index: {}]
  %s6 = inlined_call_operand.hbm [shape: bf16[32,64], index: 6, kind: input, shape index: {}]
  %s7 = inlined_call_operand.hbm [shape: bf16[32,32], index: 7, kind: input, shape index: {}]
  %s8 = inlined_call_operand.hbm [shape: bf16[32,64], index: 8, kind: input, shape index: {}]
  %s9 = inlined_call_operand.vmem [shape: bf16[64,32], index: 9, kind: input, shape index: {}]
  %s10 = inlined_call_operand.vmem [shape: f32[1,64], index: 10, kind: input, shape index: {}]
  %s11 = inlined_call_operand.vmem [shape: f32[8,32], index: 11, kind: input, shape index: {}]
  %s12 = inlined_call_operand.hbm [shape: f32[2,16,32], index: 12, kind: output, shape index: {0}]
  %s13 = inlined_call_operand.hbm [shape: f32[2,4,16,16], index: 13, kind: output, shape index: {1}]
  %s14 = inlined_call_operand.hbm [shape: f32[2,4,16,16], index: 14, kind: output, shape index: {2}]
  %15 = xla_tuple %s12, %s13, %s14
  %s16 = sld [smem:[#allocation0]]
  $region125: #{tpu_custom_call.1} parent=0
    _
  %s18 = ssub.s32 1, %s16
  %s19 = scalar_select 0, %s18, %s16
  $region1: #{tpu_custom_call.1} parent=0
    #allocation2 [shape = 'u8[16384]{0}', space=vmem, size = 0x4000, scoped, tag = 'input window, operand 1']
    #allocation3 [shape = 's32[2]{0}', space=sflag, size = 0x8, scoped, tag = 'scoped memory for tpu_custom_call.1']
    #allocation4 [shape = 's32[2]{0}', space=sflag, size = 0x8, scoped, tag = 'scoped memory for tpu_custom_call.1']
    #allocation5 [shape = 'u8[8192]{0}', space=vmem, size = 0x2000, scoped, tag = 'input window, operand 3, single buffered']
    #allocation6 [shape = 's32[1]{0}', space=sflag, size = 0x4, scoped, tag = 'scoped memory for tpu_custom_call.1']
    #allocation7 [shape = 'u8[8192]{0}', space=vmem, size = 0x2000, scoped, tag = 'input window, operand 4, single buffered']
    #allocation8 [shape = 'u8[8192]{0}', space=vmem, size = 0x2000, scoped, tag = 'input window, operand 5, single buffered']
    #allocation9 [shape = 's32[1]{0}', space=sflag, size = 0x4, scoped, tag = 'scoped memory for tpu_custom_call.1']
    #allocation10 [shape = 'u8[8192]{0}', space=vmem, size = 0x2000, scoped, tag = 'input window, operand 6, single buffered']
    #allocation11 [shape = 'u8[8192]{0}', space=vmem, size = 0x2000, scoped, tag = 'input window, operand 7, single buffered']
    #allocation12 [shape = 's32[1]{0}', space=sflag, size = 0x4, scoped, tag = 'scoped memory for tpu_custom_call.1']
    #allocation13 [shape = 'u8[8192]{0}', space=vmem, size = 0x2000, scoped, tag = 'input window, operand 8, single buffered']
    #allocation14 [shape = 'u8[8192]{0}', space=vmem, size = 0x2000, scoped, tag = 'output window, operand 0']
    #allocation15 [shape = 'u8[32768]{0}', space=vmem, size = 0x8000, scoped, tag = 'output window, operand 1']
    #allocation16 [shape = 's32[2]{0}', space=sflag, size = 0x8, scoped, tag = 'scoped memory for tpu_custom_call.1']
    #allocation17 [shape = 'u8[32768]{0}', space=vmem, size = 0x8000, scoped, tag = 'output window, operand 2']
    %20 = vsyncpa [#allocation3], 0
    %s21 = scalar_lea.sflag [#allocation3], 1
    %22 = vsyncpa %s21, 0
    %23 = vsyncpa [#allocation6], 0
    %24 = vsyncpa [#allocation9], 0
    %25 = vsyncpa [#allocation12], 0
    %26 = vsyncpa [#allocation4], 0
    %s27 = scalar_lea.sflag [#allocation4], 1
    %28 = vsyncpa %s27, 0
    %29 = vsyncpa [#allocation16], 0
    %s30 = scalar_lea.sflag [#allocation16], 1
    %31 = vsyncpa %s30, 0
    loop: start=0, step=1, limit=6
    $region2: #{tpu_custom_call.1} parent=1 // loop_pre_header
      _
    $region3: #{tpu_custom_call.1} parent=1 // loop_header
      %s33 = sphi 0, %s37
      %p34 = scmp.ge.s32.totalorder %s33, 6
      %s40 = sphi 0, %s52
      %s41 = sphi 0, %s48
      %s42 = sphi 0, %s40
      %s43 = sphi 0, %s41
      %s44 = sphi 0, %s42
      %s45 = sphi 0, %s43
      %s55 = sphi 0, %s57
      %s58 = sphi 0, %s55
      %s59 = sphi 0, %s58
      %s75 = sphi 0, %s59
      %s81 = sphi 0, %s83
      %s84 = sphi 0, %s81
      %s85 = sphi 0, %s84
      %s101 = sphi 0, %s85
      %s105 = sphi 0, %s105
      %s107 = sphi 0, %s105
      %s108 = sphi 0, %s107
      %s122 = sphi 0, %s108
      %s126 = sphi 0, %s126
      %s128 = sphi 0, %s126
      %s129 = sphi 0, %s128
      %s143 = sphi 0, %s129
      %s147 = sphi 0, %s147
      %s149 = sphi 0, %s147
      %s150 = sphi 0, %s149
      %s164 = sphi 0, %s150
      %s168 = sphi 0, %s168
      %s170 = sphi 0, %s168
      %s171 = sphi 0, %s170
      %s185 = sphi 0, %s171
      %s189 = sphi 0, %s189
      %s191 = sphi 0, %s189
      %s192 = sphi 0, %s191
      %s206 = sphi 0, %s192
      %s210 = sphi 0, %s210
      %s212 = sphi 0, %s210
      %s213 = sphi 0, %s212
      %s227 = sphi 0, %s213
      %s231 = sphi 0, %s231
      %s233 = sphi 0, %s231
      %s234 = sphi 0, %s233
      %s248 = sphi 0, %s234
      %s252 = sphi 0, %s252
      %s254 = sphi 0, %s252
      %s255 = sphi 0, %s254
      %s269 = sphi 0, %s255
      %s273 = sphi 0, %s273
      %s275 = sphi 0, %s273
      %s276 = sphi 0, %s275
      %s290 = sphi 0, %s276
      %s294 = sphi 0, %s294
      %s296 = sphi 0, %s294
      %s297 = sphi 0, %s296
      %s311 = sphi 0, %s297
      %s319 = sphi 0, %s321
      %s322 = sphi 0, %s319
      %s323 = sphi 0, %s322
      %s339 = sphi 0, %s323
      %s347 = sphi 0, %s349
      %s350 = sphi 0, %s347
      %s351 = sphi 0, %s350
      %s367 = sphi 0, %s351
      %s375 = sphi 0, %s377
      %s378 = sphi 0, %s375
      %s379 = sphi 0, %s378
      %s395 = sphi 0, %s379
    $region4: #{tpu_custom_call.1} parent=1 // loop_header_branch
      %36 = sbr.rel (%p34) target = $region8
    $region5: #{tpu_custom_call.1} parent=1 // loop_body
      %s38 = ssub.s32 %s33, 1
      %s39 = ssub.s32 %s33, 2
      %s46 = sadd.s32 1, %s41
      %p47 = scmp.ge.s32.totalorder %s46, 2
      %s48 = scalar_select %p47, 0, %s46
      %s49 = sadd.s32 1, %s40
      %s50 = scalar_select %p47, %s49, %s40
      %p51 = scmp.ge.s32.totalorder %s50, 2
      %s52 = scalar_select %p51, 0, %s50
      %s53 = ssub.s32 %s40, %s52
      %p54 = scmp.eq.s32.totalorder %s53, 0
      %s56 = sadd.s32 %s55, 1
      %s57 = scalar_select %p54, %s55, %s56
      %p60 = pneg %p54
      %p61 = scmp.eq.s32.totalorder %s33, 3
      %p62 = por %p60, %p61
      %p63 = scmp.ne.s32.totalorder %s55, %s58
      %p64 = scmp.eq.s32.totalorder %s33, 0
      %p65 = por %p63, %p64
      %p66 = scmp.ne.s32.totalorder %s55, %s58
      %p67 = scmp.eq.s32.totalorder %s38, 3
      %p68 = por %p66, %p67
      %p69 = scmp.ne.s32.totalorder %s58, %s59
      %p70 = scmp.eq.s32.totalorder %s38, 0
      %p71 = por %p69, %p70
      %p72 = scmp.ne.s32.totalorder %s58, %s59
      %p73 = scmp.eq.s32.totalorder %s39, 3
      %p74 = por %p72, %p73
      %p76 = scmp.ne.s32.totalorder %s59, %s75
      %p77 = scmp.eq.s32.totalorder %s39, 0
      %p78 = por %p76, %p77
      %s79 = ssub.s32 %s40, %s52
      %p80 = scmp.eq.s32.totalorder %s79, 0
      %s82 = sadd.s32 %s81, 1
      %s83 = scalar_select %p80, %s81, %s82
      %p86 = pneg %p80
      %p87 = scmp.eq.s32.totalorder %s33, 3
      %p88 = por %p86, %p87
      %p89 = scmp.ne.s32.totalorder %s81, %s84
      %p90 = scmp.eq.s32.totalorder %s33, 0
      %p91 = por %p89, %p90
      %p92 = scmp.ne.s32.totalorder %s81, %s84
      %p93 = scmp.eq.s32.totalorder %s38, 3
      %p94 = por %p92, %p93
      %p95 = scmp.ne.s32.totalorder %s84, %s85
      %p96 = scmp.eq.s32.totalorder %s38, 0
      %p97 = por %p95, %p96
      %p98 = scmp.ne.s32.totalorder %s84, %s85
      %p99 = scmp.eq.s32.totalorder %s39, 3
      %p100 = por %p98, %p99
      %p102 = scmp.ne.s32.totalorder %s85, %s101
      %p103 = scmp.eq.s32.totalorder %s39, 0
      %p104 = por %p102, %p103
      %s106 = sadd.s32 %s105, 1
      %p109 = scmp.eq.s32.totalorder %s33, 3
      %p110 = scmp.ne.s32.totalorder %s105, %s107
      %p111 = scmp.eq.s32.totalorder %s33, 0
      %p112 = por %p110, %p111
      %p113 = scmp.ne.s32.totalorder %s105, %s107
      %p114 = scmp.eq.s32.totalorder %s38, 3
      %p115 = por %p113, %p114
      %p116 = scmp.ne.s32.totalorder %s107, %s108
      %p117 = scmp.eq.s32.totalorder %s38, 0
      %p118 = por %p116, %p117
      %p119 = scmp.ne.s32.totalorder %s107, %s108
      %p120 = scmp.eq.s32.totalorder %s39, 3
      %p121 = por %p119, %p120
      %p123 = scmp.ne.s32.totalorder %s108, %s122
      %p124 = scmp.eq.s32.totalorder %s39, 0
      %p125 = por %p123, %p124
      %s127 = sadd.s32 %s126, 1
      %p130 = scmp.eq.s32.totalorder %s33, 3
      %p131 = scmp.ne.s32.totalorder %s126, %s128
      %p132 = scmp.eq.s32.totalorder %s33, 0
      %p133 = por %p131, %p132
      %p134 = scmp.ne.s32.totalorder %s126, %s128
      %p135 = scmp.eq.s32.totalorder %s38, 3
      %p136 = por %p134, %p135
      %p137 = scmp.ne.s32.totalorder %s128, %s129
      %p138 = scmp.eq.s32.totalorder %s38, 0
      %p139 = por %p137, %p138
      %p140 = scmp.ne.s32.totalorder %s128, %s129
      %p141 = scmp.eq.s32.totalorder %s39, 3
      %p142 = por %p140, %p141
      %p144 = scmp.ne.s32.totalorder %s129, %s143
      %p145 = scmp.eq.s32.totalorder %s39, 0
      %p146 = por %p144, %p145
      %s148 = sadd.s32 %s147, 1
      %p151 = scmp.eq.s32.totalorder %s33, 3
      %p152 = scmp.ne.s32.totalorder %s147, %s149
      %p153 = scmp.eq.s32.totalorder %s33, 0
      %p154 = por %p152, %p153
      %p155 = scmp.ne.s32.totalorder %s147, %s149
      %p156 = scmp.eq.s32.totalorder %s38, 3
      %p157 = por %p155, %p156
      %p158 = scmp.ne.s32.totalorder %s149, %s150
      %p159 = scmp.eq.s32.totalorder %s38, 0
      %p160 = por %p158, %p159
      %p161 = scmp.ne.s32.totalorder %s149, %s150
      %p162 = scmp.eq.s32.totalorder %s39, 3
      %p163 = por %p161, %p162
      %p165 = scmp.ne.s32.totalorder %s150, %s164
      %p166 = scmp.eq.s32.totalorder %s39, 0
      %p167 = por %p165, %p166
      %s169 = sadd.s32 %s168, 1
      %p172 = scmp.eq.s32.totalorder %s33, 3
      %p173 = scmp.ne.s32.totalorder %s168, %s170
      %p174 = scmp.eq.s32.totalorder %s33, 0
      %p175 = por %p173, %p174
      %p176 = scmp.ne.s32.totalorder %s168, %s170
      %p177 = scmp.eq.s32.totalorder %s38, 3
      %p178 = por %p176, %p177
      %p179 = scmp.ne.s32.totalorder %s170, %s171
      %p180 = scmp.eq.s32.totalorder %s38, 0
      %p181 = por %p179, %p180
      %p182 = scmp.ne.s32.totalorder %s170, %s171
      %p183 = scmp.eq.s32.totalorder %s39, 3
      %p184 = por %p182, %p183
      %p186 = scmp.ne.s32.totalorder %s171, %s185
      %p187 = scmp.eq.s32.totalorder %s39, 0
      %p188 = por %p186, %p187
      %s190 = sadd.s32 %s189, 1
      %p193 = scmp.eq.s32.totalorder %s33, 3
      %p194 = scmp.ne.s32.totalorder %s189, %s191
      %p195 = scmp.eq.s32.totalorder %s33, 0
      %p196 = por %p194, %p195
      %p197 = scmp.ne.s32.totalorder %s189, %s191
      %p198 = scmp.eq.s32.totalorder %s38, 3
      %p199 = por %p197, %p198
      %p200 = scmp.ne.s32.totalorder %s191, %s192
      %p201 = scmp.eq.s32.totalorder %s38, 0
      %p202 = por %p200, %p201
      %p203 = scmp.ne.s32.totalorder %s191, %s192
      %p204 = scmp.eq.s32.totalorder %s39, 3
      %p205 = por %p203, %p204
      %p207 = scmp.ne.s32.totalorder %s192, %s206
      %p208 = scmp.eq.s32.totalorder %s39, 0
      %p209 = por %p207, %p208
      %s211 = sadd.s32 %s210, 1
      %p214 = scmp.eq.s32.totalorder %s33, 3
      %p215 = scmp.ne.s32.totalorder %s210, %s212
      %p216 = scmp.eq.s32.totalorder %s33, 0
      %p217 = por %p215, %p216
      %p218 = scmp.ne.s32.totalorder %s210, %s212
      %p219 = scmp.eq.s32.totalorder %s38, 3
      %p220 = por %p218, %p219
      %p221 = scmp.ne.s32.totalorder %s212, %s213
      %p222 = scmp.eq.s32.totalorder %s38, 0
      %p223 = por %p221, %p222
      %p224 = scmp.ne.s32.totalorder %s212, %s213
      %p225 = scmp.eq.s32.totalorder %s39, 3
      %p226 = por %p224, %p225
      %p228 = scmp.ne.s32.totalorder %s213, %s227
      %p229 = scmp.eq.s32.totalorder %s39, 0
      %p230 = por %p228, %p229
      %s232 = sadd.s32 %s231, 1
      %p235 = scmp.eq.s32.totalorder %s33, 3
      %p236 = scmp.ne.s32.totalorder %s231, %s233
      %p237 = scmp.eq.s32.totalorder %s33, 0
      %p238 = por %p236, %p237
      %p239 = scmp.ne.s32.totalorder %s231, %s233
      %p240 = scmp.eq.s32.totalorder %s38, 3
      %p241 = por %p239, %p240
      %p242 = scmp.ne.s32.totalorder %s233, %s234
      %p243 = scmp.eq.s32.totalorder %s38, 0
      %p244 = por %p242, %p243
      %p245 = scmp.ne.s32.totalorder %s233, %s234
      %p246 = scmp.eq.s32.totalorder %s39, 3
      %p247 = por %p245, %p246
      %p249 = scmp.ne.s32.totalorder %s234, %s248
      %p250 = scmp.eq.s32.totalorder %s39, 0
      %p251 = por %p249, %p250
      %s253 = sadd.s32 %s252, 1
      %p256 = scmp.eq.s32.totalorder %s33, 3
      %p257 = scmp.ne.s32.totalorder %s252, %s254
      %p258 = scmp.eq.s32.totalorder %s33, 0
      %p259 = por %p257, %p258
      %p260 = scmp.ne.s32.totalorder %s252, %s254
      %p261 = scmp.eq.s32.totalorder %s38, 3
      %p262 = por %p260, %p261
      %p263 = scmp.ne.s32.totalorder %s254, %s255
      %p264 = scmp.eq.s32.totalorder %s38, 0
      %p265 = por %p263, %p264
      %p266 = scmp.ne.s32.totalorder %s254, %s255
      %p267 = scmp.eq.s32.totalorder %s39, 3
      %p268 = por %p266, %p267
      %p270 = scmp.ne.s32.totalorder %s255, %s269
      %p271 = scmp.eq.s32.totalorder %s39, 0
      %p272 = por %p270, %p271
      %s274 = sadd.s32 %s273, 1
      %p277 = scmp.eq.s32.totalorder %s33, 3
      %p278 = scmp.ne.s32.totalorder %s273, %s275
      %p279 = scmp.eq.s32.totalorder %s33, 0
      %p280 = por %p278, %p279
      %p281 = scmp.ne.s32.totalorder %s273, %s275
      %p282 = scmp.eq.s32.totalorder %s38, 3
      %p283 = por %p281, %p282
      %p284 = scmp.ne.s32.totalorder %s275, %s276
      %p285 = scmp.eq.s32.totalorder %s38, 0
      %p286 = por %p284, %p285
      %p287 = scmp.ne.s32.totalorder %s275, %s276
      %p288 = scmp.eq.s32.totalorder %s39, 3
      %p289 = por %p287, %p288
      %p291 = scmp.ne.s32.totalorder %s276, %s290
      %p292 = scmp.eq.s32.totalorder %s39, 0
      %p293 = por %p291, %p292
      %s295 = sadd.s32 %s294, 1
      %p298 = scmp.eq.s32.totalorder %s33, 3
      %p299 = scmp.ne.s32.totalorder %s294, %s296
      %p300 = scmp.eq.s32.totalorder %s33, 0
      %p301 = por %p299, %p300
      %p302 = scmp.ne.s32.totalorder %s294, %s296
      %p303 = scmp.eq.s32.totalorder %s38, 3
      %p304 = por %p302, %p303
      %p305 = scmp.ne.s32.totalorder %s296, %s297
      %p306 = scmp.eq.s32.totalorder %s38, 0
      %p307 = por %p305, %p306
      %p308 = scmp.ne.s32.totalorder %s296, %s297
      %p309 = scmp.eq.s32.totalorder %s39, 3
      %p310 = por %p308, %p309
      %p312 = scmp.ne.s32.totalorder %s297, %s311
      %p313 = scmp.eq.s32.totalorder %s39, 0
      %p314 = por %p312, %p313
      %s315 = ssub.s32 %s40, %s52
      %s316 = ssub.s32 %s41, %s48
      %s317 = sor.u32 %s315, %s316
      %p318 = scmp.eq.s32.totalorder %s317, 0
      %s320 = sadd.s32 %s319, 1
      %s321 = scalar_select %p318, %s319, %s320
      %p324 = pneg %p318
      %p325 = scmp.eq.s32.totalorder %s33, 3
      %p326 = por %p324, %p325
      %p327 = scmp.ne.s32.totalorder %s319, %s322
      %p328 = scmp.eq.s32.totalorder %s33, 0
      %p329 = por %p327, %p328
      %p330 = scmp.ne.s32.totalorder %s319, %s322
      %p331 = scmp.eq.s32.totalorder %s38, 3
      %p332 = por %p330, %p331
      %p333 = scmp.ne.s32.totalorder %s322, %s323
      %p334 = scmp.eq.s32.totalorder %s38, 0
      %p335 = por %p333, %p334
      %p336 = scmp.ne.s32.totalorder %s322, %s323
      %p337 = scmp.eq.s32.totalorder %s39, 3
      %p338 = por %p336, %p337
      %p340 = scmp.ne.s32.totalorder %s323, %s339
      %p341 = scmp.eq.s32.totalorder %s39, 0
      %p342 = por %p340, %p341
      %s343 = ssub.s32 %s40, %s52
      %s344 = ssub.s32 %s41, %s48
      %s345 = sor.u32 %s343, %s344
      %p346 = scmp.eq.s32.totalorder %s345, 0
      %s348 = sadd.s32 %s347, 1
      %s349 = scalar_select %p346, %s347, %s348
      %p352 = pneg %p346
      %p353 = scmp.eq.s32.totalorder %s33, 3
      %p354 = por %p352, %p353
      %p355 = scmp.ne.s32.totalorder %s347, %s350
      %p356 = scmp.eq.s32.totalorder %s33, 0
      %p357 = por %p355, %p356
      %p358 = scmp.ne.s32.totalorder %s347, %s350
      %p359 = scmp.eq.s32.totalorder %s38, 3
      %p360 = por %p358, %p359
      %p361 = scmp.ne.s32.totalorder %s350, %s351
      %p362 = scmp.eq.s32.totalorder %s38, 0
      %p363 = por %p361, %p362
      %p364 = scmp.ne.s32.totalorder %s350, %s351
      %p365 = scmp.eq.s32.totalorder %s39, 3
      %p366 = por %p364, %p365
      %p368 = scmp.ne.s32.totalorder %s351, %s367
      %p369 = scmp.eq.s32.totalorder %s39, 0
      %p370 = por %p368, %p369
      %s371 = ssub.s32 %s40, %s52
      %s372 = ssub.s32 %s41, %s48
      %s373 = sor.u32 %s371, %s372
      %p374 = scmp.eq.s32.totalorder %s373, 0
      %s376 = sadd.s32 %s375, 1
      %s377 = scalar_select %p374, %s375, %s376
      %p380 = pneg %p374
      %p381 = scmp.eq.s32.totalorder %s33, 3
      %p382 = por %p380, %p381
      %p383 = scmp.ne.s32.totalorder %s375, %s378
      %p384 = scmp.eq.s32.totalorder %s33, 0
      %p385 = por %p383, %p384
      %p386 = scmp.ne.s32.totalorder %s375, %s378
      %p387 = scmp.eq.s32.totalorder %s38, 3
      %p388 = por %p386, %p387
      %p389 = scmp.ne.s32.totalorder %s378, %s379
      %p390 = scmp.eq.s32.totalorder %s38, 0
      %p391 = por %p389, %p390
      %p392 = scmp.ne.s32.totalorder %s378, %s379
      %p393 = scmp.eq.s32.totalorder %s39, 3
      %p394 = por %p392, %p393
      %p396 = scmp.ne.s32.totalorder %s379, %s395
      %p397 = scmp.eq.s32.totalorder %s39, 0
      %p398 = por %p396, %p397
      %p399 = scmp.le.s32.totalorder 1, %s33
      %p400 = scmp.lt.s32.totalorder %s33, 5
      %p401 = pnand %p399, %p400
      %p402 = pneg %p401
      // Predicated region
      $region9: #{tpu_custom_call.1} parent=5 // pred_check
        _
      $region10: #{tpu_custom_call.1} parent=5 // pred_check_branch
        %404 = sbr.rel (%p401) target = $region12
      $region11: #{tpu_custom_call.1} parent=5 // pred_region
        %s405 = ssub.s32 %s33, 1
        // Predicated region
        $region13: #{tpu_custom_call.1} parent=11 // pred_check
          %p406 = pneg %p118
        $region14: #{tpu_custom_call.1} parent=11 // pred_check_branch
          %408 = sbr.rel (%p406) target = $region16
        $region15: #{tpu_custom_call.1} parent=11 // pred_region
          _
        $region16: #{tpu_custom_call.1} parent=11 // pred_fallthru
          _
        // Predicated region
        $region17: #{tpu_custom_call.1} parent=11 // pred_check
          %p409 = pneg %p139
        $region18: #{tpu_custom_call.1} parent=11 // pred_check_branch
          %411 = sbr.rel (%p409) target = $region20
        $region19: #{tpu_custom_call.1} parent=11 // pred_region
          %413 = vsyncadd [#allocation6], 0
          %s414 = sshll.u32 %s3, 4
          %s415 = int_to_ptr.hbm [resolvable:$true] %s414
          %s416 = sshll.u32 [#allocation5], 4
          %s417 = int_to_ptr.vmem [resolvable:$true] %s416
          %422 = dma.hbm_to_vmem [thread:$0]  %s415, 256, %s417, [#allocation6], 64, 64, 4
        $region20: #{tpu_custom_call.1} parent=11 // pred_fallthru
          _
        // Predicated region
        $region21: #{tpu_custom_call.1} parent=11 // pred_check
          %p423 = pneg %p160
        $region22: #{tpu_custom_call.1} parent=11 // pred_check_branch
          %425 = sbr.rel (%p423) target = $region24
        $region23: #{tpu_custom_call.1} parent=11 // pred_region
          %427 = vsyncadd [#allocation6], 0
          %s428 = sshll.u32 %s4, 4
          %s429 = int_to_ptr.hbm [resolvable:$true] %s428
          %s430 = sshll.u32 [#allocation7], 4
          %s431 = int_to_ptr.vmem [resolvable:$true] %s430
          %436 = dma.hbm_to_vmem [thread:$0]  %s429, 256, %s431, [#allocation6], 64, 64, 4
        $region24: #{tpu_custom_call.1} parent=11 // pred_fallthru
          _
        // Predicated region
        $region25: #{tpu_custom_call.1} parent=11 // pred_check
          %p437 = pneg %p181
        $region26: #{tpu_custom_call.1} parent=11 // pred_check_branch
          %439 = sbr.rel (%p437) target = $region28
        $region27: #{tpu_custom_call.1} parent=11 // pred_region
          %441 = vsyncadd [#allocation9], 0
          %s442 = sshll.u32 %s5, 4
          %s443 = int_to_ptr.hbm [resolvable:$true] %s442
          %s444 = sshll.u32 [#allocation8], 4
          %s445 = int_to_ptr.vmem [resolvable:$true] %s444
          %450 = dma.hbm_to_vmem [thread:$0]  %s443, 256, %s445, [#allocation9], 64, 64, 4
        $region28: #{tpu_custom_call.1} parent=11 // pred_fallthru
          _
        // Predicated region
        $region29: #{tpu_custom_call.1} parent=11 // pred_check
          %p451 = pneg %p202
        $region30: #{tpu_custom_call.1} parent=11 // pred_check_branch
          %453 = sbr.rel (%p451) target = $region32
        $region31: #{tpu_custom_call.1} parent=11 // pred_region
          %455 = vsyncadd [#allocation9], 0
          %s456 = sshll.u32 %s6, 4
          %s457 = int_to_ptr.hbm [resolvable:$true] %s456
          %s458 = sshll.u32 [#allocation10], 4
          %s459 = int_to_ptr.vmem [resolvable:$true] %s458
          %464 = dma.hbm_to_vmem [thread:$0]  %s457, 256, %s459, [#allocation9], 64, 64, 4
        $region32: #{tpu_custom_call.1} parent=11 // pred_fallthru
          _
        // Predicated region
        $region33: #{tpu_custom_call.1} parent=11 // pred_check
          %p465 = pneg %p223
        $region34: #{tpu_custom_call.1} parent=11 // pred_check_branch
          %467 = sbr.rel (%p465) target = $region36
        $region35: #{tpu_custom_call.1} parent=11 // pred_region
          %469 = vsyncadd [#allocation12], 0
          %s470 = sshll.u32 %s7, 4
          %s471 = int_to_ptr.hbm [resolvable:$true] %s470
          %s472 = sshll.u32 [#allocation11], 4
          %s473 = int_to_ptr.vmem [resolvable:$true] %s472
          %478 = dma.hbm_to_vmem [thread:$0]  %s471, 256, %s473, [#allocation12], 64, 64, 4
        $region36: #{tpu_custom_call.1} parent=11 // pred_fallthru
          _
        // Predicated region
        $region37: #{tpu_custom_call.1} parent=11 // pred_check
          %p479 = pneg %p244
        $region38: #{tpu_custom_call.1} parent=11 // pred_check_branch
          %481 = sbr.rel (%p479) target = $region40
        $region39: #{tpu_custom_call.1} parent=11 // pred_region
          %483 = vsyncadd [#allocation12], 0
          %s484 = sshll.u32 %s8, 4
          %s485 = int_to_ptr.hbm [resolvable:$true] %s484
          %s486 = sshll.u32 [#allocation13], 4
          %s487 = int_to_ptr.vmem [resolvable:$true] %s486
          %492 = dma.hbm_to_vmem [thread:$0]  %s485, 256, %s487, [#allocation12], 64, 64, 4
        $region40: #{tpu_custom_call.1} parent=11 // pred_fallthru
          _
        // Predicated region
        $region41: #{tpu_custom_call.1} parent=11 // pred_check
          %p493 = pneg %p265
        $region42: #{tpu_custom_call.1} parent=11 // pred_check_branch
          %495 = sbr.rel (%p493) target = $region44
        $region43: #{tpu_custom_call.1} parent=11 // pred_region
          _
        $region44: #{tpu_custom_call.1} parent=11 // pred_fallthru
          _
        // Predicated region
        $region45: #{tpu_custom_call.1} parent=11 // pred_check
          %p496 = pneg %p286
        $region46: #{tpu_custom_call.1} parent=11 // pred_check_branch
          %498 = sbr.rel (%p496) target = $region48
        $region47: #{tpu_custom_call.1} parent=11 // pred_region
          _
        $region48: #{tpu_custom_call.1} parent=11 // pred_fallthru
          _
        // Predicated region
        $region49: #{tpu_custom_call.1} parent=11 // pred_check
          %p499 = pneg %p307
        $region50: #{tpu_custom_call.1} parent=11 // pred_check_branch
          %501 = sbr.rel (%p499) target = $region52
        $region51: #{tpu_custom_call.1} parent=11 // pred_region
          _
        $region52: #{tpu_custom_call.1} parent=11 // pred_fallthru
          _
      $region12: #{tpu_custom_call.1} parent=5 // pred_fallthru
        _
      %p502 = scmp.lt.s32.totalorder %s33, 4
      // Predicated region
      $region53: #{tpu_custom_call.1} parent=5 // pred_check
        %p503 = pneg %p502
      $region54: #{tpu_custom_call.1} parent=5 // pred_check_branch
        %505 = sbr.rel (%p503) target = $region56
      $region55: #{tpu_custom_call.1} parent=5 // pred_region
        // Predicated region
        $region57: #{tpu_custom_call.1} parent=55 // pred_check
          %p506 = pneg %p65
        $region58: #{tpu_custom_call.1} parent=55 // pred_check_branch
          %508 = sbr.rel (%p506) target = $region60
        $region59: #{tpu_custom_call.1} parent=55 // pred_region
          %p509 = scmp.lt.s32.totalorder %s40, 1
          %s510 = scalar_select %p509, %s40, 1
          %s511 = smul.addr %s510, 2
          %s512 = smul.addr %s511, 8
          %s513 = scalar_lea.vmem %s0, %s512
        $region60: #{tpu_custom_call.1} parent=55 // pred_fallthru
          _
        // Predicated region
        $region61: #{tpu_custom_call.1} parent=55 // pred_check
          %p514 = pneg %p91
        $region62: #{tpu_custom_call.1} parent=55 // pred_check_branch
          %516 = sbr.rel (%p514) target = $region64
        $region63: #{tpu_custom_call.1} parent=55 // pred_region
          %s517 = sand.u32 %s81, 1
          %s518 = scalar_lea.sflag [#allocation3], %s517
          %s519 = sand.u32 %s81, 1
          %s520 = smul.addr %s519, 16
          %s521 = scalar_lea.vmem [#allocation2], %s520
          %523 = vsyncadd %s518, 0
          %s524 = smul.addr %s40, 2
          %s525 = smul.addr %s524, 8
          %s526 = scalar_lea.hbm %s1, %s525
          %s527 = sshll.u32 %s526, 4
          %s528 = int_to_ptr.hbm [resolvable:$true] %s527
          %s529 = sshll.u32 %s521, 4
          %s530 = int_to_ptr.vmem [resolvable:$true] %s529
          %535 = dma.hbm_to_vmem [thread:$0]  %s528, 256, %s530, %s518, 128, 128, 8
        $region64: #{tpu_custom_call.1} parent=55 // pred_fallthru
          _
      $region56: #{tpu_custom_call.1} parent=5 // pred_fallthru
        _
      %p536 = scmp.le.s32.totalorder 1, %s33
      %p537 = scmp.lt.s32.totalorder %s33, 5
      %p538 = pnand %p536, %p537
      %p539 = pneg %p538
      // Predicated region
      $region65: #{tpu_custom_call.1} parent=5 // pred_check
        _
      $region66: #{tpu_custom_call.1} parent=5 // pred_check_branch
        %541 = sbr.rel (%p538) target = $region68
      $region67: #{tpu_custom_call.1} parent=5 // pred_region
        %s542 = ssub.s32 %s33, 1
        %s543 = sand.u32 %s84, 1
        %s544 = scalar_lea.sflag [#allocation3], %s543
        %s545 = sand.u32 %s84, 1
        %s546 = smul.addr %s545, 16
        %s547 = scalar_lea.vmem [#allocation2], %s546
        // Predicated region
        $region69: #{tpu_custom_call.1} parent=67 // pred_check
          %p548 = pneg %p97
        $region70: #{tpu_custom_call.1} parent=67 // pred_check_branch
          %550 = sbr.rel (%p548) target = $region72
        $region71: #{tpu_custom_call.1} parent=67 // pred_region
          %552 = dma.done %s544, 256
        $region72: #{tpu_custom_call.1} parent=67 // pred_fallthru
          _
        // Predicated region
        $region73: #{tpu_custom_call.1} parent=67 // pred_check
          %p553 = pneg %p139
        $region74: #{tpu_custom_call.1} parent=67 // pred_check_branch
          %555 = sbr.rel (%p553) target = $region76
        $region75: #{tpu_custom_call.1} parent=67 // pred_region
          %557 = dma.done [#allocation6], 256
        $region76: #{tpu_custom_call.1} parent=67 // pred_fallthru
          _
        // Predicated region
        $region77: #{tpu_custom_call.1} parent=67 // pred_check
          %p558 = pneg %p160
        $region78: #{tpu_custom_call.1} parent=67 // pred_check_branch
          %560 = sbr.rel (%p558) target = $region80
        $region79: #{tpu_custom_call.1} parent=67 // pred_region
          %562 = dma.done [#allocation6], 256
        $region80: #{tpu_custom_call.1} parent=67 // pred_fallthru
          _
        // Predicated region
        $region81: #{tpu_custom_call.1} parent=67 // pred_check
          %p563 = pneg %p181
        $region82: #{tpu_custom_call.1} parent=67 // pred_check_branch
          %565 = sbr.rel (%p563) target = $region84
        $region83: #{tpu_custom_call.1} parent=67 // pred_region
          %567 = dma.done [#allocation9], 256
        $region84: #{tpu_custom_call.1} parent=67 // pred_fallthru
          _
        // Predicated region
        $region85: #{tpu_custom_call.1} parent=67 // pred_check
          %p568 = pneg %p202
        $region86: #{tpu_custom_call.1} parent=67 // pred_check_branch
          %570 = sbr.rel (%p568) target = $region88
        $region87: #{tpu_custom_call.1} parent=67 // pred_region
          %572 = dma.done [#allocation9], 256
        $region88: #{tpu_custom_call.1} parent=67 // pred_fallthru
          _
        // Predicated region
        $region89: #{tpu_custom_call.1} parent=67 // pred_check
          %p573 = pneg %p223
        $region90: #{tpu_custom_call.1} parent=67 // pred_check_branch
          %575 = sbr.rel (%p573) target = $region92
        $region91: #{tpu_custom_call.1} parent=67 // pred_region
          %577 = dma.done [#allocation12], 256
        $region92: #{tpu_custom_call.1} parent=67 // pred_fallthru
          _
        // Predicated region
        $region93: #{tpu_custom_call.1} parent=67 // pred_check
          %p578 = pneg %p244
        $region94: #{tpu_custom_call.1} parent=67 // pred_check_branch
          %580 = sbr.rel (%p578) target = $region96
        $region95: #{tpu_custom_call.1} parent=67 // pred_region
          %582 = dma.done [#allocation12], 256
        $region96: #{tpu_custom_call.1} parent=67 // pred_fallthru
          _
        %p583 = scmp.lt.s32.totalorder %s42, 1
        %s584 = scalar_select %p583, %s42, 1
        %s585 = smul.addr %s584, 2
        %s586 = smul.addr %s585, 8
        %s587 = scalar_lea.vmem %s0, %s586
        %p588 = pneg %p71
        %p589 = pneg %p68
        %s590 = sand.u32 %s84, 1
        %s591 = scalar_lea.sflag [#allocation3], %s590
        %s592 = sand.u32 %s84, 1
        %s593 = smul.addr %s592, 16
        %s594 = scalar_lea.vmem [#allocation2], %s593
        %p595 = pneg %p97
        %p596 = pneg %p94
        %p597 = pneg %p118
        %p598 = pneg %p115
        %p599 = pneg %p139
        %p600 = pneg %p136
        %p601 = pneg %p160
        %p602 = pneg %p157
        %p603 = pneg %p181
        %p604 = pneg %p178
        %p605 = pneg %p202
        %p606 = pneg %p199
        %p607 = pneg %p223
        %p608 = pneg %p220
        %p609 = pneg %p244
        %p610 = pneg %p241
        %p611 = pneg %p265
        %p612 = pneg %p262
        %p613 = pneg %p286
        %p614 = pneg %p283
        %p615 = pneg %p307
        %p616 = pneg %p304
        %p617 = pneg %p335
        %p618 = pneg %p332
        %s619 = sand.u32 %s322, 1
        %s620 = scalar_lea.sflag [#allocation4], %s619
        %s621 = sand.u32 %s322, 1
        %s622 = smul.addr %s621, 8
        %s623 = scalar_lea.vmem [#allocation14], %s622
        %p624 = pneg %p363
        %p625 = pneg %p360
        %s626 = sand.u32 %s38, 1
        %s627 = scalar_lea.sflag [#allocation16], %s626
        %s628 = sand.u32 %s350, 1
        %s629 = smul.addr %s628, 32
        %s630 = scalar_lea.vmem [#allocation15], %s629
        %p631 = pneg %p391
        %p632 = pneg %p388
        %s633 = sand.u32 %s38, 1
        %s634 = scalar_lea.sflag [#allocation16], %s633
        %s635 = sand.u32 %s378, 1
        %s636 = smul.addr %s635, 32
        %s637 = scalar_lea.vmem [#allocation17], %s636
        %p638 = scmp.lt.s32.totalorder %s42, 1
        %s639 = scalar_select %p638, %s42, 1
        %s640 = smul.addr %s639, 2
        %s641 = smul.addr %s640, 8
        %s642 = scalar_lea.vmem %s0, %s641
        %s644 = smul.u32 %s43, 8
        %s645 = scalar_lea.vmem %s642, %s644
        %v646 = vld [vmem:[%s645] sm:$0xff]
        %v647 = vld [vmem:[%s642] sm:$0xff]
        %v648 = vld [vmem:[%s642 + $0x8] sm:$0xff]
        %v649 = vld [vmem:[%s547] sm:$0xff]
        %v650 = vld [vmem:[%s547 + $0x8] sm:$0xff]
        %v651 = vld [vmem:[%s11] sm:$0xff]
        %v652 = vld [vmem:[%s2] sm:$0xf]
        %v653 = vld [vmem:[%s2 + $0x4] sm:$0xf]
        %v654 = vld [vmem:[%s2 + $0x8] sm:$0xf]
        %v655 = vld [vmem:[%s2 + $0xc] sm:$0xf]
        %v656 = vld [vmem:[#allocation5] sm:$0xf]
        %v657 = vld [vmem:[#allocation5 + $0x4] sm:$0xf]
        %v658 = vld [vmem:[#allocation5 + $0x8] sm:$0xf]
        %v659 = vld [vmem:[#allocation5 + $0xc] sm:$0xf]
        %v660 = vld [vmem:[#allocation7] sm:$0xf]
        %v661 = vld [vmem:[#allocation7 + $0x4] sm:$0xf]
        %v662 = vld [vmem:[#allocation7 + $0x8] sm:$0xf]
        %v663 = vld [vmem:[#allocation7 + $0xc] sm:$0xf]
        %v664 = vpack.c.bf16 %v646, %v646
        %v669 = vunpack.c.l.b16 %v652
        %v670 = vunpack.c.l.b16 %v653
        %v671 = vunpack.c.l.b16 %v654
        %v672 = vunpack.c.l.b16 %v655
        %v673 = vpack.c.b16 %v670, %v669
        %v674 = vpack.c.b16 %v672, %v671
        %vm677 = vcmask 261120
        %v679 = vsel %vm677, %v664, 0
        %681 = vmatpush.bf16.msra.mxu0 0
        %682 = vmatpush.bf16.msra.mxu0 0
        %683 = vmatpush.bf16.msra.mxu0 0
        %684 = vmatpush.bf16.msra.mxu0 0
        %685 = vmatpush.bf16.msra.mxu0 0
        %686 = vmatpush.bf16.msra.mxu0 0
        %687 = vmatpush.bf16.msra.mxu0 %v674
        %688 = vmatpush.bf16.msra.mxu0 %v673
        %689 = vmatmul.bf16.gmra.mxu0 %v679
        %v690 = vpop.f32.mrf.mxu0
        %v691 = vadd.f32 0.0, %v690
        %v692 = vpop.f32.mrf.mxu0
        %693 = vdwg.mxu0
        %v694 = vmul.f32 %v691, 0.35355338
        %v695 = vpack.c.bf16 %v648, %v647
        %v700 = vunpack.c.l.b16 %v656
        %v701 = vunpack.c.l.b16 %v657
        %v702 = vunpack.c.l.b16 %v658
        %v703 = vunpack.c.l.b16 %v659
        %v704 = vpack.c.b16 %v701, %v700
        %v705 = vpack.c.b16 %v703, %v702
        %v709 = vsel %vm677, %v695, 0
        %711 = vmatpush.bf16.msra.mxu0 0
        %712 = vmatpush.bf16.msra.mxu0 0
        %713 = vmatpush.bf16.msra.mxu0 0
        %714 = vmatpush.bf16.msra.mxu0 0
        %715 = vmatpush.bf16.msra.mxu0 0
        %716 = vmatpush.bf16.msra.mxu0 0
        %717 = vmatpush.bf16.msra.mxu0 %v705
        %718 = vmatpush.bf16.msra.mxu0 %v704
        %719 = vmatmul.bf16.gmra.mxu0 %v709
        %v720 = vpop.f32.mrf.mxu0
        %v721 = vadd.f32 0.0, %v720
        %v722 = vpop.f32.mrf.mxu0
        %v723 = vadd.f32 0.0, %v722
        %724 = vdwg.mxu0
        %v725 = vpack.c.bf16 %v694, %v694
        %v726 = vpack.c.bf16 %v721, %v721
        %v727 = vpack.c.bf16 %v723, %v723
        %v730 = vunpack.c.l.b16 %v726
        %v731 = vunpack.c.l.b16 %v727
        %v732 = vpack.c.b16 %v731, %v730
        %vm733 = vcmask 64512
        %v735 = vsel %vm733, %v725, 0
        %v738 = vsel %vm733, %v732, 0
        %740 = vmatpush.bf16.xpose.msra.mxu0 0
        %741 = vmatpush.bf16.xpose.msra.mxu0 0
        %742 = vmatpush.bf16.xpose.msra.mxu0 0
        %743 = vmatpush.bf16.xpose.msra.mxu0 0
        %744 = vmatpush.bf16.xpose.msra.mxu0 0
        %745 = vmatpush.bf16.xpose.msra.mxu0 0
        %746 = vmatpush.bf16.xpose.msra.mxu0 0
        %747 = vmatpush.bf16.xpose.msra.mxu0 %v738
        %748 = vmatmul.bf16.gmra.mxu0 %v735
        %v749 = vpop.f32.mrf.mxu0
        %v750 = vadd.f32 0.0, %v749
        %v751 = vpop.f32.mrf.mxu0
        %752 = vdwg.mxu0
        %vm753 = vcmask 130048
        %v754 = vsel %vm753, %v750, -inf
        %755 = vmax.xlane.f32.xlu0 %v754
        %v756 = vpop.xlane.xlu0 %755
        %v757 = vsub.f32 %v750, %v756
        %v758 = vmul.f32 %v757, 1.442695
        %v759 = vpow.pop %v758
        %v760 = vsel %vm753, %v759, 0.0
        %761 = vadd.xlane.f32.xlu0 %v760
        %v762 = vpop.xlane.xlu0 %761
        %v763 = vrcp.pop %v762
        %v764 = vmul.f32 %v759, %v763
        %765 = vst.msk [vmem:[%s630] sm:$0xff] %vm753, %v764
        %v766 = vpack.c.bf16 %v764, %v764
        %767 = vrot.lane.b32.xlu0 %v732, 96
        %v768 = vpop.permute.xlu0 %767
        %v771 = vsel %vm753, %v766, 0
        %773 = vmatpush.bf16.msra.mxu0 0
        %774 = vmatpush.bf16.msra.mxu0 0
        %775 = vmatpush.bf16.msra.mxu0 0
        %776 = vmatpush.bf16.msra.mxu0 0
        %777 = vmatpush.bf16.msra.mxu0 0
        %778 = vmatpush.bf16.msra.mxu0 0
        %779 = vmatpush.bf16.msra.mxu0 0
        %780 = vmatpush.bf16.msra.mxu0 %v768
        %781 = vmatmul.bf16.gmra.mxu0 %v771
        %v782 = vpop.f32.mrf.mxu0
        %v783 = vadd.f32 0.0, %v782
        %v784 = vpop.f32.mrf.mxu0
        %785 = vdwg.mxu0
        %v787 = vunpack.c.l.b16 %v725
        %v788 = vpack.c.b16 %v787, %v787
        %789 = vrot.lane.b32.xlu0 %v788, 120
        %v790 = vpop.permute.xlu0 %789
        %791 = vrot.lane.b32.xlu0 %v732, 120
        %v792 = vpop.permute.xlu0 %791
        %v794 = vsel %vm733, %v790, 0
        %v797 = vsel %vm733, %v792, 0
        %799 = vmatpush.bf16.xpose.msra.mxu0 0
        %800 = vmatpush.bf16.xpose.msra.mxu0 0
        %801 = vmatpush.bf16.xpose.msra.mxu0 0
        %802 = vmatpush.bf16.xpose.msra.mxu0 0
        %803 = vmatpush.bf16.xpose.msra.mxu0 0
        %804 = vmatpush.bf16.xpose.msra.mxu0 0
        %805 = vmatpush.bf16.xpose.msra.mxu0 0
        %806 = vmatpush.bf16.xpose.msra.mxu0 %v797
        %807 = vmatmul.bf16.gmra.mxu0 %v794
        %v808 = vpop.f32.mrf.mxu0
        %v809 = vadd.f32 0.0, %v808
        %v810 = vpop.f32.mrf.mxu0
        %811 = vdwg.mxu0
        %v812 = vsel %vm753, %v809, -inf
        %813 = vmax.xlane.f32.xlu0 %v812
        %v814 = vpop.xlane.xlu0 %813
        %v815 = vsub.f32 %v809, %v814
        %v816 = vmul.f32 %v815, 1.442695
        %v817 = vpow.pop %v816
        %v818 = vsel %vm753, %v817, 0.0
        %819 = vadd.xlane.f32.xlu0 %v818
        %v820 = vpop.xlane.xlu0 %819
        %v821 = vrcp.pop %v820
        %v822 = vmul.f32 %v817, %v821
        %s823 = scalar_lea.vmem %s630, 8 [#allocation15]
        %824 = vst.msk [vmem:[%s823] sm:$0xff] %vm753, %v822
        %v825 = vpack.c.bf16 %v822, %v822
        %826 = vrot.lane.b32.xlu0 %v732, 88
        %v827 = vpop.permute.xlu0 %826
        %v830 = vsel %vm753, %v825, 0
        %832 = vmatpush.bf16.msra.mxu0 0
        %833 = vmatpush.bf16.msra.mxu0 0
        %834 = vmatpush.bf16.msra.mxu0 0
        %835 = vmatpush.bf16.msra.mxu0 0
        %836 = vmatpush.bf16.msra.mxu0 0
        %837 = vmatpush.bf16.msra.mxu0 0
        %838 = vmatpush.bf16.msra.mxu0 0
        %839 = vmatpush.bf16.msra.mxu0 %v827
        %840 = vmatmul.bf16.gmra.mxu0 %v830
        %v841 = vpop.f32.mrf.mxu0
        %v842 = vadd.f32 0.0, %v841
        %v843 = vpop.f32.mrf.mxu0
        %844 = vdwg.mxu0
        %845 = vrot.lane.b32.xlu0 %v788, 112
        %v846 = vpop.permute.xlu0 %845
        %847 = vrot.lane.b32.xlu0 %v732, 112
        %v848 = vpop.permute.xlu0 %847
        %v850 = vsel %vm733, %v846, 0
        %v853 = vsel %vm733, %v848, 0
        %855 = vmatpush.bf16.xpose.msra.mxu0 0
        %856 = vmatpush.bf16.xpose.msra.mxu0 0
        %857 = vmatpush.bf16.xpose.msra.mxu0 0
        %858 = vmatpush.bf16.xpose.msra.mxu0 0
        %859 = vmatpush.bf16.xpose.msra.mxu0 0
        %860 = vmatpush.bf16.xpose.msra.mxu0 0
        %861 = vmatpush.bf16.xpose.msra.mxu0 0
        %862 = vmatpush.bf16.xpose.msra.mxu0 %v853
        %863 = vmatmul.bf16.gmra.mxu0 %v850
        %v864 = vpop.f32.mrf.mxu0
        %v865 = vadd.f32 0.0, %v864
        %v866 = vpop.f32.mrf.mxu0
        %867 = vdwg.mxu0
        %v868 = vsel %vm753, %v865, -inf
        %869 = vmax.xlane.f32.xlu0 %v868
        %v870 = vpop.xlane.xlu0 %869
        %v871 = vsub.f32 %v865, %v870
        %v872 = vmul.f32 %v871, 1.442695
        %v873 = vpow.pop %v872
        %v874 = vsel %vm753, %v873, 0.0
        %875 = vadd.xlane.f32.xlu0 %v874
        %v876 = vpop.xlane.xlu0 %875
        %v877 = vrcp.pop %v876
        %v878 = vmul.f32 %v873, %v877
        %s879 = scalar_lea.vmem %s630, 16 [#allocation15]
        %880 = vst.msk [vmem:[%s879] sm:$0xff] %vm753, %v878
        %v881 = vpack.c.bf16 %v878, %v878
        %882 = vrot.lane.b32.xlu0 %v732, 80
        %v883 = vpop.permute.xlu0 %882
        %v886 = vsel %vm753, %v881, 0
        %888 = vmatpush.bf16.msra.mxu0 0
        %889 = vmatpush.bf16.msra.mxu0 0
        %890 = vmatpush.bf16.msra.mxu0 0
        %891 = vmatpush.bf16.msra.mxu0 0
        %892 = vmatpush.bf16.msra.mxu0 0
        %893 = vmatpush.bf16.msra.mxu0 0
        %894 = vmatpush.bf16.msra.mxu0 0
        %895 = vmatpush.bf16.msra.mxu0 %v883
        %896 = vmatmul.bf16.gmra.mxu0 %v886
        %v897 = vpop.f32.mrf.mxu0
        %v898 = vadd.f32 0.0, %v897
        %v899 = vpop.f32.mrf.mxu0
        %900 = vdwg.mxu0
        %901 = vrot.lane.b32.xlu0 %v788, 104
        %v902 = vpop.permute.xlu0 %901
        %903 = vrot.lane.b32.xlu0 %v732, 104
        %v904 = vpop.permute.xlu0 %903
        %v906 = vsel %vm733, %v902, 0
        %v909 = vsel %vm733, %v904, 0
        %911 = vmatpush.bf16.xpose.msra.mxu0 0
        %912 = vmatpush.bf16.xpose.msra.mxu0 0
        %913 = vmatpush.bf16.xpose.msra.mxu0 0
        %914 = vmatpush.bf16.xpose.msra.mxu0 0
        %915 = vmatpush.bf16.xpose.msra.mxu0 0
        %916 = vmatpush.bf16.xpose.msra.mxu0 0
        %917 = vmatpush.bf16.xpose.msra.mxu0 0
        %918 = vmatpush.bf16.xpose.msra.mxu0 %v909
        %919 = vmatmul.bf16.gmra.mxu0 %v906
        %v920 = vpop.f32.mrf.mxu0
        %v921 = vadd.f32 0.0, %v920
        %v922 = vpop.f32.mrf.mxu0
        %923 = vdwg.mxu0
        %v924 = vsel %vm753, %v921, -inf
        %925 = vmax.xlane.f32.xlu0 %v924
        %v926 = vpop.xlane.xlu0 %925
        %v927 = vsub.f32 %v921, %v926
        %v928 = vmul.f32 %v927, 1.442695
        %v929 = vpow.pop %v928
        %v930 = vsel %vm753, %v929, 0.0
        %931 = vadd.xlane.f32.xlu0 %v930
        %v932 = vpop.xlane.xlu0 %931
        %v933 = vrcp.pop %v932
        %v934 = vmul.f32 %v929, %v933
        %s935 = scalar_lea.vmem %s630, 24 [#allocation15]
        %936 = vst.msk [vmem:[%s935] sm:$0xff] %vm753, %v934
        %v937 = vpack.c.bf16 %v934, %v934
        %938 = vrot.lane.b32.xlu0 %v732, 72
        %v939 = vpop.permute.xlu0 %938
        %v942 = vsel %vm753, %v937, 0
        %944 = vmatpush.bf16.msra.mxu0 0
        %945 = vmatpush.bf16.msra.mxu0 0
        %946 = vmatpush.bf16.msra.mxu0 0
        %947 = vmatpush.bf16.msra.mxu0 0
        %948 = vmatpush.bf16.msra.mxu0 0
        %949 = vmatpush.bf16.msra.mxu0 0
        %950 = vmatpush.bf16.msra.mxu0 0
        %951 = vmatpush.bf16.msra.mxu0 %v939
        %952 = vmatmul.bf16.gmra.mxu0 %v942
        %v953 = vpop.f32.mrf.mxu0
        %v954 = vadd.f32 0.0, %v953
        %v955 = vpop.f32.mrf.mxu0
        %956 = vdwg.mxu0
        %958 = vrot.lane.b32.xlu0 %v842, 8
        %v959 = vpop.permute.xlu0 %958
        %962 = vrot.lane.b32.xlu0 %v898, 16
        %v963 = vpop.permute.xlu0 %962
        %966 = vrot.lane.b32.xlu0 %v954, 24
        %v967 = vpop.permute.xlu0 %966
        %v969 = vsel %vm733, %v783, %v959
        %v970 = vsel %vm753, %v969, %v963
        %vm971 = vcmask 195584
        %v972 = vsel %vm971, %v970, %v967
        %v973 = vpack.c.bf16 %v972, %v972
        %v978 = vunpack.c.l.b16 %v660
        %v979 = vunpack.c.l.b16 %v661
        %v980 = vunpack.c.l.b16 %v662
        %v981 = vunpack.c.l.b16 %v663
        %v982 = vpack.c.b16 %v979, %v978
        %v983 = vpack.c.b16 %v981, %v980
        %v987 = vsel %vm677, %v973, 0
        %989 = vmatpush.bf16.msra.mxu0 0
        %990 = vmatpush.bf16.msra.mxu0 0
        %991 = vmatpush.bf16.msra.mxu0 0
        %992 = vmatpush.bf16.msra.mxu0 0
        %993 = vmatpush.bf16.msra.mxu0 0
        %994 = vmatpush.bf16.msra.mxu0 0
        %995 = vmatpush.bf16.msra.mxu0 %v983
        %996 = vmatpush.bf16.msra.mxu0 %v982
        %997 = vmatmul.bf16.gmra.mxu0 %v987
        %v998 = vpop.f32.mrf.mxu0
        %v999 = vadd.f32 %v646, %v998
        %v1000 = vpop.f32.mrf.mxu0
        %1001 = vdwg.mxu0
        %v1002 = vsel %vm677, %v999, 0.0
        %1003 = vadd.xlane.f32.xlu0 %v1002
        %v1004 = vpop.xlane.xlu0 %1003
        %v1005 = vrcp.pop 32.0
        %v1006 = vmul.f32 32.0, %v1005
        %v1007 = vsub.f32 1.0, %v1006
        %v1008 = vmul.f32 %v1005, %v1007
        %v1009 = vadd.f32 %v1005, %v1008
        %vm1010 = vweird.f32 %v1005
        %v1011 = vsel %vm1010, %v1005, %v1009
        %v1012 = vmul.f32 %v1004, %v1011
        %v1013 = vsub.f32 %v999, %v1012
        %v1014 = vmul.f32 %v1013, %v1013
        %v1015 = vsel %vm677, %v1014, 0.0
        %1016 = vadd.xlane.f32.xlu0 %v1015
        %v1017 = vpop.xlane.xlu0 %1016
        %v1018 = vmul.f32 %v1017, %v1011
        %v1019 = vadd.f32 %v1018, 1e-06
        %v1020 = vrsqrt.pop %v1019
        %v1021 = vmul.f32 %v1020, %v1019
        %v1022 = vmul.f32 %v1021, %v1020
        %v1023 = vmul.f32 0.5, %v1022
        %v1024 = vsub.f32 1.5, %v1023
        %v1025 = vmul.f32 %v1020, %v1024
        %vm1026 = vweird.f32 %v1019
        %vm1027 = vweird.f32 %v1020
        %vm1028 = vmor %vm1026, %vm1027
        %v1029 = vsel %vm1028, %v1020, %v1025
        %v1030 = vmul.f32 %v1013, %v1029
        %v1031 = vperm.slane %v651, 0
        %v1032 = vmul.f32 %v1030, %v1031
        %v1033 = vperm.slane %v651, 1
        %v1034 = vadd.f32 %v1032, %v1033
        %v1035 = vld [vmem:[#allocation8] sm:$0xf]
        %v1036 = vld [vmem:[#allocation8 + $0x4] sm:$0xf]
        %v1037 = vld [vmem:[#allocation8 + $0x8] sm:$0xf]
        %v1038 = vld [vmem:[#allocation8 + $0xc] sm:$0xf]
        %v1039 = vld [vmem:[#allocation10] sm:$0xf]
        %v1040 = vld [vmem:[#allocation10 + $0x4] sm:$0xf]
        %v1041 = vld [vmem:[#allocation10 + $0x8] sm:$0xf]
        %v1042 = vld [vmem:[#allocation10 + $0xc] sm:$0xf]
        %v1043 = vld [vmem:[#allocation11] sm:$0xf]
        %v1044 = vld [vmem:[#allocation11 + $0x4] sm:$0xf]
        %v1045 = vld [vmem:[#allocation11 + $0x8] sm:$0xf]
        %v1046 = vld [vmem:[#allocation11 + $0xc] sm:$0xf]
        %v1047 = vpack.c.bf16 %v1034, %v1034
        %v1052 = vunpack.c.l.b16 %v1035
        %v1053 = vunpack.c.l.b16 %v1036
        %v1054 = vunpack.c.l.b16 %v1037
        %v1055 = vunpack.c.l.b16 %v1038
        %v1056 = vpack.c.b16 %v1053, %v1052
        %v1057 = vpack.c.b16 %v1055, %v1054
        %v1061 = vsel %vm677, %v1047, 0
        %1063 = vmatpush.bf16.msra.mxu0 0
        %1064 = vmatpush.bf16.msra.mxu0 0
        %1065 = vmatpush.bf16.msra.mxu0 0
        %1066 = vmatpush.bf16.msra.mxu0 0
        %1067 = vmatpush.bf16.msra.mxu0 0
        %1068 = vmatpush.bf16.msra.mxu0 0
        %1069 = vmatpush.bf16.msra.mxu0 %v1057
        %1070 = vmatpush.bf16.msra.mxu0 %v1056
        %1071 = vmatmul.bf16.gmra.mxu0 %v1061
        %v1072 = vpop.f32.mrf.mxu0
        %v1073 = vadd.f32 0.0, %v1072
        %v1074 = vpop.f32.mrf.mxu0
        %1075 = vdwg.mxu0
        %v1076 = vmul.f32 %v1073, 0.35355338
        %v1077 = vpack.c.bf16 %v650, %v649
        %v1082 = vunpack.c.l.b16 %v1039
        %v1083 = vunpack.c.l.b16 %v1040
        %v1084 = vunpack.c.l.b16 %v1041
        %v1085 = vunpack.c.l.b16 %v1042
        %v1086 = vpack.c.b16 %v1083, %v1082
        %v1087 = vpack.c.b16 %v1085, %v1084
        %v1091 = vsel %vm677, %v1077, 0
        %1093 = vmatpush.bf16.msra.mxu0 0
        %1094 = vmatpush.bf16.msra.mxu0 0
        %1095 = vmatpush.bf16.msra.mxu0 0
        %1096 = vmatpush.bf16.msra.mxu0 0
        %1097 = vmatpush.bf16.msra.mxu0 0
        %1098 = vmatpush.bf16.msra.mxu0 0
        %1099 = vmatpush.bf16.msra.mxu0 %v1087
        %1100 = vmatpush.bf16.msra.mxu0 %v1086
        %1101 = vmatmul.bf16.gmra.mxu0 %v1091
        %v1102 = vpop.f32.mrf.mxu0
        %v1103 = vadd.f32 0.0, %v1102
        %v1104 = vpop.f32.mrf.mxu0
        %v1105 = vadd.f32 0.0, %v1104
        %1106 = vdwg.mxu0
        %v1107 = vpack.c.bf16 %v1076, %v1076
        %v1108 = vpack.c.bf16 %v1103, %v1103
        %v1109 = vpack.c.bf16 %v1105, %v1105
        %v1112 = vunpack.c.l.b16 %v1108
        %v1113 = vunpack.c.l.b16 %v1109
        %v1114 = vpack.c.b16 %v1113, %v1112
        %v1116 = vsel %vm733, %v1107, 0
        %v1119 = vsel %vm733, %v1114, 0
        %1121 = vmatpush.bf16.xpose.msra.mxu0 0
        %1122 = vmatpush.bf16.xpose.msra.mxu0 0
        %1123 = vmatpush.bf16.xpose.msra.mxu0 0
        %1124 = vmatpush.bf16.xpose.msra.mxu0 0
        %1125 = vmatpush.bf16.xpose.msra.mxu0 0
        %1126 = vmatpush.bf16.xpose.msra.mxu0 0
        %1127 = vmatpush.bf16.xpose.msra.mxu0 0
        %1128 = vmatpush.bf16.xpose.msra.mxu0 %v1119
        %1129 = vmatmul.bf16.gmra.mxu0 %v1116
        %v1130 = vpop.f32.mrf.mxu0
        %v1131 = vadd.f32 0.0, %v1130
        %v1132 = vpop.f32.mrf.mxu0
        %1133 = vdwg.mxu0
        %v1134 = vsel %vm753, %v1131, -inf
        %1135 = vmax.xlane.f32.xlu0 %v1134
        %v1136 = vpop.xlane.xlu0 %1135
        %v1137 = vsub.f32 %v1131, %v1136
        %v1138 = vmul.f32 %v1137, 1.442695
        %v1139 = vpow.pop %v1138
        %v1140 = vsel %vm753, %v1139, 0.0
        %1141 = vadd.xlane.f32.xlu0 %v1140
        %v1142 = vpop.xlane.xlu0 %1141
        %v1143 = vrcp.pop %v1142
        %v1144 = vmul.f32 %v1139, %v1143
        %1145 = vst.msk [vmem:[%s637] sm:$0xff] %vm753, %v1144
        %v1146 = vpack.c.bf16 %v1144, %v1144
        %1147 = vrot.lane.b32.xlu0 %v1114, 96
        %v1148 = vpop.permute.xlu0 %1147
        %v1151 = vsel %vm753, %v1146, 0
        %1153 = vmatpush.bf16.msra.mxu0 0
        %1154 = vmatpush.bf16.msra.mxu0 0
        %1155 = vmatpush.bf16.msra.mxu0 0
        %1156 = vmatpush.bf16.msra.mxu0 0
        %1157 = vmatpush.bf16.msra.mxu0 0
        %1158 = vmatpush.bf16.msra.mxu0 0
        %1159 = vmatpush.bf16.msra.mxu0 0
        %1160 = vmatpush.bf16.msra.mxu0 %v1148
        %1161 = vmatmul.bf16.gmra.mxu0 %v1151
        %v1162 = vpop.f32.mrf.mxu0
        %v1163 = vadd.f32 0.0, %v1162
        %v1164 = vpop.f32.mrf.mxu0
        %1165 = vdwg.mxu0
        %v1167 = vunpack.c.l.b16 %v1107
        %v1168 = vpack.c.b16 %v1167, %v1167
        %1169 = vrot.lane.b32.xlu0 %v1168, 120
        %v1170 = vpop.permute.xlu0 %1169
        %1171 = vrot.lane.b32.xlu0 %v1114, 120
        %v1172 = vpop.permute.xlu0 %1171
        %v1174 = vsel %vm733, %v1170, 0
        %v1177 = vsel %vm733, %v1172, 0
        %1179 = vmatpush.bf16.xpose.msra.mxu0 0
        %1180 = vmatpush.bf16.xpose.msra.mxu0 0
        %1181 = vmatpush.bf16.xpose.msra.mxu0 0
        %1182 = vmatpush.bf16.xpose.msra.mxu0 0
        %1183 = vmatpush.bf16.xpose.msra.mxu0 0
        %1184 = vmatpush.bf16.xpose.msra.mxu0 0
        %1185 = vmatpush.bf16.xpose.msra.mxu0 0
        %1186 = vmatpush.bf16.xpose.msra.mxu0 %v1177
        %1187 = vmatmul.bf16.gmra.mxu0 %v1174
        %v1188 = vpop.f32.mrf.mxu0
        %v1189 = vadd.f32 0.0, %v1188
        %v1190 = vpop.f32.mrf.mxu0
        %1191 = vdwg.mxu0
        %v1192 = vsel %vm753, %v1189, -inf
        %1193 = vmax.xlane.f32.xlu0 %v1192
        %v1194 = vpop.xlane.xlu0 %1193
        %v1195 = vsub.f32 %v1189, %v1194
        %v1196 = vmul.f32 %v1195, 1.442695
        %v1197 = vpow.pop %v1196
        %v1198 = vsel %vm753, %v1197, 0.0
        %1199 = vadd.xlane.f32.xlu0 %v1198
        %v1200 = vpop.xlane.xlu0 %1199
        %v1201 = vrcp.pop %v1200
        %v1202 = vmul.f32 %v1197, %v1201
        %s1203 = scalar_lea.vmem %s637, 8 [#allocation17]
        %1204 = vst.msk [vmem:[%s1203] sm:$0xff] %vm753, %v1202
        %v1205 = vpack.c.bf16 %v1202, %v1202
        %1206 = vrot.lane.b32.xlu0 %v1114, 88
        %v1207 = vpop.permute.xlu0 %1206
        %v1210 = vsel %vm753, %v1205, 0
        %1212 = vmatpush.bf16.msra.mxu0 0
        %1213 = vmatpush.bf16.msra.mxu0 0
        %1214 = vmatpush.bf16.msra.mxu0 0
        %1215 = vmatpush.bf16.msra.mxu0 0
        %1216 = vmatpush.bf16.msra.mxu0 0
        %1217 = vmatpush.bf16.msra.mxu0 0
        %1218 = vmatpush.bf16.msra.mxu0 0
        %1219 = vmatpush.bf16.msra.mxu0 %v1207
        %1220 = vmatmul.bf16.gmra.mxu0 %v1210
        %v1221 = vpop.f32.mrf.mxu0
        %v1222 = vadd.f32 0.0, %v1221
        %v1223 = vpop.f32.mrf.mxu0
        %1224 = vdwg.mxu0
        %1225 = vrot.lane.b32.xlu0 %v1168, 112
        %v1226 = vpop.permute.xlu0 %1225
        %1227 = vrot.lane.b32.xlu0 %v1114, 112
        %v1228 = vpop.permute.xlu0 %1227
        %v1230 = vsel %vm733, %v1226, 0
        %v1233 = vsel %vm733, %v1228, 0
        %1235 = vmatpush.bf16.xpose.msra.mxu0 0
        %1236 = vmatpush.bf16.xpose.msra.mxu0 0
        %1237 = vmatpush.bf16.xpose.msra.mxu0 0
        %1238 = vmatpush.bf16.xpose.msra.mxu0 0
        %1239 = vmatpush.bf16.xpose.msra.mxu0 0
        %1240 = vmatpush.bf16.xpose.msra.mxu0 0
        %1241 = vmatpush.bf16.xpose.msra.mxu0 0
        %1242 = vmatpush.bf16.xpose.msra.mxu0 %v1233
        %1243 = vmatmul.bf16.gmra.mxu0 %v1230
        %v1244 = vpop.f32.mrf.mxu0
        %v1245 = vadd.f32 0.0, %v1244
        %v1246 = vpop.f32.mrf.mxu0
        %1247 = vdwg.mxu0
        %v1248 = vsel %vm753, %v1245, -inf
        %1249 = vmax.xlane.f32.xlu0 %v1248
        %v1250 = vpop.xlane.xlu0 %1249
        %v1251 = vsub.f32 %v1245, %v1250
        %v1252 = vmul.f32 %v1251, 1.442695
        %v1253 = vpow.pop %v1252
        %v1254 = vsel %vm753, %v1253, 0.0
        %1255 = vadd.xlane.f32.xlu0 %v1254
        %v1256 = vpop.xlane.xlu0 %1255
        %v1257 = vrcp.pop %v1256
        %v1258 = vmul.f32 %v1253, %v1257
        %s1259 = scalar_lea.vmem %s637, 16 [#allocation17]
        %1260 = vst.msk [vmem:[%s1259] sm:$0xff] %vm753, %v1258
        %v1261 = vpack.c.bf16 %v1258, %v1258
        %1262 = vrot.lane.b32.xlu0 %v1114, 80
        %v1263 = vpop.permute.xlu0 %1262
        %v1266 = vsel %vm753, %v1261, 0
        %1268 = vmatpush.bf16.msra.mxu0 0
        %1269 = vmatpush.bf16.msra.mxu0 0
        %1270 = vmatpush.bf16.msra.mxu0 0
        %1271 = vmatpush.bf16.msra.mxu0 0
        %1272 = vmatpush.bf16.msra.mxu0 0
        %1273 = vmatpush.bf16.msra.mxu0 0
        %1274 = vmatpush.bf16.msra.mxu0 0
        %1275 = vmatpush.bf16.msra.mxu0 %v1263
        %1276 = vmatmul.bf16.gmra.mxu0 %v1266
        %v1277 = vpop.f32.mrf.mxu0
        %v1278 = vadd.f32 0.0, %v1277
        %v1279 = vpop.f32.mrf.mxu0
        %1280 = vdwg.mxu0
        %1281 = vrot.lane.b32.xlu0 %v1168, 104
        %v1282 = vpop.permute.xlu0 %1281
        %1283 = vrot.lane.b32.xlu0 %v1114, 104
        %v1284 = vpop.permute.xlu0 %1283
        %v1286 = vsel %vm733, %v1282, 0
        %v1289 = vsel %vm733, %v1284, 0
        %1291 = vmatpush.bf16.xpose.msra.mxu0 0
        %1292 = vmatpush.bf16.xpose.msra.mxu0 0
        %1293 = vmatpush.bf16.xpose.msra.mxu0 0
        %1294 = vmatpush.bf16.xpose.msra.mxu0 0
        %1295 = vmatpush.bf16.xpose.msra.mxu0 0
        %1296 = vmatpush.bf16.xpose.msra.mxu0 0
        %1297 = vmatpush.bf16.xpose.msra.mxu0 0
        %1298 = vmatpush.bf16.xpose.msra.mxu0 %v1289
        %1299 = vmatmul.bf16.gmra.mxu0 %v1286
        %v1300 = vpop.f32.mrf.mxu0
        %v1301 = vadd.f32 0.0, %v1300
        %v1302 = vpop.f32.mrf.mxu0
        %1303 = vdwg.mxu0
        %v1304 = vsel %vm753, %v1301, -inf
        %1305 = vmax.xlane.f32.xlu0 %v1304
        %v1306 = vpop.xlane.xlu0 %1305
        %v1307 = vsub.f32 %v1301, %v1306
        %v1308 = vmul.f32 %v1307, 1.442695
        %v1309 = vpow.pop %v1308
        %v1310 = vsel %vm753, %v1309, 0.0
        %1311 = vadd.xlane.f32.xlu0 %v1310
        %v1312 = vpop.xlane.xlu0 %1311
        %v1313 = vrcp.pop %v1312
        %v1314 = vmul.f32 %v1309, %v1313
        %s1315 = scalar_lea.vmem %s637, 24 [#allocation17]
        %1316 = vst.msk [vmem:[%s1315] sm:$0xff] %vm753, %v1314
        %v1317 = vpack.c.bf16 %v1314, %v1314
        %1318 = vrot.lane.b32.xlu0 %v1114, 72
        %v1319 = vpop.permute.xlu0 %1318
        %v1322 = vsel %vm753, %v1317, 0
        %1324 = vmatpush.bf16.msra.mxu0 0
        %1325 = vmatpush.bf16.msra.mxu0 0
        %1326 = vmatpush.bf16.msra.mxu0 0
        %1327 = vmatpush.bf16.msra.mxu0 0
        %1328 = vmatpush.bf16.msra.mxu0 0
        %1329 = vmatpush.bf16.msra.mxu0 0
        %1330 = vmatpush.bf16.msra.mxu0 0
        %1331 = vmatpush.bf16.msra.mxu0 %v1319
        %1332 = vmatmul.bf16.gmra.mxu0 %v1322
        %v1333 = vpop.f32.mrf.mxu0
        %v1334 = vadd.f32 0.0, %v1333
        %v1335 = vpop.f32.mrf.mxu0
        %1336 = vdwg.mxu0
        %1338 = vrot.lane.b32.xlu0 %v1222, 8
        %v1339 = vpop.permute.xlu0 %1338
        %1342 = vrot.lane.b32.xlu0 %v1278, 16
        %v1343 = vpop.permute.xlu0 %1342
        %1346 = vrot.lane.b32.xlu0 %v1334, 24
        %v1347 = vpop.permute.xlu0 %1346
        %v1349 = vsel %vm733, %v1163, %v1339
        %v1350 = vsel %vm753, %v1349, %v1343
        %v1351 = vsel %vm971, %v1350, %v1347
        %v1352 = vpack.c.bf16 %v1351, %v1351
        %v1357 = vunpack.c.l.b16 %v1043
        %v1358 = vunpack.c.l.b16 %v1044
        %v1359 = vunpack.c.l.b16 %v1045
        %v1360 = vunpack.c.l.b16 %v1046
        %v1361 = vpack.c.b16 %v1358, %v1357
        %v1362 = vpack.c.b16 %v1360, %v1359
        %v1366 = vsel %vm677, %v1352, 0
        %1368 = vmatpush.bf16.msra.mxu0 0
        %1369 = vmatpush.bf16.msra.mxu0 0
        %1370 = vmatpush.bf16.msra.mxu0 0
        %1371 = vmatpush.bf16.msra.mxu0 0
        %1372 = vmatpush.bf16.msra.mxu0 0
        %1373 = vmatpush.bf16.msra.mxu0 0
        %1374 = vmatpush.bf16.msra.mxu0 %v1362
        %1375 = vmatpush.bf16.msra.mxu0 %v1361
        %1376 = vmatmul.bf16.gmra.mxu0 %v1366
        %v1377 = vpop.f32.mrf.mxu0
        %v1378 = vadd.f32 %v1034, %v1377
        %v1379 = vpop.f32.mrf.mxu0
        %1380 = vdwg.mxu0
        %v1381 = vsel %vm677, %v1378, 0.0
        %1382 = vadd.xlane.f32.xlu0 %v1381
        %v1383 = vpop.xlane.xlu0 %1382
        %v1384 = vmul.f32 %v1383, %v1011
        %v1385 = vsub.f32 %v1378, %v1384
        %v1386 = vmul.f32 %v1385, %v1385
        %v1387 = vsel %vm677, %v1386, 0.0
        %1388 = vadd.xlane.f32.xlu0 %v1387
        %v1389 = vpop.xlane.xlu0 %1388
        %v1390 = vmul.f32 %v1389, %v1011
        %v1391 = vadd.f32 %v1390, 1e-06
        %v1392 = vrsqrt.pop %v1391
        %v1393 = vmul.f32 %v1392, %v1391
        %v1394 = vmul.f32 %v1393, %v1392
        %v1395 = vmul.f32 0.5, %v1394
        %v1396 = vsub.f32 1.5, %v1395
        %v1397 = vmul.f32 %v1392, %v1396
        %vm1398 = vweird.f32 %v1391
        %vm1399 = vweird.f32 %v1392
        %vm1400 = vmor %vm1398, %vm1399
        %v1401 = vsel %vm1400, %v1392, %v1397
        %v1402 = vmul.f32 %v1385, %v1401
        %v1403 = vperm.slane %v651, 2
        %v1404 = vmul.f32 %v1402, %v1403
        %v1405 = vperm.slane %v651, 3
        %v1406 = vadd.f32 %v1404, %v1405
        %v1407 = vpack.c.bf16 %v1406, %v1406
        %v1408 = vld [vmem:[#allocation13] sm:$0xf]
        %v1409 = vld [vmem:[#allocation13 + $0x4] sm:$0xf]
        %v1410 = vld [vmem:[#allocation13 + $0x8] sm:$0xf]
        %v1411 = vld [vmem:[#allocation13 + $0xc] sm:$0xf]
        %v1412 = vld [vmem:[%s10] sm:$0x1]
        %v1414 = vperm.slane %v1412, 0
        %v1420 = vunpack.c.l.b16 %v1408
        %v1421 = vunpack.c.l.b16 %v1409
        %v1422 = vunpack.c.l.b16 %v1410
        %v1423 = vunpack.c.l.b16 %v1411
        %v1424 = vpack.c.b16 %v1421, %v1420
        %v1425 = vpack.c.b16 %v1423, %v1422
        %v1429 = vsel %vm677, %v1407, 0
        %1431 = vmatpush.bf16.msra.mxu0 0
        %1432 = vmatpush.bf16.msra.mxu0 0
        %1433 = vmatpush.bf16.msra.mxu0 0
        %1434 = vmatpush.bf16.msra.mxu0 0
        %1435 = vmatpush.bf16.msra.mxu0 0
        %1436 = vmatpush.bf16.msra.mxu0 0
        %1437 = vmatpush.bf16.msra.mxu0 %v1425
        %1438 = vmatpush.bf16.msra.mxu0 %v1424
        %1439 = vmatmul.bf16.gmra.mxu0 %v1429
        %v1440 = vpop.f32.mrf.mxu0
        %v1441 = vadd.f32 %v1414, %v1440
        %v1442 = vpop.f32.mrf.mxu0
        %1443 = vdwg.mxu0
        %v1444 = vmax.f32 %v1441, 0.0
        %v1445 = vpack.c.bf16 %v1444, %v1444
        %v1446 = vld [vmem:[%s9] sm:$0xf]
        %v1447 = vld [vmem:[%s9 + $0x4] sm:$0xf]
        %v1448 = vld [vmem:[%s9 + $0x8] sm:$0xf]
        %v1449 = vld [vmem:[%s9 + $0xc] sm:$0xf]
        %v1450 = vld [vmem:[%s9 + $0x10] sm:$0xf]
        %v1451 = vld [vmem:[%s9 + $0x14] sm:$0xf]
        %v1452 = vld [vmem:[%s9 + $0x18] sm:$0xf]
        %v1453 = vld [vmem:[%s9 + $0x1c] sm:$0xf]
        %v1454 = vperm.slane %v651, 4
        %v1463 = vunpack.c.l.b16 %v1446
        %v1464 = vunpack.c.l.b16 %v1447
        %v1465 = vunpack.c.l.b16 %v1448
        %v1466 = vunpack.c.l.b16 %v1449
        %v1467 = vunpack.c.l.b16 %v1450
        %v1468 = vunpack.c.l.b16 %v1451
        %v1469 = vunpack.c.l.b16 %v1452
        %v1470 = vunpack.c.l.b16 %v1453
        %v1471 = vpack.c.b16 %v1464, %v1463
        %v1472 = vpack.c.b16 %v1466, %v1465
        %v1473 = vpack.c.b16 %v1468, %v1467
        %v1474 = vpack.c.b16 %v1470, %v1469
        %vm1479 = vcmask 523264
        %v1481 = vsel %vm1479, %v1445, 0
        %1483 = vmatpush.bf16.msra.mxu0 0
        %1484 = vmatpush.bf16.msra.mxu0 0
        %1485 = vmatpush.bf16.msra.mxu0 0
        %1486 = vmatpush.bf16.msra.mxu0 0
        %1487 = vmatpush.bf16.msra.mxu0 %v1474
        %1488 = vmatpush.bf16.msra.mxu0 %v1473
        %1489 = vmatpush.bf16.msra.mxu0 %v1472
        %1490 = vmatpush.bf16.msra.mxu0 %v1471
        %1491 = vmatmul.bf16.gmra.mxu0 %v1481
        %v1492 = vpop.f32.mrf.mxu0
        %v1493 = vadd.f32 %v1454, %v1492
        %v1494 = vpop.f32.mrf.mxu0
        %1495 = vdwg.mxu0
        %v1496 = vadd.f32 %v1493, %v1406
        %v1497 = vsel %vm677, %v1496, 0.0
        %1498 = vadd.xlane.f32.xlu0 %v1497
        %v1499 = vpop.xlane.xlu0 %1498
        %v1500 = vmul.f32 %v1499, %v1011
        %v1501 = vsub.f32 %v1496, %v1500
        %v1502 = vmul.f32 %v1501, %v1501
        %v1503 = vsel %vm677, %v1502, 0.0
        %1504 = vadd.xlane.f32.xlu0 %v1503
        %v1505 = vpop.xlane.xlu0 %1504
        %v1506 = vmul.f32 %v1505, %v1011
        %v1507 = vadd.f32 %v1506, 1e-06
        %v1508 = vrsqrt.pop %v1507
        %v1509 = vmul.f32 %v1508, %v1507
        %v1510 = vmul.f32 %v1509, %v1508
        %v1511 = vmul.f32 0.5, %v1510
        %v1512 = vsub.f32 1.5, %v1511
        %v1513 = vmul.f32 %v1508, %v1512
        %vm1514 = vweird.f32 %v1507
        %vm1515 = vweird.f32 %v1508
        %vm1516 = vmor %vm1514, %vm1515
        %v1517 = vsel %vm1516, %v1508, %v1513
        %v1518 = vmul.f32 %v1501, %v1517
        %v1519 = vperm.slane %v651, 5
        %v1520 = vmul.f32 %v1518, %v1519
        %v1521 = vperm.slane %v651, 6
        %v1522 = vadd.f32 %v1520, %v1521
        %1523 = vst.msk [vmem:[%s623] sm:$0xff] %vm677, %v1522
        %s1524 = sand.u32 %s322, 1
        %s1525 = scalar_lea.sflag [#allocation4], %s1524
        %s1526 = sand.u32 %s322, 1
        %s1527 = smul.addr %s1526, 8
        %s1528 = scalar_lea.vmem [#allocation14], %s1527
        %s1529 = sand.u32 %s38, 1
        %s1530 = scalar_lea.sflag [#allocation16], %s1529
        %s1531 = sand.u32 %s350, 1
        %s1532 = smul.addr %s1531, 32
        %s1533 = scalar_lea.vmem [#allocation15], %s1532
        %s1534 = sand.u32 %s38, 1
        %s1535 = scalar_lea.sflag [#allocation16], %s1534
        %s1536 = sand.u32 %s378, 1
        %s1537 = smul.addr %s1536, 32
        %s1538 = scalar_lea.vmem [#allocation17], %s1537
        // Predicated region
        $region97: #{tpu_custom_call.1} parent=67 // pred_check
          %p1539 = pneg %p332
        $region98: #{tpu_custom_call.1} parent=67 // pred_check_branch
          %1541 = sbr.rel (%p1539) target = $region100
        $region99: #{tpu_custom_call.1} parent=67 // pred_region
          %1543 = vsyncadd %s1525, 0
          %s1544 = smul.addr %s42, 2
          %s1545 = sadd.s32 %s43, %s1544
          %s1546 = smul.addr %s1545, 8
          %s1547 = scalar_lea.hbm %s12, %s1546
          %s1549 = sshll.u32 %s1528, 4
          %s1550 = int_to_ptr.vmem [resolvable:$true] %s1549
          %s1551 = sshll.u32 %s1547, 4
          %s1552 = int_to_ptr.hbm [resolvable:$true] %s1551
          %1554 = dma.vmem_to_hbm [thread:$0]  %s1550, 128, %s1552, %s1525
        $region100: #{tpu_custom_call.1} parent=67 // pred_fallthru
          _
        // Predicated region
        $region101: #{tpu_custom_call.1} parent=67 // pred_check
          %p1555 = pneg %p360
        $region102: #{tpu_custom_call.1} parent=67 // pred_check_branch
          %1557 = sbr.rel (%p1555) target = $region104
        $region103: #{tpu_custom_call.1} parent=67 // pred_region
          %1559 = vsyncadd %s1530, 0
          %s1560 = smul.addr %s42, 8
          %s1561 = sadd.s32 %s43, %s1560
          %s1562 = smul.addr %s1561, 8
          %s1563 = scalar_lea.hbm %s13, %s1562
          %s1564 = sshll.u32 %s1533, 4
          %s1565 = int_to_ptr.vmem [resolvable:$true] %s1564
          %s1566 = sshll.u32 %s1563, 4
          %s1567 = int_to_ptr.hbm [resolvable:$true] %s1566
          %1572 = dma.vmem_to_hbm [thread:$0]  %s1565, 512, %s1567, %s1530, 128, 256, 8
        $region104: #{tpu_custom_call.1} parent=67 // pred_fallthru
          _
        // Predicated region
        $region105: #{tpu_custom_call.1} parent=67 // pred_check
          %p1573 = pneg %p388
        $region106: #{tpu_custom_call.1} parent=67 // pred_check_branch
          %1575 = sbr.rel (%p1573) target = $region108
        $region107: #{tpu_custom_call.1} parent=67 // pred_region
          %1577 = vsyncadd %s1535, 0
          %s1578 = smul.addr %s42, 8
          %s1579 = sadd.s32 %s43, %s1578
          %s1580 = smul.addr %s1579, 8
          %s1581 = scalar_lea.hbm %s14, %s1580
          %s1582 = sshll.u32 %s1538, 4
          %s1583 = int_to_ptr.vmem [resolvable:$true] %s1582
          %s1584 = sshll.u32 %s1581, 4
          %s1585 = int_to_ptr.hbm [resolvable:$true] %s1584
          %1590 = dma.vmem_to_hbm [thread:$0]  %s1583, 512, %s1585, %s1535, 128, 256, 8
        $region108: #{tpu_custom_call.1} parent=67 // pred_fallthru
          _
      $region68: #{tpu_custom_call.1} parent=5 // pred_fallthru
        _
      %p1591 = scmp.le.s32.totalorder 2, %s33
      // Predicated region
      $region109: #{tpu_custom_call.1} parent=5 // pred_check
        %p1592 = pneg %p1591
      $region110: #{tpu_custom_call.1} parent=5 // pred_check_branch
        %1594 = sbr.rel (%p1592) target = $region112
      $region111: #{tpu_custom_call.1} parent=5 // pred_region
        %s1595 = ssub.s32 %s33, 2
        // Predicated region
        $region113: #{tpu_custom_call.1} parent=111 // pred_check
          %p1596 = pneg %p338
        $region114: #{tpu_custom_call.1} parent=111 // pred_check_branch
          %1598 = sbr.rel (%p1596) target = $region116
        $region115: #{tpu_custom_call.1} parent=111 // pred_region
          %s1599 = sand.u32 %s323, 1
          %s1600 = scalar_lea.sflag [#allocation4], %s1599
          %s1601 = sand.u32 %s323, 1
          %s1602 = smul.addr %s1601, 8
          %s1603 = scalar_lea.vmem [#allocation14], %s1602
          %1605 = dma.done %s1600, 128
        $region116: #{tpu_custom_call.1} parent=111 // pred_fallthru
          _
        // Predicated region
        $region117: #{tpu_custom_call.1} parent=111 // pred_check
          %p1606 = pneg %p366
        $region118: #{tpu_custom_call.1} parent=111 // pred_check_branch
          %1608 = sbr.rel (%p1606) target = $region120
        $region119: #{tpu_custom_call.1} parent=111 // pred_region
          %s1609 = sand.u32 %s39, 1
          %s1610 = scalar_lea.sflag [#allocation16], %s1609
          %s1611 = sand.u32 %s351, 1
          %s1612 = smul.addr %s1611, 32
          %s1613 = scalar_lea.vmem [#allocation15], %s1612
          %1615 = dma.done %s1610, 512
        $region120: #{tpu_custom_call.1} parent=111 // pred_fallthru
          _
        // Predicated region
        $region121: #{tpu_custom_call.1} parent=111 // pred_check
          %p1616 = pneg %p394
        $region122: #{tpu_custom_call.1} parent=111 // pred_check_branch
          %1618 = sbr.rel (%p1616) target = $region124
        $region123: #{tpu_custom_call.1} parent=111 // pred_region
          %s1619 = sand.u32 %s39, 1
          %s1620 = scalar_lea.sflag [#allocation16], %s1619
          %s1621 = sand.u32 %s379, 1
          %s1622 = smul.addr %s1621, 32
          %s1623 = scalar_lea.vmem [#allocation17], %s1622
          %1625 = dma.done %s1620, 512
        $region124: #{tpu_custom_call.1} parent=111 // pred_fallthru
          _
      $region112: #{tpu_custom_call.1} parent=5 // pred_fallthru
        _
    $region6: #{tpu_custom_call.1} parent=1 // loop_footer
      %s37 = sadd.s32 1, %s33
    $region7: #{tpu_custom_call.1} parent=1 // loop_footer_branch
      %32 = sbr.rel target = $region3
    $region8: #{tpu_custom_call.1} parent=1 // loop_exit
      _
    %1626 = vsyncpa [#allocation3], 1
    %s1627 = scalar_lea.sflag [#allocation3], 1
    %1628 = vsyncpa %s1627, 1
    %1629 = vsyncpa [#allocation6], 1
    %1630 = vsyncpa [#allocation9], 1
    %1631 = vsyncpa [#allocation12], 1
    %1632 = vsyncpa [#allocation4], 1
    %s1633 = scalar_lea.sflag [#allocation4], 1
    %1634 = vsyncpa %s1633, 1
    %1635 = vsyncpa [#allocation16], 1
    %s1636 = scalar_lea.sflag [#allocation16], 1
    %1637 = vsyncpa %s1636, 1

</llo_original>
